<compile_context>
chip_gen: v7x
topology: tpu7x:2x2x1
jax: 0.10.0
libtpu: 0.0.40
codegen_flags: <defaults>
</compile_context>

<pallas_src>
import functools

import numpy as np
import jax
import jax.numpy as jnp
from jax import lax
from jax.experimental import pallas as pl
from jax.experimental.pallas import tpu as pltpu


def _temporal_attention_kernel(x1_ref, x2_ref, bias_ref,
                               wq_ref, bq_ref,
                               wkv1_ref, bkv1_ref,
                               wkv2_ref, bkv2_ref,
                               wp1_ref, bp1_ref,
                               wp2_ref, bp2_ref,
                               out1_ref, out2_ref,
                               *, num_heads, scale):
    # x1_ref / x2_ref / out*_ref : (Bt, N, C)
    # bias_ref                   : (H, N, N)   pre-gathered relative position bias
    # w*_ref                     : (in, out)   (transposed torch.nn.Linear layout)
    # b*_ref                     : (1, out)    wq/bq arrive pre-scaled by `scale`.
    Bt, N, C = x1_ref.shape
    H = num_heads
    D = C // H
    eps2 = 1e-24                       # (torch F.normalize eps = 1e-12) squared

    in_dtype = x1_ref.dtype
    # bf16 inputs -> keep MXU operands bf16 (full-rate MXU on v6e/v7x);
    # otherwise f32.  Accumulation is always f32 via preferred_element_type.
    mm_dtype = jnp.bfloat16 if in_dtype == jnp.bfloat16 else jnp.float32

    x1 = x1_ref[...].reshape(Bt * N, C)
    x2 = x2_ref[...].reshape(Bt * N, C)
    diff = jnp.abs(x2 - x1)

    # Fused slab projections: one MXU matmul each over all Bt*N tokens.
    kv1 = (jnp.dot(x1, wkv1_ref[...], preferred_element_type=jnp.float32)
           + bkv1_ref[...].astype(jnp.float32))
    kv2 = (jnp.dot(x2, wkv2_ref[...], preferred_element_type=jnp.float32)
           + bkv2_ref[...].astype(jnp.float32))
    q = (jnp.dot(diff, wq_ref[...], preferred_element_type=jnp.float32)
         + bq_ref[...].astype(jnp.float32))

    k1 = kv1[:, :C].reshape(Bt, N, C)
    v1 = kv1[:, C:].reshape(Bt, N, C)
    k2 = kv2[:, :C].reshape(Bt, N, C)
    v2 = kv2[:, C:].reshape(Bt, N, C)
    q = q.reshape(Bt, N, C)            # already once-scaled (folded into wq/bq)

    bias = bias_ref[...].astype(jnp.float32)           # (H, N, N)
    # Hoist per-head bias views once; reused by BOTH branches.
    bias_b = [bias[h][None] for h in range(H)]

    def head_norm_inv(t):
        # L2 norm across heads (torch F.normalize default dim=1 on (B,H,N,D)):
        # inv[b,n,d] = 1 / max(sqrt(sum_h t[b,n,h*D+d]^2), eps)
        t2 = t * t                                      # one full-width VPU mul
        s = t2[:, :, 0:D]
        for h in range(1, H):
            s = s + t2[:, :, h * D:(h + 1) * D]
        inv = lax.rsqrt(jnp.maximum(s, eps2))           # EUP rsqrt, (Bt, N, D)
        return jnp.tile(inv, (1, 1, H))                 # lane-tile to (Bt, N, C)

    # Full-width normalisation (one multiply per tensor, no per-head divides).
    qn = q * head_norm_inv(q)      # normalize(q*scale) == normalize(q), scale > 0
    k1n = k1 * head_norm_inv(k1)
    k2n = k2 * head_norm_inv(k2)

    def attend(qn_, kn_, v_, q_sub):
        """Returns concat_h(softmax(qn_h kn_h^T + bias_h) @ v_h) - q_sub."""
        qm = qn_.astype(mm_dtype)
        km = kn_.astype(mm_dtype)
        vm = v_.astype(mm_dtype)
        outs = []
        # TODO(synk): if N / H grow (e.g. 7x7 windows), switch this Python
        # unroll to lax.fori_loop(unroll=True) + a VMEM scratch slab to bound
        # live ranges, and consider a (Bt*H)-batched dot_general.
        for h in range(H):
            sl = slice(h * D, (h + 1) * D)
            a = jnp.einsum('bnd,bmd->bnm', qm[:, :, sl], km[:, :, sl],
                           preferred_element_type=jnp.float32)
            a = a + bias_b[h]
            a = a - jnp.max(a, axis=-1, keepdims=True)
            e = jnp.exp(a)
            o = jnp.einsum('bnm,bmd->bnd', e.astype(mm_dtype), vm[:, :, sl],
                           preferred_element_type=jnp.float32)
            # Fold the softmax denominator into the (N x D) output instead of
            # normalising the (N x N) probability matrix.
            inv_l = pl.reciprocal(jnp.sum(e, axis=-1, keepdims=True), approx=True)
            outs.append(o * inv_l)
        # Single full-width subtraction of the scaled, un-normalised q.
        return jnp.concatenate(outs, axis=-1) - q_sub

    # Branch 1: once-scaled q against k2/v2, then proj1.
    o1 = attend(qn, k2n, v2, q).reshape(Bt * N, C)
    o1 = (jnp.dot(o1.astype(mm_dtype), wp1_ref[...],
                  preferred_element_type=jnp.float32)
          + bp1_ref[...].astype(jnp.float32))
    out1_ref[...] = o1.reshape(Bt, N, C).astype(out1_ref.dtype)

    # Branch 2: torch rescales q a second time.  Normalisation is
    # scale-invariant, so qn is reused; only the subtracted q changes.
    q2 = q * scale
    if scale > 0:
        qn2 = qn
    elif scale == 0:
        qn2 = jnp.zeros_like(qn)
    else:
        qn2 = -qn
    o2 = attend(qn2, k1n, v1, q2).reshape(Bt * N, C)
    o2 = (jnp.dot(o2.astype(mm_dtype), wp2_ref[...],
                  preferred_element_type=jnp.float32)
          + bp2_ref[...].astype(jnp.float32))
    out2_ref[...] = o2.reshape(Bt, N, C).astype(out2_ref.dtype)


def temporal_attention(x1, x2, params, rel_bias, num_heads, *,
                       qk_scale=None, block_b=None):
    """x1, x2: (B, N, C). rel_bias: (H, N, N). Weights as documented above."""
    B, N, C = x1.shape
    H = num_heads
    D = C // H
    scale = float(qk_scale) if qk_scale is not None else float(D) ** (-0.5)

    # Fold the FIRST q*scale into the q projection (removes one (Bt*N, C) VPU
    # multiply per grid step); the kernel keeps only the second rescale.
    wq = params['wq'] * scale
    bq = params['bq'] * scale

    if block_b is None:
        # Largest batch tile that still leaves >= 4 grid steps: >= 2 steps per
        # TensorCore on v7x and pipeline steady state on single-TC v5e/v6e.
        divisors = [d for d in range(1, B + 1) if B % d == 0]
        cand = [d for d in divisors if B // d >= 4]
        block_b = max(cand) if cand else 1
    grid = (B // block_b,)

    kernel = functools.partial(_temporal_attention_kernel,
                               num_heads=H, scale=scale)

    batch_map = lambda b: (b, 0, 0)
    w2d = lambda b: (0, 0)
    w3d = lambda b: (0, 0, 0)

    # Constant-index operands never change block -> single-buffer them
    # (double-buffering them is pure VMEM waste, decisive at production C on
    # v7x's 64 MiB VMEM).
    one_buf = pl.Buffered(1)

    in_specs = [
        pl.BlockSpec((block_b, N, C), batch_map),                     # x1
        pl.BlockSpec((block_b, N, C), batch_map),                     # x2
        pl.BlockSpec((H, N, N), w3d, pipeline_mode=one_buf),          # rel bias
        pl.BlockSpec((C, C), w2d, pipeline_mode=one_buf),             # wq (scaled)
        pl.BlockSpec((1, C), w2d, pipeline_mode=one_buf),             # bq (scaled)
        pl.BlockSpec((C, 2 * C), w2d, pipeline_mode=one_buf),         # wkv1
        pl.BlockSpec((1, 2 * C), w2d, pipeline_mode=one_buf),         # bkv1
        pl.BlockSpec((C, 2 * C), w2d, pipeline_mode=one_buf),         # wkv2
        pl.BlockSpec((1, 2 * C), w2d, pipeline_mode=one_buf),         # bkv2
        pl.BlockSpec((C, C), w2d, pipeline_mode=one_buf),             # wp1
        pl.BlockSpec((1, C), w2d, pipeline_mode=one_buf),             # bp1
        pl.BlockSpec((C, C), w2d, pipeline_mode=one_buf),             # wp2
        pl.BlockSpec((1, C), w2d, pipeline_mode=one_buf),             # bp2
    ]
    out_specs = [
        pl.BlockSpec((block_b, N, C), batch_map),
        pl.BlockSpec((block_b, N, C), batch_map),
    ]
    out_shape = (jax.ShapeDtypeStruct((B, N, C), x1.dtype),
                 jax.ShapeDtypeStruct((B, N, C), x2.dtype))

    # VMEM budget: constants single-buffered + x/out blocks double-buffered +
    # a generous allowance for f32 intermediates and per-head score tiles.
    isz = 4
    block_io = block_b * N * C * isz
    weight_bytes = (6 * C * C + 8 * C) * isz + H * N * N * isz
    interm_bytes = (24 * block_b * N * C + 6 * block_b * N * N) * isz
    est = weight_bytes + 4 * 2 * block_io + interm_bytes
    vmem_limit = int(min(max(2 * est, 32 * 1024 * 1024), 64 * 1024 * 1024))

    return pl.pallas_call(
        kernel,
        out_shape=out_shape,
        grid_spec=pltpu.PrefetchScalarGridSpec(
            num_scalar_prefetch=0,
            grid=grid,
            in_specs=in_specs,
            out_specs=out_specs,
        ),
        compiler_params=pltpu.CompilerParams(
            # TODO(synk): on v7x, verify the batch axis shards across both
            # TensorCores; switch to pltpu.CORE_PARALLEL if plain "parallel"
            # does not split it.
            dimension_semantics=("parallel",),
            vmem_limit_bytes=vmem_limit),
    )(x1, x2, rel_bias,
      wq, bq,
      params['wkv1'], params['bkv1'],
      params['wkv2'], params['bkv2'],
      params['wp1'], params['bp1'],
      params['wp2'], params['bp2'])


def make_relative_position_bias(table, window_size, num_heads):
    """Host-side gather: table ((2Wh-1)*(2Ww-1), H) -> dense bias (H, N, N)."""
    Wh, Ww = window_size
    N = Wh * Ww
    coords = np.stack(np.meshgrid(np.arange(Wh), np.arange(Ww), indexing='ij'))
    flat = coords.reshape(2, -1)                                    # (2, N)
    rel = (flat[:, :, None] - flat[:, None, :]).transpose(1, 2, 0)  # (N, N, 2)
    rel = rel.astype(np.int64)
    rel[..., 0] += Wh - 1
    rel[..., 1] += Ww - 1
    rel[..., 0] *= 2 * Ww - 1
    idx = rel.sum(-1).reshape(-1)                                   # (N*N,)
    bias = jnp.take(table, jnp.asarray(idx, jnp.int32), axis=0)     # (N*N, H)
    return bias.reshape(N, N, num_heads).transpose(2, 0, 1)         # (H, N, N)


def temporal_attention_ref(x1, x2, params, rel_bias, num_heads, *, qk_scale=None):
    """Pure-JAX reference with identical semantics (sanity check only)."""
    B, N, C = x1.shape
    H = num_heads
    D = C // H
    scale = qk_scale if qk_scale is not None else D ** (-0.5)
    hp = jax.lax.Precision.HIGHEST

    def linear(x, w, b):
        return jnp.einsum('bnc,co->bno', x, w, precision=hp) + b.reshape(1, 1, -1)

    kv1 = linear(x1, params['wkv1'], params['bkv1'])           # (B,N,2C)
    kv2 = linear(x2, params['wkv2'], params['bkv2'])
    q = linear(jnp.abs(x2 - x1), params['wq'], params['bq'])   # (B,N,C)

    def heads(t):
        return t.reshape(B, N, H, -1).transpose(0, 2, 1, 3)    # (B,H,N,D)

    k1, v1 = heads(kv1[..., :C]), heads(kv1[..., C:])
    k2, v2 = heads(kv2[..., :C]), heads(kv2[..., C:])
    q = heads(q) * scale

    def l2n(t):  # F.normalize default dim=1 (head axis)
        n = jnp.sqrt(jnp.sum(t * t, axis=1, keepdims=True))
        return t / jnp.maximum(n, 1e-12)

    def branch(qv, kv, vv):
        attn = jnp.einsum('bhnd,bhmd->bhnm', l2n(qv), l2n(kv), precision=hp)
        attn = attn + rel_bias[None]
        attn = jax.nn.softmax(attn, axis=-1)
        o = jnp.einsum('bhnm,bhmd->bhnd', attn, vv, precision=hp) - qv
        return o.transpose(0, 2, 1, 3).reshape(B, N, C)

    o1 = branch(q, k2, v2)
    o1 = jnp.einsum('bnc,co->bno', o1, params['wp1'], precision=hp) \
        + params['bp1'].reshape(1, 1, -1)
    q2 = q * scale
    o2 = branch(q2, k1, v1)
    o2 = jnp.einsum('bnc,co->bno', o2, params['wp2'], precision=hp) \
        + params['bp2'].reshape(1, 1, -1)
    return o1, o2


if __name__ == "__main__":
    B, H = 8, 4
    window = (4, 4)
    N = window[0] * window[1]      # 16 tokens per window
    C = 32                         # dim
    table_len = (2 * window[0] - 1) * (2 * window[1] - 1)

    key = jax.random.PRNGKey(0)
    ks = jax.random.split(key, 13)

    x1 = jax.random.normal(ks[0], (B, N, C), jnp.float32)
    x2 = jax.random.normal(ks[1], (B, N, C), jnp.float32)

    # Weights stored as (in, out), i.e. transposed relative to torch.nn.Linear.
    params = {
        'wq':   0.1 * jax.random.normal(ks[2], (C, C), jnp.float32),
        'bq':   0.1 * jax.random.normal(ks[3], (1, C), jnp.float32),
        'wkv1': 0.1 * jax.random.normal(ks[4], (C, 2 * C), jnp.float32),
        'bkv1': 0.1 * jax.random.normal(ks[5], (1, 2 * C), jnp.float32),
        'wkv2': 0.1 * jax.random.normal(ks[6], (C, 2 * C), jnp.float32),
        'bkv2': 0.1 * jax.random.normal(ks[7], (1, 2 * C), jnp.float32),
        'wp1':  0.1 * jax.random.normal(ks[8], (C, C), jnp.float32),
        'bp1':  0.1 * jax.random.normal(ks[9], (1, C), jnp.float32),
        'wp2':  0.1 * jax.random.normal(ks[10], (C, C), jnp.float32),
        'bp2':  0.1 * jax.random.normal(ks[11], (1, C), jnp.float32),
    }
    bias_table = 0.02 * jax.random.normal(ks[12], (table_len, H), jnp.float32)
    rel_bias = make_relative_position_bias(bias_table, window, H)   # (H, N, N)

    out1, out2 = temporal_attention(x1, x2, params, rel_bias, num_heads=H)
    out1, out2 = jax.block_until_ready((out1, out2))

    ref1, ref2 = temporal_attention_ref(x1, x2, params, rel_bias, num_heads=H)
    assert out1.shape == (B, N, C) and out2.shape == (B, N, C)
    # Tolerance accounts for pl.reciprocal(approx=True) in the softmax
    # denominator (EUP approximate reciprocal); approx=False restores ~1e-5
    # agreement.
    assert jnp.allclose(out1, ref1, atol=5e-3, rtol=5e-3), "branch-1 mismatch vs reference"
    assert jnp.allclose(out2, ref2, atol=5e-3, rtol=5e-3), "branch-2 mismatch vs reference"

    print("KERNEL_OK")
</pallas_src>

<mosaic_0001>
module attributes {stable_mosaic.version = 11 : i64} {
  func.func @_temporal_attention_kernel(%arg0: i32, %arg1: memref<2x16x32xf32, #tpu.memory_space<vmem>>, %arg2: memref<2x16x32xf32, #tpu.memory_space<vmem>>, %arg3: memref<4x16x16xf32, #tpu.memory_space<vmem>>, %arg4: memref<32x32xf32, #tpu.memory_space<vmem>>, %arg5: memref<1x32xf32, #tpu.memory_space<vmem>>, %arg6: memref<32x64xf32, #tpu.memory_space<vmem>>, %arg7: memref<1x64xf32, #tpu.memory_space<vmem>>, %arg8: memref<32x64xf32, #tpu.memory_space<vmem>>, %arg9: memref<1x64xf32, #tpu.memory_space<vmem>>, %arg10: memref<32x32xf32, #tpu.memory_space<vmem>>, %arg11: memref<1x32xf32, #tpu.memory_space<vmem>>, %arg12: memref<32x32xf32, #tpu.memory_space<vmem>>, %arg13: memref<1x32xf32, #tpu.memory_space<vmem>>, %arg14: memref<2x16x32xf32, #tpu.memory_space<vmem>>, %arg15: memref<2x16x32xf32, #tpu.memory_space<vmem>>) attributes {dimension_semantics = [#tpu.dimension_semantics<parallel>], iteration_bounds = array<i64: 4>, scalar_prefetch = 0 : i64, scratch_operands = 0 : i64, tpu.core_type = #tpu.core_type<tc>, window_params = [{transform_indices = @transform_0, window_bounds = array<i64: 2, 16, 32>}, {transform_indices = @transform_1, window_bounds = array<i64: 2, 16, 32>}, {pipeline_mode = #tpu.pipeline_mode<synchronous>, transform_indices = @transform_2, window_bounds = array<i64: 4, 16, 16>}, {pipeline_mode = #tpu.pipeline_mode<synchronous>, transform_indices = @transform_3, window_bounds = array<i64: 32, 32>}, {pipeline_mode = #tpu.pipeline_mode<synchronous>, transform_indices = @transform_4, window_bounds = array<i64: 1, 32>}, {pipeline_mode = #tpu.pipeline_mode<synchronous>, transform_indices = @transform_5, window_bounds = array<i64: 32, 64>}, {pipeline_mode = #tpu.pipeline_mode<synchronous>, transform_indices = @transform_6, window_bounds = array<i64: 1, 64>}, {pipeline_mode = #tpu.pipeline_mode<synchronous>, transform_indices = @transform_7, window_bounds = array<i64: 32, 64>}, {pipeline_mode = #tpu.pipeline_mode<synchronous>, transform_indices = @transform_8, window_bounds = array<i64: 1, 64>}, {pipeline_mode = #tpu.pipeline_mode<synchronous>, transform_indices = @transform_9, window_bounds = array<i64: 32, 32>}, {pipeline_mode = #tpu.pipeline_mode<synchronous>, transform_indices = @transform_10, window_bounds = array<i64: 1, 32>}, {pipeline_mode = #tpu.pipeline_mode<synchronous>, transform_indices = @transform_11, window_bounds = array<i64: 32, 32>}, {pipeline_mode = #tpu.pipeline_mode<synchronous>, transform_indices = @transform_12, window_bounds = array<i64: 1, 32>}, {transform_indices = @transform_13, window_bounds = array<i64: 2, 16, 32>}, {transform_indices = @transform_14, window_bounds = array<i64: 2, 16, 32>}]} {
    %c0 = arith.constant 0 : index
    %c0_0 = arith.constant 0 : index
    %c0_1 = arith.constant 0 : index
    %0 = vector.load %arg1[%c0, %c0_0, %c0_1] : memref<2x16x32xf32, #tpu.memory_space<vmem>>, vector<2x16x32xf32>
    %1 = vector.shape_cast %0 : vector<2x16x32xf32> to vector<32x32xf32>
    %c0_2 = arith.constant 0 : index
    %c0_3 = arith.constant 0 : index
    %c0_4 = arith.constant 0 : index
    %2 = vector.load %arg2[%c0_2, %c0_3, %c0_4] : memref<2x16x32xf32, #tpu.memory_space<vmem>>, vector<2x16x32xf32>
    %3 = vector.shape_cast %2 : vector<2x16x32xf32> to vector<32x32xf32>
    %4 = arith.subf %3, %1 : vector<32x32xf32>
    %5 = math.absf %4 : vector<32x32xf32>
    %c0_5 = arith.constant 0 : index
    %c0_6 = arith.constant 0 : index
    %6 = vector.load %arg6[%c0_5, %c0_6] : memref<32x64xf32, #tpu.memory_space<vmem>>, vector<32x64xf32>
    %cst = arith.constant dense<0.000000e+00> : vector<32x64xf32>
    %7 = tpu.matmul %1, %6, %cst {dimension_numbers = #tpu.dot_dimension_numbers<[1], [0], [0], [1], [0, 0, 1, 1], [], []>} : vector<32x32xf32>, vector<32x64xf32>, vector<32x64xf32> -> vector<32x64xf32>
    %c0_7 = arith.constant 0 : index
    %c0_8 = arith.constant 0 : index
    %8 = vector.load %arg7[%c0_7, %c0_8] : memref<1x64xf32, #tpu.memory_space<vmem>>, vector<1x64xf32>
    %9 = vector.broadcast %8 : vector<1x64xf32> to vector<32x64xf32>
    %10 = arith.addf %7, %9 : vector<32x64xf32>
    %c0_9 = arith.constant 0 : index
    %c0_10 = arith.constant 0 : index
    %11 = vector.load %arg8[%c0_9, %c0_10] : memref<32x64xf32, #tpu.memory_space<vmem>>, vector<32x64xf32>
    %cst_11 = arith.constant dense<0.000000e+00> : vector<32x64xf32>
    %12 = tpu.matmul %3, %11, %cst_11 {dimension_numbers = #tpu.dot_dimension_numbers<[1], [0], [0], [1], [0, 0, 1, 1], [], []>} : vector<32x32xf32>, vector<32x64xf32>, vector<32x64xf32> -> vector<32x64xf32>
    %c0_12 = arith.constant 0 : index
    %c0_13 = arith.constant 0 : index
    %13 = vector.load %arg9[%c0_12, %c0_13] : memref<1x64xf32, #tpu.memory_space<vmem>>, vector<1x64xf32>
    %14 = vector.broadcast %13 : vector<1x64xf32> to vector<32x64xf32>
    %15 = arith.addf %12, %14 : vector<32x64xf32>
    %c0_14 = arith.constant 0 : index
    %c0_15 = arith.constant 0 : index
    %16 = vector.load %arg4[%c0_14, %c0_15] : memref<32x32xf32, #tpu.memory_space<vmem>>, vector<32x32xf32>
    %cst_16 = arith.constant dense<0.000000e+00> : vector<32x32xf32>
    %17 = tpu.matmul %5, %16, %cst_16 {dimension_numbers = #tpu.dot_dimension_numbers<[1], [0], [0], [1], [0, 0, 1, 1], [], []>} : vector<32x32xf32>, vector<32x32xf32>, vector<32x32xf32> -> vector<32x32xf32>
    %c0_17 = arith.constant 0 : index
    %c0_18 = arith.constant 0 : index
    %18 = vector.load %arg5[%c0_17, %c0_18] : memref<1x32xf32, #tpu.memory_space<vmem>>, vector<1x32xf32>
    %19 = vector.broadcast %18 : vector<1x32xf32> to vector<32x32xf32>
    %20 = arith.addf %17, %19 : vector<32x32xf32>
    %21 = vector.extract_strided_slice %10 {offsets = [0, 0], sizes = [32, 32], strides = [1, 1]} : vector<32x64xf32> to vector<32x32xf32>
    %22 = vector.shape_cast %21 : vector<32x32xf32> to vector<2x16x32xf32>
    %23 = vector.extract_strided_slice %10 {offsets = [0, 32], sizes = [32, 32], strides = [1, 1]} : vector<32x64xf32> to vector<32x32xf32>
    %24 = vector.shape_cast %23 : vector<32x32xf32> to vector<2x16x32xf32>
    %25 = vector.extract_strided_slice %15 {offsets = [0, 0], sizes = [32, 32], strides = [1, 1]} : vector<32x64xf32> to vector<32x32xf32>
    %26 = vector.shape_cast %25 : vector<32x32xf32> to vector<2x16x32xf32>
    %27 = vector.extract_strided_slice %15 {offsets = [0, 32], sizes = [32, 32], strides = [1, 1]} : vector<32x64xf32> to vector<32x32xf32>
    %28 = vector.shape_cast %27 : vector<32x32xf32> to vector<2x16x32xf32>
    %29 = vector.shape_cast %20 : vector<32x32xf32> to vector<2x16x32xf32>
    %c0_19 = arith.constant 0 : index
    %c0_20 = arith.constant 0 : index
    %c0_21 = arith.constant 0 : index
    %30 = vector.load %arg3[%c0_19, %c0_20, %c0_21] : memref<4x16x16xf32, #tpu.memory_space<vmem>>, vector<4x16x16xf32>
    %31 = vector.extract_strided_slice %30 {offsets = [0, 0, 0], sizes = [1, 16, 16], strides = [1, 1, 1]} : vector<4x16x16xf32> to vector<1x16x16xf32>
    %32 = vector.shape_cast %31 : vector<1x16x16xf32> to vector<16x16xf32>
    %33 = vector.shape_cast %32 : vector<16x16xf32> to vector<1x16x16xf32>
    %34 = vector.extract_strided_slice %30 {offsets = [1, 0, 0], sizes = [1, 16, 16], strides = [1, 1, 1]} : vector<4x16x16xf32> to vector<1x16x16xf32>
    %35 = vector.shape_cast %34 : vector<1x16x16xf32> to vector<16x16xf32>
    %36 = vector.shape_cast %35 : vector<16x16xf32> to vector<1x16x16xf32>
    %37 = vector.extract_strided_slice %30 {offsets = [2, 0, 0], sizes = [1, 16, 16], strides = [1, 1, 1]} : vector<4x16x16xf32> to vector<1x16x16xf32>
    %38 = vector.shape_cast %37 : vector<1x16x16xf32> to vector<16x16xf32>
    %39 = vector.shape_cast %38 : vector<16x16xf32> to vector<1x16x16xf32>
    %40 = vector.extract_strided_slice %30 {offsets = [3, 0, 0], sizes = [1, 16, 16], strides = [1, 1, 1]} : vector<4x16x16xf32> to vector<1x16x16xf32>
    %41 = vector.shape_cast %40 : vector<1x16x16xf32> to vector<16x16xf32>
    %42 = vector.shape_cast %41 : vector<16x16xf32> to vector<1x16x16xf32>
    %43 = arith.mulf %29, %29 : vector<2x16x32xf32>
    %44 = vector.extract_strided_slice %43 {offsets = [0, 0, 0], sizes = [2, 16, 8], strides = [1, 1, 1]} : vector<2x16x32xf32> to vector<2x16x8xf32>
    %45 = vector.extract_strided_slice %43 {offsets = [0, 0, 8], sizes = [2, 16, 8], strides = [1, 1, 1]} : vector<2x16x32xf32> to vector<2x16x8xf32>
    %46 = arith.addf %44, %45 : vector<2x16x8xf32>
    %47 = vector.extract_strided_slice %43 {offsets = [0, 0, 16], sizes = [2, 16, 8], strides = [1, 1, 1]} : vector<2x16x32xf32> to vector<2x16x8xf32>
    %48 = arith.addf %46, %47 : vector<2x16x8xf32>
    %49 = vector.extract_strided_slice %43 {offsets = [0, 0, 24], sizes = [2, 16, 8], strides = [1, 1, 1]} : vector<2x16x32xf32> to vector<2x16x8xf32>
    %50 = arith.addf %48, %49 : vector<2x16x8xf32>
    %cst_22 = arith.constant 1.000000e-24 : f32
    %51 = vector.broadcast %cst_22 : f32 to vector<2x16x8xf32>
    %52 = arith.maximumf %50, %51 : vector<2x16x8xf32>
    %53 = math.rsqrt %52 : vector<2x16x8xf32>
    %54 = tpu.concatenate %53, %53, %53, %53 in 2 : vector<2x16x8xf32>, vector<2x16x8xf32>, vector<2x16x8xf32>, vector<2x16x8xf32> -> vector<2x16x32xf32>
    %55 = arith.mulf %29, %54 : vector<2x16x32xf32>
    %56 = arith.mulf %22, %22 : vector<2x16x32xf32>
    %57 = vector.extract_strided_slice %56 {offsets = [0, 0, 0], sizes = [2, 16, 8], strides = [1, 1, 1]} : vector<2x16x32xf32> to vector<2x16x8xf32>
    %58 = vector.extract_strided_slice %56 {offsets = [0, 0, 8], sizes = [2, 16, 8], strides = [1, 1, 1]} : vector<2x16x32xf32> to vector<2x16x8xf32>
    %59 = arith.addf %57, %58 : vector<2x16x8xf32>
    %60 = vector.extract_strided_slice %56 {offsets = [0, 0, 16], sizes = [2, 16, 8], strides = [1, 1, 1]} : vector<2x16x32xf32> to vector<2x16x8xf32>
    %61 = arith.addf %59, %60 : vector<2x16x8xf32>
    %62 = vector.extract_strided_slice %56 {offsets = [0, 0, 24], sizes = [2, 16, 8], strides = [1, 1, 1]} : vector<2x16x32xf32> to vector<2x16x8xf32>
    %63 = arith.addf %61, %62 : vector<2x16x8xf32>
    %cst_23 = arith.constant 1.000000e-24 : f32
    %64 = vector.broadcast %cst_23 : f32 to vector<2x16x8xf32>
    %65 = arith.maximumf %63, %64 : vector<2x16x8xf32>
    %66 = math.rsqrt %65 : vector<2x16x8xf32>
    %67 = tpu.concatenate %66, %66, %66, %66 in 2 : vector<2x16x8xf32>, vector<2x16x8xf32>, vector<2x16x8xf32>, vector<2x16x8xf32> -> vector<2x16x32xf32>
    %68 = arith.mulf %22, %67 : vector<2x16x32xf32>
    %69 = arith.mulf %26, %26 : vector<2x16x32xf32>
    %70 = vector.extract_strided_slice %69 {offsets = [0, 0, 0], sizes = [2, 16, 8], strides = [1, 1, 1]} : vector<2x16x32xf32> to vector<2x16x8xf32>
    %71 = vector.extract_strided_slice %69 {offsets = [0, 0, 8], sizes = [2, 16, 8], strides = [1, 1, 1]} : vector<2x16x32xf32> to vector<2x16x8xf32>
    %72 = arith.addf %70, %71 : vector<2x16x8xf32>
    %73 = vector.extract_strided_slice %69 {offsets = [0, 0, 16], sizes = [2, 16, 8], strides = [1, 1, 1]} : vector<2x16x32xf32> to vector<2x16x8xf32>
    %74 = arith.addf %72, %73 : vector<2x16x8xf32>
    %75 = vector.extract_strided_slice %69 {offsets = [0, 0, 24], sizes = [2, 16, 8], strides = [1, 1, 1]} : vector<2x16x32xf32> to vector<2x16x8xf32>
    %76 = arith.addf %74, %75 : vector<2x16x8xf32>
    %cst_24 = arith.constant 1.000000e-24 : f32
    %77 = vector.broadcast %cst_24 : f32 to vector<2x16x8xf32>
    %78 = arith.maximumf %76, %77 : vector<2x16x8xf32>
    %79 = math.rsqrt %78 : vector<2x16x8xf32>
    %80 = tpu.concatenate %79, %79, %79, %79 in 2 : vector<2x16x8xf32>, vector<2x16x8xf32>, vector<2x16x8xf32>, vector<2x16x8xf32> -> vector<2x16x32xf32>
    %81 = arith.mulf %26, %80 : vector<2x16x32xf32>
    %82 = vector.extract_strided_slice %55 {offsets = [0, 0, 0], sizes = [2, 16, 8], strides = [1, 1, 1]} : vector<2x16x32xf32> to vector<2x16x8xf32>
    %83 = vector.extract_strided_slice %81 {offsets = [0, 0, 0], sizes = [2, 16, 8], strides = [1, 1, 1]} : vector<2x16x32xf32> to vector<2x16x8xf32>
    "tpu.trace_start"() <{level = 10 : i32, message = "bnd,bmd->bnm"}> : () -> ()
    %cst_25 = arith.constant dense<0.000000e+00> : vector<2x16x16xf32>
    %84 = tpu.matmul %82, %83, %cst_25 {dimension_numbers = #tpu.dot_dimension_numbers<[2], [2], [1], [1], [0, 0, 0, 1, 1, 1], [0], [0]>} : vector<2x16x8xf32>, vector<2x16x8xf32>, vector<2x16x16xf32> -> vector<2x16x16xf32>
    "tpu.trace_stop"() : () -> ()
    %85 = vector.broadcast %33 : vector<1x16x16xf32> to vector<2x16x16xf32>
    %86 = arith.addf %84, %85 : vector<2x16x16xf32>
    %cst_26 = arith.constant dense<0xFF800000> : vector<2x16xf32>
    %87 = vector.multi_reduction <maximumf>, %86, %cst_26 [2] : vector<2x16x16xf32> to vector<2x16xf32>
    %88 = vector.shape_cast %87 : vector<2x16xf32> to vector<2x16x1xf32>
    %89 = vector.broadcast %88 : vector<2x16x1xf32> to vector<2x16x16xf32>
    %90 = arith.subf %86, %89 : vector<2x16x16xf32>
    %91 = math.exp %90 : vector<2x16x16xf32>
    %92 = vector.extract_strided_slice %28 {offsets = [0, 0, 0], sizes = [2, 16, 8], strides = [1, 1, 1]} : vector<2x16x32xf32> to vector<2x16x8xf32>
    "tpu.trace_start"() <{level = 10 : i32, message = "bnm,bmd->bnd"}> : () -> ()
    %cst_27 = arith.constant dense<0.000000e+00> : vector<2x16x8xf32>
    %93 = tpu.matmul %91, %92, %cst_27 {dimension_numbers = #tpu.dot_dimension_numbers<[2], [1], [1], [2], [0, 0, 0, 1, 1, 2], [0], [0]>} : vector<2x16x16xf32>, vector<2x16x8xf32>, vector<2x16x8xf32> -> vector<2x16x8xf32>
    "tpu.trace_stop"() : () -> ()
    %cst_28 = arith.constant dense<0.000000e+00> : vector<2x16xf32>
    %94 = vector.multi_reduction <add>, %91, %cst_28 [2] : vector<2x16x16xf32> to vector<2x16xf32>
    %95 = vector.shape_cast %94 : vector<2x16xf32> to vector<2x16x1xf32>
    %96 = tpu.reciprocal %95 {approx = true} : vector<2x16x1xf32> -> vector<2x16x1xf32>
    %97 = vector.broadcast %96 : vector<2x16x1xf32> to vector<2x16x8xf32>
    %98 = arith.mulf %93, %97 : vector<2x16x8xf32>
    %99 = vector.extract_strided_slice %55 {offsets = [0, 0, 8], sizes = [2, 16, 8], strides = [1, 1, 1]} : vector<2x16x32xf32> to vector<2x16x8xf32>
    %100 = vector.extract_strided_slice %81 {offsets = [0, 0, 8], sizes = [2, 16, 8], strides = [1, 1, 1]} : vector<2x16x32xf32> to vector<2x16x8xf32>
    "tpu.trace_start"() <{level = 10 : i32, message = "bnd,bmd->bnm"}> : () -> ()
    %cst_29 = arith.constant dense<0.000000e+00> : vector<2x16x16xf32>
    %101 = tpu.matmul %99, %100, %cst_29 {dimension_numbers = #tpu.dot_dimension_numbers<[2], [2], [1], [1], [0, 0, 0, 1, 1, 1], [0], [0]>} : vector<2x16x8xf32>, vector<2x16x8xf32>, vector<2x16x16xf32> -> vector<2x16x16xf32>
    "tpu.trace_stop"() : () -> ()
    %102 = vector.broadcast %36 : vector<1x16x16xf32> to vector<2x16x16xf32>
    %103 = arith.addf %101, %102 : vector<2x16x16xf32>
    %cst_30 = arith.constant dense<0xFF800000> : vector<2x16xf32>
    %104 = vector.multi_reduction <maximumf>, %103, %cst_30 [2] : vector<2x16x16xf32> to vector<2x16xf32>
    %105 = vector.shape_cast %104 : vector<2x16xf32> to vector<2x16x1xf32>
    %106 = vector.broadcast %105 : vector<2x16x1xf32> to vector<2x16x16xf32>
    %107 = arith.subf %103, %106 : vector<2x16x16xf32>
    %108 = math.exp %107 : vector<2x16x16xf32>
    %109 = vector.extract_strided_slice %28 {offsets = [0, 0, 8], sizes = [2, 16, 8], strides = [1, 1, 1]} : vector<2x16x32xf32> to vector<2x16x8xf32>
    "tpu.trace_start"() <{level = 10 : i32, message = "bnm,bmd->bnd"}> : () -> ()
    %cst_31 = arith.constant dense<0.000000e+00> : vector<2x16x8xf32>
    %110 = tpu.matmul %108, %109, %cst_31 {dimension_numbers = #tpu.dot_dimension_numbers<[2], [1], [1], [2], [0, 0, 0, 1, 1, 2], [0], [0]>} : vector<2x16x16xf32>, vector<2x16x8xf32>, vector<2x16x8xf32> -> vector<2x16x8xf32>
    "tpu.trace_stop"() : () -> ()
    %cst_32 = arith.constant dense<0.000000e+00> : vector<2x16xf32>
    %111 = vector.multi_reduction <add>, %108, %cst_32 [2] : vector<2x16x16xf32> to vector<2x16xf32>
    %112 = vector.shape_cast %111 : vector<2x16xf32> to vector<2x16x1xf32>
    %113 = tpu.reciprocal %112 {approx = true} : vector<2x16x1xf32> -> vector<2x16x1xf32>
    %114 = vector.broadcast %113 : vector<2x16x1xf32> to vector<2x16x8xf32>
    %115 = arith.mulf %110, %114 : vector<2x16x8xf32>
    %116 = vector.extract_strided_slice %55 {offsets = [0, 0, 16], sizes = [2, 16, 8], strides = [1, 1, 1]} : vector<2x16x32xf32> to vector<2x16x8xf32>
    %117 = vector.extract_strided_slice %81 {offsets = [0, 0, 16], sizes = [2, 16, 8], strides = [1, 1, 1]} : vector<2x16x32xf32> to vector<2x16x8xf32>
    "tpu.trace_start"() <{level = 10 : i32, message = "bnd,bmd->bnm"}> : () -> ()
    %cst_33 = arith.constant dense<0.000000e+00> : vector<2x16x16xf32>
    %118 = tpu.matmul %116, %117, %cst_33 {dimension_numbers = #tpu.dot_dimension_numbers<[2], [2], [1], [1], [0, 0, 0, 1, 1, 1], [0], [0]>} : vector<2x16x8xf32>, vector<2x16x8xf32>, vector<2x16x16xf32> -> vector<2x16x16xf32>
    "tpu.trace_stop"() : () -> ()
    %119 = vector.broadcast %39 : vector<1x16x16xf32> to vector<2x16x16xf32>
    %120 = arith.addf %118, %119 : vector<2x16x16xf32>
    %cst_34 = arith.constant dense<0xFF800000> : vector<2x16xf32>
    %121 = vector.multi_reduction <maximumf>, %120, %cst_34 [2] : vector<2x16x16xf32> to vector<2x16xf32>
    %122 = vector.shape_cast %121 : vector<2x16xf32> to vector<2x16x1xf32>
    %123 = vector.broadcast %122 : vector<2x16x1xf32> to vector<2x16x16xf32>
    %124 = arith.subf %120, %123 : vector<2x16x16xf32>
    %125 = math.exp %124 : vector<2x16x16xf32>
    %126 = vector.extract_strided_slice %28 {offsets = [0, 0, 16], sizes = [2, 16, 8], strides = [1, 1, 1]} : vector<2x16x32xf32> to vector<2x16x8xf32>
    "tpu.trace_start"() <{level = 10 : i32, message = "bnm,bmd->bnd"}> : () -> ()
    %cst_35 = arith.constant dense<0.000000e+00> : vector<2x16x8xf32>
    %127 = tpu.matmul %125, %126, %cst_35 {dimension_numbers = #tpu.dot_dimension_numbers<[2], [1], [1], [2], [0, 0, 0, 1, 1, 2], [0], [0]>} : vector<2x16x16xf32>, vector<2x16x8xf32>, vector<2x16x8xf32> -> vector<2x16x8xf32>
    "tpu.trace_stop"() : () -> ()
    %cst_36 = arith.constant dense<0.000000e+00> : vector<2x16xf32>
    %128 = vector.multi_reduction <add>, %125, %cst_36 [2] : vector<2x16x16xf32> to vector<2x16xf32>
    %129 = vector.shape_cast %128 : vector<2x16xf32> to vector<2x16x1xf32>
    %130 = tpu.reciprocal %129 {approx = true} : vector<2x16x1xf32> -> vector<2x16x1xf32>
    %131 = vector.broadcast %130 : vector<2x16x1xf32> to vector<2x16x8xf32>
    %132 = arith.mulf %127, %131 : vector<2x16x8xf32>
    %133 = vector.extract_strided_slice %55 {offsets = [0, 0, 24], sizes = [2, 16, 8], strides = [1, 1, 1]} : vector<2x16x32xf32> to vector<2x16x8xf32>
    %134 = vector.extract_strided_slice %81 {offsets = [0, 0, 24], sizes = [2, 16, 8], strides = [1, 1, 1]} : vector<2x16x32xf32> to vector<2x16x8xf32>
    "tpu.trace_start"() <{level = 10 : i32, message = "bnd,bmd->bnm"}> : () -> ()
    %cst_37 = arith.constant dense<0.000000e+00> : vector<2x16x16xf32>
    %135 = tpu.matmul %133, %134, %cst_37 {dimension_numbers = #tpu.dot_dimension_numbers<[2], [2], [1], [1], [0, 0, 0, 1, 1, 1], [0], [0]>} : vector<2x16x8xf32>, vector<2x16x8xf32>, vector<2x16x16xf32> -> vector<2x16x16xf32>
    "tpu.trace_stop"() : () -> ()
    %136 = vector.broadcast %42 : vector<1x16x16xf32> to vector<2x16x16xf32>
    %137 = arith.addf %135, %136 : vector<2x16x16xf32>
    %cst_38 = arith.constant dense<0xFF800000> : vector<2x16xf32>
    %138 = vector.multi_reduction <maximumf>, %137, %cst_38 [2] : vector<2x16x16xf32> to vector<2x16xf32>
    %139 = vector.shape_cast %138 : vector<2x16xf32> to vector<2x16x1xf32>
    %140 = vector.broadcast %139 : vector<2x16x1xf32> to vector<2x16x16xf32>
    %141 = arith.subf %137, %140 : vector<2x16x16xf32>
    %142 = math.exp %141 : vector<2x16x16xf32>
    %143 = vector.extract_strided_slice %28 {offsets = [0, 0, 24], sizes = [2, 16, 8], strides = [1, 1, 1]} : vector<2x16x32xf32> to vector<2x16x8xf32>
    "tpu.trace_start"() <{level = 10 : i32, message = "bnm,bmd->bnd"}> : () -> ()
    %cst_39 = arith.constant dense<0.000000e+00> : vector<2x16x8xf32>
    %144 = tpu.matmul %142, %143, %cst_39 {dimension_numbers = #tpu.dot_dimension_numbers<[2], [1], [1], [2], [0, 0, 0, 1, 1, 2], [0], [0]>} : vector<2x16x16xf32>, vector<2x16x8xf32>, vector<2x16x8xf32> -> vector<2x16x8xf32>
    "tpu.trace_stop"() : () -> ()
    %cst_40 = arith.constant dense<0.000000e+00> : vector<2x16xf32>
    %145 = vector.multi_reduction <add>, %142, %cst_40 [2] : vector<2x16x16xf32> to vector<2x16xf32>
    %146 = vector.shape_cast %145 : vector<2x16xf32> to vector<2x16x1xf32>
    %147 = tpu.reciprocal %146 {approx = true} : vector<2x16x1xf32> -> vector<2x16x1xf32>
    %148 = vector.broadcast %147 : vector<2x16x1xf32> to vector<2x16x8xf32>
    %149 = arith.mulf %144, %148 : vector<2x16x8xf32>
    %150 = tpu.concatenate %98, %115, %132, %149 in 2 : vector<2x16x8xf32>, vector<2x16x8xf32>, vector<2x16x8xf32>, vector<2x16x8xf32> -> vector<2x16x32xf32>
    %151 = arith.subf %150, %29 : vector<2x16x32xf32>
    %152 = vector.shape_cast %151 : vector<2x16x32xf32> to vector<32x32xf32>
    %c0_41 = arith.constant 0 : index
    %c0_42 = arith.constant 0 : index
    %153 = vector.load %arg10[%c0_41, %c0_42] : memref<32x32xf32, #tpu.memory_space<vmem>>, vector<32x32xf32>
    %cst_43 = arith.constant dense<0.000000e+00> : vector<32x32xf32>
    %154 = tpu.matmul %152, %153, %cst_43 {dimension_numbers = #tpu.dot_dimension_numbers<[1], [0], [0], [1], [0, 0, 1, 1], [], []>} : vector<32x32xf32>, vector<32x32xf32>, vector<32x32xf32> -> vector<32x32xf32>
    %c0_44 = arith.constant 0 : index
    %c0_45 = arith.constant 0 : index
    %155 = vector.load %arg11[%c0_44, %c0_45] : memref<1x32xf32, #tpu.memory_space<vmem>>, vector<1x32xf32>
    %156 = vector.broadcast %155 : vector<1x32xf32> to vector<32x32xf32>
    %157 = arith.addf %154, %156 : vector<32x32xf32>
    %158 = vector.shape_cast %157 : vector<32x32xf32> to vector<2x16x32xf32>
    %c0_46 = arith.constant 0 : index
    %c0_47 = arith.constant 0 : index
    %c0_48 = arith.constant 0 : index
    %159 = vector.load %arg14[%c0_46, %c0_47, %c0_48] : memref<2x16x32xf32, #tpu.memory_space<vmem>>, vector<2x16x32xf32>
    tpu.vector_store %arg14[%c0_46, %c0_47, %c0_48], %158 {strides = array<i32>} : memref<2x16x32xf32, #tpu.memory_space<vmem>>, vector<2x16x32xf32>,
    %cst_49 = arith.constant 0.353553385 : f32
    %160 = vector.broadcast %cst_49 : f32 to vector<2x16x32xf32>
    %161 = arith.mulf %29, %160 : vector<2x16x32xf32>
    %162 = vector.extract_strided_slice %55 {offsets = [0, 0, 0], sizes = [2, 16, 8], strides = [1, 1, 1]} : vector<2x16x32xf32> to vector<2x16x8xf32>
    %163 = vector.extract_strided_slice %68 {offsets = [0, 0, 0], sizes = [2, 16, 8], strides = [1, 1, 1]} : vector<2x16x32xf32> to vector<2x16x8xf32>
    "tpu.trace_start"() <{level = 10 : i32, message = "bnd,bmd->bnm"}> : () -> ()
    %cst_50 = arith.constant dense<0.000000e+00> : vector<2x16x16xf32>
    %164 = tpu.matmul %162, %163, %cst_50 {dimension_numbers = #tpu.dot_dimension_numbers<[2], [2], [1], [1], [0, 0, 0, 1, 1, 1], [0], [0]>} : vector<2x16x8xf32>, vector<2x16x8xf32>, vector<2x16x16xf32> -> vector<2x16x16xf32>
    "tpu.trace_stop"() : () -> ()
    %165 = vector.broadcast %33 : vector<1x16x16xf32> to vector<2x16x16xf32>
    %166 = arith.addf %164, %165 : vector<2x16x16xf32>
    %cst_51 = arith.constant dense<0xFF800000> : vector<2x16xf32>
    %167 = vector.multi_reduction <maximumf>, %166, %cst_51 [2] : vector<2x16x16xf32> to vector<2x16xf32>
    %168 = vector.shape_cast %167 : vector<2x16xf32> to vector<2x16x1xf32>
    %169 = vector.broadcast %168 : vector<2x16x1xf32> to vector<2x16x16xf32>
    %170 = arith.subf %166, %169 : vector<2x16x16xf32>
    %171 = math.exp %170 : vector<2x16x16xf32>
    %172 = vector.extract_strided_slice %24 {offsets = [0, 0, 0], sizes = [2, 16, 8], strides = [1, 1, 1]} : vector<2x16x32xf32> to vector<2x16x8xf32>
    "tpu.trace_start"() <{level = 10 : i32, message = "bnm,bmd->bnd"}> : () -> ()
    %cst_52 = arith.constant dense<0.000000e+00> : vector<2x16x8xf32>
    %173 = tpu.matmul %171, %172, %cst_52 {dimension_numbers = #tpu.dot_dimension_numbers<[2], [1], [1], [2], [0, 0, 0, 1, 1, 2], [0], [0]>} : vector<2x16x16xf32>, vector<2x16x8xf32>, vector<2x16x8xf32> -> vector<2x16x8xf32>
    "tpu.trace_stop"() : () -> ()
    %cst_53 = arith.constant dense<0.000000e+00> : vector<2x16xf32>
    %174 = vector.multi_reduction <add>, %171, %cst_53 [2] : vector<2x16x16xf32> to vector<2x16xf32>
    %175 = vector.shape_cast %174 : vector<2x16xf32> to vector<2x16x1xf32>
    %176 = tpu.reciprocal %175 {approx = true} : vector<2x16x1xf32> -> vector<2x16x1xf32>
    %177 = vector.broadcast %176 : vector<2x16x1xf32> to vector<2x16x8xf32>
    %178 = arith.mulf %173, %177 : vector<2x16x8xf32>
    %179 = vector.extract_strided_slice %55 {offsets = [0, 0, 8], sizes = [2, 16, 8], strides = [1, 1, 1]} : vector<2x16x32xf32> to vector<2x16x8xf32>
    %180 = vector.extract_strided_slice %68 {offsets = [0, 0, 8], sizes = [2, 16, 8], strides = [1, 1, 1]} : vector<2x16x32xf32> to vector<2x16x8xf32>
    "tpu.trace_start"() <{level = 10 : i32, message = "bnd,bmd->bnm"}> : () -> ()
    %cst_54 = arith.constant dense<0.000000e+00> : vector<2x16x16xf32>
    %181 = tpu.matmul %179, %180, %cst_54 {dimension_numbers = #tpu.dot_dimension_numbers<[2], [2], [1], [1], [0, 0, 0, 1, 1, 1], [0], [0]>} : vector<2x16x8xf32>, vector<2x16x8xf32>, vector<2x16x16xf32> -> vector<2x16x16xf32>
    "tpu.trace_stop"() : () -> ()
    %182 = vector.broadcast %36 : vector<1x16x16xf32> to vector<2x16x16xf32>
    %183 = arith.addf %181, %182 : vector<2x16x16xf32>
    %cst_55 = arith.constant dense<0xFF800000> : vector<2x16xf32>
    %184 = vector.multi_reduction <maximumf>, %183, %cst_55 [2] : vector<2x16x16xf32> to vector<2x16xf32>
    %185 = vector.shape_cast %184 : vector<2x16xf32> to vector<2x16x1xf32>
    %186 = vector.broadcast %185 : vector<2x16x1xf32> to vector<2x16x16xf32>
    %187 = arith.subf %183, %186 : vector<2x16x16xf32>
    %188 = math.exp %187 : vector<2x16x16xf32>
    %189 = vector.extract_strided_slice %24 {offsets = [0, 0, 8], sizes = [2, 16, 8], strides = [1, 1, 1]} : vector<2x16x32xf32> to vector<2x16x8xf32>
    "tpu.trace_start"() <{level = 10 : i32, message = "bnm,bmd->bnd"}> : () -> ()
    %cst_56 = arith.constant dense<0.000000e+00> : vector<2x16x8xf32>
    %190 = tpu.matmul %188, %189, %cst_56 {dimension_numbers = #tpu.dot_dimension_numbers<[2], [1], [1], [2], [0, 0, 0, 1, 1, 2], [0], [0]>} : vector<2x16x16xf32>, vector<2x16x8xf32>, vector<2x16x8xf32> -> vector<2x16x8xf32>
    "tpu.trace_stop"() : () -> ()
    %cst_57 = arith.constant dense<0.000000e+00> : vector<2x16xf32>
    %191 = vector.multi_reduction <add>, %188, %cst_57 [2] : vector<2x16x16xf32> to vector<2x16xf32>
    %192 = vector.shape_cast %191 : vector<2x16xf32> to vector<2x16x1xf32>
    %193 = tpu.reciprocal %192 {approx = true} : vector<2x16x1xf32> -> vector<2x16x1xf32>
    %194 = vector.broadcast %193 : vector<2x16x1xf32> to vector<2x16x8xf32>
    %195 = arith.mulf %190, %194 : vector<2x16x8xf32>
    %196 = vector.extract_strided_slice %55 {offsets = [0, 0, 16], sizes = [2, 16, 8], strides = [1, 1, 1]} : vector<2x16x32xf32> to vector<2x16x8xf32>
    %197 = vector.extract_strided_slice %68 {offsets = [0, 0, 16], sizes = [2, 16, 8], strides = [1, 1, 1]} : vector<2x16x32xf32> to vector<2x16x8xf32>
    "tpu.trace_start"() <{level = 10 : i32, message = "bnd,bmd->bnm"}> : () -> ()
    %cst_58 = arith.constant dense<0.000000e+00> : vector<2x16x16xf32>
    %198 = tpu.matmul %196, %197, %cst_58 {dimension_numbers = #tpu.dot_dimension_numbers<[2], [2], [1], [1], [0, 0, 0, 1, 1, 1], [0], [0]>} : vector<2x16x8xf32>, vector<2x16x8xf32>, vector<2x16x16xf32> -> vector<2x16x16xf32>
    "tpu.trace_stop"() : () -> ()
    %199 = vector.broadcast %39 : vector<1x16x16xf32> to vector<2x16x16xf32>
    %200 = arith.addf %198, %199 : vector<2x16x16xf32>
    %cst_59 = arith.constant dense<0xFF800000> : vector<2x16xf32>
    %201 = vector.multi_reduction <maximumf>, %200, %cst_59 [2] : vector<2x16x16xf32> to vector<2x16xf32>
    %202 = vector.shape_cast %201 : vector<2x16xf32> to vector<2x16x1xf32>
    %203 = vector.broadcast %202 : vector<2x16x1xf32> to vector<2x16x16xf32>
    %204 = arith.subf %200, %203 : vector<2x16x16xf32>
    %205 = math.exp %204 : vector<2x16x16xf32>
    %206 = vector.extract_strided_slice %24 {offsets = [0, 0, 16], sizes = [2, 16, 8], strides = [1, 1, 1]} : vector<2x16x32xf32> to vector<2x16x8xf32>
    "tpu.trace_start"() <{level = 10 : i32, message = "bnm,bmd->bnd"}> : () -> ()
    %cst_60 = arith.constant dense<0.000000e+00> : vector<2x16x8xf32>
    %207 = tpu.matmul %205, %206, %cst_60 {dimension_numbers = #tpu.dot_dimension_numbers<[2], [1], [1], [2], [0, 0, 0, 1, 1, 2], [0], [0]>} : vector<2x16x16xf32>, vector<2x16x8xf32>, vector<2x16x8xf32> -> vector<2x16x8xf32>
    "tpu.trace_stop"() : () -> ()
    %cst_61 = arith.constant dense<0.000000e+00> : vector<2x16xf32>
    %208 = vector.multi_reduction <add>, %205, %cst_61 [2] : vector<2x16x16xf32> to vector<2x16xf32>
    %209 = vector.shape_cast %208 : vector<2x16xf32> to vector<2x16x1xf32>
    %210 = tpu.reciprocal %209 {approx = true} : vector<2x16x1xf32> -> vector<2x16x1xf32>
    %211 = vector.broadcast %210 : vector<2x16x1xf32> to vector<2x16x8xf32>
    %212 = arith.mulf %207, %211 : vector<2x16x8xf32>
    %213 = vector.extract_strided_slice %55 {offsets = [0, 0, 24], sizes = [2, 16, 8], strides = [1, 1, 1]} : vector<2x16x32xf32> to vector<2x16x8xf32>
    %214 = vector.extract_strided_slice %68 {offsets = [0, 0, 24], sizes = [2, 16, 8], strides = [1, 1, 1]} : vector<2x16x32xf32> to vector<2x16x8xf32>
    "tpu.trace_start"() <{level = 10 : i32, message = "bnd,bmd->bnm"}> : () -> ()
    %cst_62 = arith.constant dense<0.000000e+00> : vector<2x16x16xf32>
    %215 = tpu.matmul %213, %214, %cst_62 {dimension_numbers = #tpu.dot_dimension_numbers<[2], [2], [1], [1], [0, 0, 0, 1, 1, 1], [0], [0]>} : vector<2x16x8xf32>, vector<2x16x8xf32>, vector<2x16x16xf32> -> vector<2x16x16xf32>
    "tpu.trace_stop"() : () -> ()
    %216 = vector.broadcast %42 : vector<1x16x16xf32> to vector<2x16x16xf32>
    %217 = arith.addf %215, %216 : vector<2x16x16xf32>
    %cst_63 = arith.constant dense<0xFF800000> : vector<2x16xf32>
    %218 = vector.multi_reduction <maximumf>, %217, %cst_63 [2] : vector<2x16x16xf32> to vector<2x16xf32>
    %219 = vector.shape_cast %218 : vector<2x16xf32> to vector<2x16x1xf32>
    %220 = vector.broadcast %219 : vector<2x16x1xf32> to vector<2x16x16xf32>
    %221 = arith.subf %217, %220 : vector<2x16x16xf32>
    %222 = math.exp %221 : vector<2x16x16xf32>
    %223 = vector.extract_strided_slice %24 {offsets = [0, 0, 24], sizes = [2, 16, 8], strides = [1, 1, 1]} : vector<2x16x32xf32> to vector<2x16x8xf32>
    "tpu.trace_start"() <{level = 10 : i32, message = "bnm,bmd->bnd"}> : () -> ()
    %cst_64 = arith.constant dense<0.000000e+00> : vector<2x16x8xf32>
    %224 = tpu.matmul %222, %223, %cst_64 {dimension_numbers = #tpu.dot_dimension_numbers<[2], [1], [1], [2], [0, 0, 0, 1, 1, 2], [0], [0]>} : vector<2x16x16xf32>, vector<2x16x8xf32>, vector<2x16x8xf32> -> vector<2x16x8xf32>
    "tpu.trace_stop"() : () -> ()
    %cst_65 = arith.constant dense<0.000000e+00> : vector<2x16xf32>
    %225 = vector.multi_reduction <add>, %222, %cst_65 [2] : vector<2x16x16xf32> to vector<2x16xf32>
    %226 = vector.shape_cast %225 : vector<2x16xf32> to vector<2x16x1xf32>
    %227 = tpu.reciprocal %226 {approx = true} : vector<2x16x1xf32> -> vector<2x16x1xf32>
    %228 = vector.broadcast %227 : vector<2x16x1xf32> to vector<2x16x8xf32>
    %229 = arith.mulf %224, %228 : vector<2x16x8xf32>
    %230 = tpu.concatenate %178, %195, %212, %229 in 2 : vector<2x16x8xf32>, vector<2x16x8xf32>, vector<2x16x8xf32>, vector<2x16x8xf32> -> vector<2x16x32xf32>
    %231 = arith.subf %230, %161 : vector<2x16x32xf32>
    %232 = vector.shape_cast %231 : vector<2x16x32xf32> to vector<32x32xf32>
    %c0_66 = arith.constant 0 : index
    %c0_67 = arith.constant 0 : index
    %233 = vector.load %arg12[%c0_66, %c0_67] : memref<32x32xf32, #tpu.memory_space<vmem>>, vector<32x32xf32>
    %cst_68 = arith.constant dense<0.000000e+00> : vector<32x32xf32>
    %234 = tpu.matmul %232, %233, %cst_68 {dimension_numbers = #tpu.dot_dimension_numbers<[1], [0], [0], [1], [0, 0, 1, 1], [], []>} : vector<32x32xf32>, vector<32x32xf32>, vector<32x32xf32> -> vector<32x32xf32>
    %c0_69 = arith.constant 0 : index
    %c0_70 = arith.constant 0 : index
    %235 = vector.load %arg13[%c0_69, %c0_70] : memref<1x32xf32, #tpu.memory_space<vmem>>, vector<1x32xf32>
    %236 = vector.broadcast %235 : vector<1x32xf32> to vector<32x32xf32>
    %237 = arith.addf %234, %236 : vector<32x32xf32>
    %238 = vector.shape_cast %237 : vector<32x32xf32> to vector<2x16x32xf32>
    %c0_71 = arith.constant 0 : index
    %c0_72 = arith.constant 0 : index
    %c0_73 = arith.constant 0 : index
    %239 = vector.load %arg15[%c0_71, %c0_72, %c0_73] : memref<2x16x32xf32, #tpu.memory_space<vmem>>, vector<2x16x32xf32>
    tpu.vector_store %arg15[%c0_71, %c0_72, %c0_73], %238 {strides = array<i32>} : memref<2x16x32xf32, #tpu.memory_space<vmem>>, vector<2x16x32xf32>,
    return
  }
  func.func @transform_0(%arg0: i32) -> (i32, i32, i32) {
    %c0_i32 = arith.constant 0 : i32
    %c0_i32_0 = arith.constant 0 : i32
    %c0_i32_1 = arith.constant 0 : i32
    return %arg0, %c0_i32, %c0_i32_0 : i32, i32, i32
  }
  func.func @transform_1(%arg0: i32) -> (i32, i32, i32) {
    %c0_i32 = arith.constant 0 : i32
    %c0_i32_0 = arith.constant 0 : i32
    %c0_i32_1 = arith.constant 0 : i32
    return %arg0, %c0_i32, %c0_i32_0 : i32, i32, i32
  }
  func.func @transform_2(%arg0: i32) -> (i32, i32, i32) {
    %c0_i32 = arith.constant 0 : i32
    %c0_i32_0 = arith.constant 0 : i32
    %c0_i32_1 = arith.constant 0 : i32
    %c0_i32_2 = arith.constant 0 : i32
    return %c0_i32, %c0_i32_0, %c0_i32_1 : i32, i32, i32
  }
  func.func @transform_3(%arg0: i32) -> (i32, i32) {
    %c0_i32 = arith.constant 0 : i32
    %c0_i32_0 = arith.constant 0 : i32
    %c0_i32_1 = arith.constant 0 : i32
    return %c0_i32, %c0_i32_0 : i32, i32
  }
  func.func @transform_4(%arg0: i32) -> (i32, i32) {
    %c0_i32 = arith.constant 0 : i32
    %c0_i32_0 = arith.constant 0 : i32
    %c0_i32_1 = arith.constant 0 : i32
    return %c0_i32, %c0_i32_0 : i32, i32
  }
  func.func @transform_5(%arg0: i32) -> (i32, i32) {
    %c0_i32 = arith.constant 0 : i32
    %c0_i32_0 = arith.constant 0 : i32
    %c0_i32_1 = arith.constant 0 : i32
    return %c0_i32, %c0_i32_0 : i32, i32
  }
  func.func @transform_6(%arg0: i32) -> (i32, i32) {
    %c0_i32 = arith.constant 0 : i32
    %c0_i32_0 = arith.constant 0 : i32
    %c0_i32_1 = arith.constant 0 : i32
    return %c0_i32, %c0_i32_0 : i32, i32
  }
  func.func @transform_7(%arg0: i32) -> (i32, i32) {
    %c0_i32 = arith.constant 0 : i32
    %c0_i32_0 = arith.constant 0 : i32
    %c0_i32_1 = arith.constant 0 : i32
    return %c0_i32, %c0_i32_0 : i32, i32
  }
  func.func @transform_8(%arg0: i32) -> (i32, i32) {
    %c0_i32 = arith.constant 0 : i32
    %c0_i32_0 = arith.constant 0 : i32
    %c0_i32_1 = arith.constant 0 : i32
    return %c0_i32, %c0_i32_0 : i32, i32
  }
  func.func @transform_9(%arg0: i32) -> (i32, i32) {
    %c0_i32 = arith.constant 0 : i32
    %c0_i32_0 = arith.constant 0 : i32
    %c0_i32_1 = arith.constant 0 : i32
    return %c0_i32, %c0_i32_0 : i32, i32
  }
  func.func @transform_10(%arg0: i32) -> (i32, i32) {
    %c0_i32 = arith.constant 0 : i32
    %c0_i32_0 = arith.constant 0 : i32
    %c0_i32_1 = arith.constant 0 : i32
    return %c0_i32, %c0_i32_0 : i32, i32
  }
  func.func @transform_11(%arg0: i32) -> (i32, i32) {
    %c0_i32 = arith.constant 0 : i32
    %c0_i32_0 = arith.constant 0 : i32
    %c0_i32_1 = arith.constant 0 : i32
    return %c0_i32, %c0_i32_0 : i32, i32
  }
  func.func @transform_12(%arg0: i32) -> (i32, i32) {
    %c0_i32 = arith.constant 0 : i32
    %c0_i32_0 = arith.constant 0 : i32
    %c0_i32_1 = arith.constant 0 : i32
    return %c0_i32, %c0_i32_0 : i32, i32
  }
  func.func @transform_13(%arg0: i32) -> (i32, i32, i32) {
    %c0_i32 = arith.constant 0 : i32
    %c0_i32_0 = arith.constant 0 : i32
    %c0_i32_1 = arith.constant 0 : i32
    return %arg0, %c0_i32, %c0_i32_0 : i32, i32, i32
  }
  func.func @transform_14(%arg0: i32) -> (i32, i32, i32) {
    %c0_i32 = arith.constant 0 : i32
    %c0_i32_0 = arith.constant 0 : i32
    %c0_i32_1 = arith.constant 0 : i32
    return %arg0, %c0_i32, %c0_i32_0 : i32, i32, i32
  }
}

</mosaic_0001>

<llo_original>
// kernel: tpu_custom_call.1
$region0: #{tpu_custom_call.1}
  #allocation0 [shape = 'u32[]', space=smem, size = 0x4, offset = 0x4, fixed_abs, tag = 'smem constant byte address 0x4 - core index']
  #allocation1 [shape = 'u32[144,128]{1,0:T(1,128)}', space=vmem, size = 0x12000, scoped, tag = 'internal scratch']
  %s0 = inlined_call_operand.hbm [shape: f32[8,16,32], index: 0, kind: input, shape index: {}]
  %s1 = inlined_call_operand.hbm [shape: f32[8,16,32], index: 1, kind: input, shape index: {}]
  %s2 = inlined_call_operand.hbm [shape: f32[4,16,16], index: 2, kind: input, shape index: {}]
  %s3 = inlined_call_operand.hbm [shape: f32[32,32], index: 3, kind: input, shape index: {}]
  %s4 = inlined_call_operand.vmem [shape: f32[1,32], index: 4, kind: input, shape index: {}]
  %s5 = inlined_call_operand.hbm [shape: f32[32,64], index: 5, kind: input, shape index: {}]
  %s6 = inlined_call_operand.vmem [shape: f32[1,64], index: 6, kind: input, shape index: {}]
  %s7 = inlined_call_operand.hbm [shape: f32[32,64], index: 7, kind: input, shape index: {}]
  %s8 = inlined_call_operand.hbm [shape: f32[1,64], index: 8, kind: input, shape index: {}]
  %s9 = inlined_call_operand.vmem [shape: f32[32,32], index: 9, kind: input, shape index: {}]
  %s10 = inlined_call_operand.vmem [shape: f32[1,32], index: 10, kind: input, shape index: {}]
  %s11 = inlined_call_operand.hbm [shape: f32[32,32], index: 11, kind: input, shape index: {}]
  %s12 = inlined_call_operand.vmem [shape: f32[1,32], index: 12, kind: input, shape index: {}]
  %s13 = inlined_call_operand.hbm [shape: f32[8,16,32], index: 13, kind: output, shape index: {0}]
  %s14 = inlined_call_operand.hbm [shape: f32[8,16,32], index: 14, kind: output, shape index: {1}]
  %15 = xla_tuple %s13, %s14
  %s16 = sld [smem:[#allocation0]]
  $region125: #{tpu_custom_call.1} parent=0
    _
  %s18 = ssub.s32 1, %s16
  %s19 = scalar_select 0, %s18, %s16
  $region1: #{tpu_custom_call.1} parent=0
    #allocation2 [shape = 'u8[32768]{0}', space=vmem, size = 0x8000, scoped, tag = 'input window, operand 0']
    #allocation3 [shape = 's32[2]{0}', space=sflag, size = 0x8, scoped, tag = 'scoped memory for tpu_custom_call.1']
    #allocation4 [shape = 's32[2]{0}', space=sflag, size = 0x8, scoped, tag = 'scoped memory for tpu_custom_call.1']
    #allocation5 [shape = 'u8[32768]{0}', space=vmem, size = 0x8000, scoped, tag = 'input window, operand 1']
    #allocation6 [shape = 's32[2]{0}', space=sflag, size = 0x8, scoped, tag = 'scoped memory for tpu_custom_call.1']
    #allocation7 [shape = 'u8[32768]{0}', space=vmem, size = 0x8000, scoped, tag = 'input window, operand 2, single buffered']
    #allocation8 [shape = 'u8[16384]{0}', space=vmem, size = 0x4000, scoped, tag = 'input window, operand 3, single buffered']
    #allocation9 [shape = 's32[1]{0}', space=sflag, size = 0x4, scoped, tag = 'scoped memory for tpu_custom_call.1']
    #allocation10 [shape = 'u8[16384]{0}', space=vmem, size = 0x4000, scoped, tag = 'input window, operand 5, single buffered']
    #allocation11 [shape = 'u8[16384]{0}', space=vmem, size = 0x4000, scoped, tag = 'input window, operand 7, single buffered']
    #allocation12 [shape = 's32[1]{0}', space=sflag, size = 0x4, scoped, tag = 'scoped memory for tpu_custom_call.1']
    #allocation13 [shape = 'u8[512]{0}', space=vmem, size = 0x400, scoped, tag = 'input window, operand 8, single buffered']
    #allocation14 [shape = 'u8[16384]{0}', space=vmem, size = 0x4000, scoped, tag = 'input window, operand 11, single buffered']
    #allocation15 [shape = 's32[1]{0}', space=sflag, size = 0x4, scoped, tag = 'scoped memory for tpu_custom_call.1']
    #allocation16 [shape = 'u8[32768]{0}', space=vmem, size = 0x8000, scoped, tag = 'output window, operand 0']
    #allocation17 [shape = 'u8[32768]{0}', space=vmem, size = 0x8000, scoped, tag = 'output window, operand 1']
    #allocation18 [shape = 's32[2]{0}', space=sflag, size = 0x8, scoped, tag = 'scoped memory for tpu_custom_call.1']
    %20 = vsyncpa [#allocation3], 0
    %s21 = scalar_lea.sflag [#allocation3], 1
    %22 = vsyncpa %s21, 0
    %23 = vsyncpa [#allocation6], 0
    %s24 = scalar_lea.sflag [#allocation6], 1
    %25 = vsyncpa %s24, 0
    %26 = vsyncpa [#allocation9], 0
    %27 = vsyncpa [#allocation12], 0
    %28 = vsyncpa [#allocation15], 0
    %29 = vsyncpa [#allocation4], 0
    %s30 = scalar_lea.sflag [#allocation4], 1
    %31 = vsyncpa %s30, 0
    %32 = vsyncpa [#allocation18], 0
    %s33 = scalar_lea.sflag [#allocation18], 1
    %34 = vsyncpa %s33, 0
    loop: start=0, step=1, limit=6
    $region2: #{tpu_custom_call.1} parent=1 // loop_pre_header
      _
    $region3: #{tpu_custom_call.1} parent=1 // loop_header
      %s36 = sphi 0, %s40
      %p37 = scmp.ge.s32.totalorder %s36, 6
      %s46 = sphi 0, %s48
      %s49 = sphi 0, %s46
      %s50 = sphi 0, %s49
      %s66 = sphi 0, %s50
      %s72 = sphi 0, %s74
      %s75 = sphi 0, %s72
      %s76 = sphi 0, %s75
      %s92 = sphi 0, %s76
      %s96 = sphi 0, %s96
      %s98 = sphi 0, %s96
      %s99 = sphi 0, %s98
      %s113 = sphi 0, %s99
      %s117 = sphi 0, %s117
      %s119 = sphi 0, %s117
      %s120 = sphi 0, %s119
      %s134 = sphi 0, %s120
      %s138 = sphi 0, %s138
      %s140 = sphi 0, %s138
      %s141 = sphi 0, %s140
      %s155 = sphi 0, %s141
      %s159 = sphi 0, %s159
      %s161 = sphi 0, %s159
      %s162 = sphi 0, %s161
      %s176 = sphi 0, %s162
      %s180 = sphi 0, %s180
      %s182 = sphi 0, %s180
      %s183 = sphi 0, %s182
      %s197 = sphi 0, %s183
      %s201 = sphi 0, %s201
      %s203 = sphi 0, %s201
      %s204 = sphi 0, %s203
      %s218 = sphi 0, %s204
      %s222 = sphi 0, %s222
      %s224 = sphi 0, %s222
      %s225 = sphi 0, %s224
      %s239 = sphi 0, %s225
      %s243 = sphi 0, %s243
      %s245 = sphi 0, %s243
      %s246 = sphi 0, %s245
      %s260 = sphi 0, %s246
      %s264 = sphi 0, %s264
      %s266 = sphi 0, %s264
      %s267 = sphi 0, %s266
      %s281 = sphi 0, %s267
      %s285 = sphi 0, %s285
      %s287 = sphi 0, %s285
      %s288 = sphi 0, %s287
      %s302 = sphi 0, %s288
      %s306 = sphi 0, %s306
      %s308 = sphi 0, %s306
      %s309 = sphi 0, %s308
      %s323 = sphi 0, %s309
      %s329 = sphi 0, %s331
      %s332 = sphi 0, %s329
      %s333 = sphi 0, %s332
      %s349 = sphi 0, %s333
      %s355 = sphi 0, %s357
      %s358 = sphi 0, %s355
      %s359 = sphi 0, %s358
      %s375 = sphi 0, %s359
    $region4: #{tpu_custom_call.1} parent=1 // loop_header_branch
      %39 = sbr.rel (%p37) target = $region8
    $region5: #{tpu_custom_call.1} parent=1 // loop_body
      %s41 = ssub.s32 %s36, 1
      %s42 = ssub.s32 %s36, 2
      %s43 = sadd.s32 %s36, 1
      %s44 = ssub.s32 %s36, %s43
      %p45 = scmp.eq.s32.totalorder %s44, 0
      %s47 = sadd.s32 %s46, 1
      %s48 = scalar_select %p45, %s46, %s47
      %p51 = pneg %p45
      %p52 = scmp.eq.s32.totalorder %s36, 3
      %p53 = por %p51, %p52
      %p54 = scmp.ne.s32.totalorder %s46, %s49
      %p55 = scmp.eq.s32.totalorder %s36, 0
      %p56 = por %p54, %p55
      %p57 = scmp.ne.s32.totalorder %s46, %s49
      %p58 = scmp.eq.s32.totalorder %s41, 3
      %p59 = por %p57, %p58
      %p60 = scmp.ne.s32.totalorder %s49, %s50
      %p61 = scmp.eq.s32.totalorder %s41, 0
      %p62 = por %p60, %p61
      %p63 = scmp.ne.s32.totalorder %s49, %s50
      %p64 = scmp.eq.s32.totalorder %s42, 3
      %p65 = por %p63, %p64
      %p67 = scmp.ne.s32.totalorder %s50, %s66
      %p68 = scmp.eq.s32.totalorder %s42, 0
      %p69 = por %p67, %p68
      %s70 = ssub.s32 %s36, %s43
      %p71 = scmp.eq.s32.totalorder %s70, 0
      %s73 = sadd.s32 %s72, 1
      %s74 = scalar_select %p71, %s72, %s73
      %p77 = pneg %p71
      %p78 = scmp.eq.s32.totalorder %s36, 3
      %p79 = por %p77, %p78
      %p80 = scmp.ne.s32.totalorder %s72, %s75
      %p81 = scmp.eq.s32.totalorder %s36, 0
      %p82 = por %p80, %p81
      %p83 = scmp.ne.s32.totalorder %s72, %s75
      %p84 = scmp.eq.s32.totalorder %s41, 3
      %p85 = por %p83, %p84
      %p86 = scmp.ne.s32.totalorder %s75, %s76
      %p87 = scmp.eq.s32.totalorder %s41, 0
      %p88 = por %p86, %p87
      %p89 = scmp.ne.s32.totalorder %s75, %s76
      %p90 = scmp.eq.s32.totalorder %s42, 3
      %p91 = por %p89, %p90
      %p93 = scmp.ne.s32.totalorder %s76, %s92
      %p94 = scmp.eq.s32.totalorder %s42, 0
      %p95 = por %p93, %p94
      %s97 = sadd.s32 %s96, 1
      %p100 = scmp.eq.s32.totalorder %s36, 3
      %p101 = scmp.ne.s32.totalorder %s96, %s98
      %p102 = scmp.eq.s32.totalorder %s36, 0
      %p103 = por %p101, %p102
      %p104 = scmp.ne.s32.totalorder %s96, %s98
      %p105 = scmp.eq.s32.totalorder %s41, 3
      %p106 = por %p104, %p105
      %p107 = scmp.ne.s32.totalorder %s98, %s99
      %p108 = scmp.eq.s32.totalorder %s41, 0
      %p109 = por %p107, %p108
      %p110 = scmp.ne.s32.totalorder %s98, %s99
      %p111 = scmp.eq.s32.totalorder %s42, 3
      %p112 = por %p110, %p111
      %p114 = scmp.ne.s32.totalorder %s99, %s113
      %p115 = scmp.eq.s32.totalorder %s42, 0
      %p116 = por %p114, %p115
      %s118 = sadd.s32 %s117, 1
      %p121 = scmp.eq.s32.totalorder %s36, 3
      %p122 = scmp.ne.s32.totalorder %s117, %s119
      %p123 = scmp.eq.s32.totalorder %s36, 0
      %p124 = por %p122, %p123
      %p125 = scmp.ne.s32.totalorder %s117, %s119
      %p126 = scmp.eq.s32.totalorder %s41, 3
      %p127 = por %p125, %p126
      %p128 = scmp.ne.s32.totalorder %s119, %s120
      %p129 = scmp.eq.s32.totalorder %s41, 0
      %p130 = por %p128, %p129
      %p131 = scmp.ne.s32.totalorder %s119, %s120
      %p132 = scmp.eq.s32.totalorder %s42, 3
      %p133 = por %p131, %p132
      %p135 = scmp.ne.s32.totalorder %s120, %s134
      %p136 = scmp.eq.s32.totalorder %s42, 0
      %p137 = por %p135, %p136
      %s139 = sadd.s32 %s138, 1
      %p142 = scmp.eq.s32.totalorder %s36, 3
      %p143 = scmp.ne.s32.totalorder %s138, %s140
      %p144 = scmp.eq.s32.totalorder %s36, 0
      %p145 = por %p143, %p144
      %p146 = scmp.ne.s32.totalorder %s138, %s140
      %p147 = scmp.eq.s32.totalorder %s41, 3
      %p148 = por %p146, %p147
      %p149 = scmp.ne.s32.totalorder %s140, %s141
      %p150 = scmp.eq.s32.totalorder %s41, 0
      %p151 = por %p149, %p150
      %p152 = scmp.ne.s32.totalorder %s140, %s141
      %p153 = scmp.eq.s32.totalorder %s42, 3
      %p154 = por %p152, %p153
      %p156 = scmp.ne.s32.totalorder %s141, %s155
      %p157 = scmp.eq.s32.totalorder %s42, 0
      %p158 = por %p156, %p157
      %s160 = sadd.s32 %s159, 1
      %p163 = scmp.eq.s32.totalorder %s36, 3
      %p164 = scmp.ne.s32.totalorder %s159, %s161
      %p165 = scmp.eq.s32.totalorder %s36, 0
      %p166 = por %p164, %p165
      %p167 = scmp.ne.s32.totalorder %s159, %s161
      %p168 = scmp.eq.s32.totalorder %s41, 3
      %p169 = por %p167, %p168
      %p170 = scmp.ne.s32.totalorder %s161, %s162
      %p171 = scmp.eq.s32.totalorder %s41, 0
      %p172 = por %p170, %p171
      %p173 = scmp.ne.s32.totalorder %s161, %s162
      %p174 = scmp.eq.s32.totalorder %s42, 3
      %p175 = por %p173, %p174
      %p177 = scmp.ne.s32.totalorder %s162, %s176
      %p178 = scmp.eq.s32.totalorder %s42, 0
      %p179 = por %p177, %p178
      %s181 = sadd.s32 %s180, 1
      %p184 = scmp.eq.s32.totalorder %s36, 3
      %p185 = scmp.ne.s32.totalorder %s180, %s182
      %p186 = scmp.eq.s32.totalorder %s36, 0
      %p187 = por %p185, %p186
      %p188 = scmp.ne.s32.totalorder %s180, %s182
      %p189 = scmp.eq.s32.totalorder %s41, 3
      %p190 = por %p188, %p189
      %p191 = scmp.ne.s32.totalorder %s182, %s183
      %p192 = scmp.eq.s32.totalorder %s41, 0
      %p193 = por %p191, %p192
      %p194 = scmp.ne.s32.totalorder %s182, %s183
      %p195 = scmp.eq.s32.totalorder %s42, 3
      %p196 = por %p194, %p195
      %p198 = scmp.ne.s32.totalorder %s183, %s197
      %p199 = scmp.eq.s32.totalorder %s42, 0
      %p200 = por %p198, %p199
      %s202 = sadd.s32 %s201, 1
      %p205 = scmp.eq.s32.totalorder %s36, 3
      %p206 = scmp.ne.s32.totalorder %s201, %s203
      %p207 = scmp.eq.s32.totalorder %s36, 0
      %p208 = por %p206, %p207
      %p209 = scmp.ne.s32.totalorder %s201, %s203
      %p210 = scmp.eq.s32.totalorder %s41, 3
      %p211 = por %p209, %p210
      %p212 = scmp.ne.s32.totalorder %s203, %s204
      %p213 = scmp.eq.s32.totalorder %s41, 0
      %p214 = por %p212, %p213
      %p215 = scmp.ne.s32.totalorder %s203, %s204
      %p216 = scmp.eq.s32.totalorder %s42, 3
      %p217 = por %p215, %p216
      %p219 = scmp.ne.s32.totalorder %s204, %s218
      %p220 = scmp.eq.s32.totalorder %s42, 0
      %p221 = por %p219, %p220
      %s223 = sadd.s32 %s222, 1
      %p226 = scmp.eq.s32.totalorder %s36, 3
      %p227 = scmp.ne.s32.totalorder %s222, %s224
      %p228 = scmp.eq.s32.totalorder %s36, 0
      %p229 = por %p227, %p228
      %p230 = scmp.ne.s32.totalorder %s222, %s224
      %p231 = scmp.eq.s32.totalorder %s41, 3
      %p232 = por %p230, %p231
      %p233 = scmp.ne.s32.totalorder %s224, %s225
      %p234 = scmp.eq.s32.totalorder %s41, 0
      %p235 = por %p233, %p234
      %p236 = scmp.ne.s32.totalorder %s224, %s225
      %p237 = scmp.eq.s32.totalorder %s42, 3
      %p238 = por %p236, %p237
      %p240 = scmp.ne.s32.totalorder %s225, %s239
      %p241 = scmp.eq.s32.totalorder %s42, 0
      %p242 = por %p240, %p241
      %s244 = sadd.s32 %s243, 1
      %p247 = scmp.eq.s32.totalorder %s36, 3
      %p248 = scmp.ne.s32.totalorder %s243, %s245
      %p249 = scmp.eq.s32.totalorder %s36, 0
      %p250 = por %p248, %p249
      %p251 = scmp.ne.s32.totalorder %s243, %s245
      %p252 = scmp.eq.s32.totalorder %s41, 3
      %p253 = por %p251, %p252
      %p254 = scmp.ne.s32.totalorder %s245, %s246
      %p255 = scmp.eq.s32.totalorder %s41, 0
      %p256 = por %p254, %p255
      %p257 = scmp.ne.s32.totalorder %s245, %s246
      %p258 = scmp.eq.s32.totalorder %s42, 3
      %p259 = por %p257, %p258
      %p261 = scmp.ne.s32.totalorder %s246, %s260
      %p262 = scmp.eq.s32.totalorder %s42, 0
      %p263 = por %p261, %p262
      %s265 = sadd.s32 %s264, 1
      %p268 = scmp.eq.s32.totalorder %s36, 3
      %p269 = scmp.ne.s32.totalorder %s264, %s266
      %p270 = scmp.eq.s32.totalorder %s36, 0
      %p271 = por %p269, %p270
      %p272 = scmp.ne.s32.totalorder %s264, %s266
      %p273 = scmp.eq.s32.totalorder %s41, 3
      %p274 = por %p272, %p273
      %p275 = scmp.ne.s32.totalorder %s266, %s267
      %p276 = scmp.eq.s32.totalorder %s41, 0
      %p277 = por %p275, %p276
      %p278 = scmp.ne.s32.totalorder %s266, %s267
      %p279 = scmp.eq.s32.totalorder %s42, 3
      %p280 = por %p278, %p279
      %p282 = scmp.ne.s32.totalorder %s267, %s281
      %p283 = scmp.eq.s32.totalorder %s42, 0
      %p284 = por %p282, %p283
      %s286 = sadd.s32 %s285, 1
      %p289 = scmp.eq.s32.totalorder %s36, 3
      %p290 = scmp.ne.s32.totalorder %s285, %s287
      %p291 = scmp.eq.s32.totalorder %s36, 0
      %p292 = por %p290, %p291
      %p293 = scmp.ne.s32.totalorder %s285, %s287
      %p294 = scmp.eq.s32.totalorder %s41, 3
      %p295 = por %p293, %p294
      %p296 = scmp.ne.s32.totalorder %s287, %s288
      %p297 = scmp.eq.s32.totalorder %s41, 0
      %p298 = por %p296, %p297
      %p299 = scmp.ne.s32.totalorder %s287, %s288
      %p300 = scmp.eq.s32.totalorder %s42, 3
      %p301 = por %p299, %p300
      %p303 = scmp.ne.s32.totalorder %s288, %s302
      %p304 = scmp.eq.s32.totalorder %s42, 0
      %p305 = por %p303, %p304
      %s307 = sadd.s32 %s306, 1
      %p310 = scmp.eq.s32.totalorder %s36, 3
      %p311 = scmp.ne.s32.totalorder %s306, %s308
      %p312 = scmp.eq.s32.totalorder %s36, 0
      %p313 = por %p311, %p312
      %p314 = scmp.ne.s32.totalorder %s306, %s308
      %p315 = scmp.eq.s32.totalorder %s41, 3
      %p316 = por %p314, %p315
      %p317 = scmp.ne.s32.totalorder %s308, %s309
      %p318 = scmp.eq.s32.totalorder %s41, 0
      %p319 = por %p317, %p318
      %p320 = scmp.ne.s32.totalorder %s308, %s309
      %p321 = scmp.eq.s32.totalorder %s42, 3
      %p322 = por %p320, %p321
      %p324 = scmp.ne.s32.totalorder %s309, %s323
      %p325 = scmp.eq.s32.totalorder %s42, 0
      %p326 = por %p324, %p325
      %s327 = ssub.s32 %s36, %s43
      %p328 = scmp.eq.s32.totalorder %s327, 0
      %s330 = sadd.s32 %s329, 1
      %s331 = scalar_select %p328, %s329, %s330
      %p334 = pneg %p328
      %p335 = scmp.eq.s32.totalorder %s36, 3
      %p336 = por %p334, %p335
      %p337 = scmp.ne.s32.totalorder %s329, %s332
      %p338 = scmp.eq.s32.totalorder %s36, 0
      %p339 = por %p337, %p338
      %p340 = scmp.ne.s32.totalorder %s329, %s332
      %p341 = scmp.eq.s32.totalorder %s41, 3
      %p342 = por %p340, %p341
      %p343 = scmp.ne.s32.totalorder %s332, %s333
      %p344 = scmp.eq.s32.totalorder %s41, 0
      %p345 = por %p343, %p344
      %p346 = scmp.ne.s32.totalorder %s332, %s333
      %p347 = scmp.eq.s32.totalorder %s42, 3
      %p348 = por %p346, %p347
      %p350 = scmp.ne.s32.totalorder %s333, %s349
      %p351 = scmp.eq.s32.totalorder %s42, 0
      %p352 = por %p350, %p351
      %s353 = ssub.s32 %s36, %s43
      %p354 = scmp.eq.s32.totalorder %s353, 0
      %s356 = sadd.s32 %s355, 1
      %s357 = scalar_select %p354, %s355, %s356
      %p360 = pneg %p354
      %p361 = scmp.eq.s32.totalorder %s36, 3
      %p362 = por %p360, %p361
      %p363 = scmp.ne.s32.totalorder %s355, %s358
      %p364 = scmp.eq.s32.totalorder %s36, 0
      %p365 = por %p363, %p364
      %p366 = scmp.ne.s32.totalorder %s355, %s358
      %p367 = scmp.eq.s32.totalorder %s41, 3
      %p368 = por %p366, %p367
      %p369 = scmp.ne.s32.totalorder %s358, %s359
      %p370 = scmp.eq.s32.totalorder %s41, 0
      %p371 = por %p369, %p370
      %p372 = scmp.ne.s32.totalorder %s358, %s359
      %p373 = scmp.eq.s32.totalorder %s42, 3
      %p374 = por %p372, %p373
      %p376 = scmp.ne.s32.totalorder %s359, %s375
      %p377 = scmp.eq.s32.totalorder %s42, 0
      %p378 = por %p376, %p377
      %p379 = scmp.le.s32.totalorder 1, %s36
      %p380 = scmp.lt.s32.totalorder %s36, 5
      %p381 = pnand %p379, %p380
      %p382 = pneg %p381
      // Predicated region
      $region9: #{tpu_custom_call.1} parent=5 // pred_check
        _
      $region10: #{tpu_custom_call.1} parent=5 // pred_check_branch
        %384 = sbr.rel (%p381) target = $region12
      $region11: #{tpu_custom_call.1} parent=5 // pred_region
        %s385 = ssub.s32 %s36, 1
        // Predicated region
        $region13: #{tpu_custom_call.1} parent=11 // pred_check
          %p386 = pneg %p109
        $region14: #{tpu_custom_call.1} parent=11 // pred_check_branch
          %388 = sbr.rel (%p386) target = $region16
        $region15: #{tpu_custom_call.1} parent=11 // pred_region
          %s390 = ssub.s32 1024, 1024
          %391 = vsyncadd [#allocation6], %s390
          %s392 = sshll.u32 [#allocation7], 4
          %s393 = int_to_ptr.vmem [resolvable:$true] %s392
          %398 = dma.hbm_to_vmem [thread:$0]  %s2, 1024, %s393, [#allocation6], 128, 128, 8
        $region16: #{tpu_custom_call.1} parent=11 // pred_fallthru
          _
        // Predicated region
        $region17: #{tpu_custom_call.1} parent=11 // pred_check
          %p399 = pneg %p130
        $region18: #{tpu_custom_call.1} parent=11 // pred_check_branch
          %401 = sbr.rel (%p399) target = $region20
        $region19: #{tpu_custom_call.1} parent=11 // pred_region
          %s403 = ssub.s32 512, 512
          %404 = vsyncadd [#allocation9], %s403
          %s405 = sshll.u32 [#allocation8], 4
          %s406 = int_to_ptr.vmem [resolvable:$true] %s405
          %411 = dma.hbm_to_vmem [thread:$0]  %s3, 512, %s406, [#allocation9], 128, 128, 8
        $region20: #{tpu_custom_call.1} parent=11 // pred_fallthru
          _
        // Predicated region
        $region21: #{tpu_custom_call.1} parent=11 // pred_check
          %p412 = pneg %p151
        $region22: #{tpu_custom_call.1} parent=11 // pred_check_branch
          %414 = sbr.rel (%p412) target = $region24
        $region23: #{tpu_custom_call.1} parent=11 // pred_region
          _
        $region24: #{tpu_custom_call.1} parent=11 // pred_fallthru
          _
        // Predicated region
        $region25: #{tpu_custom_call.1} parent=11 // pred_check
          %p415 = pneg %p172
        $region26: #{tpu_custom_call.1} parent=11 // pred_check_branch
          %417 = sbr.rel (%p415) target = $region28
        $region27: #{tpu_custom_call.1} parent=11 // pred_region
          %s419 = ssub.s32 512, 512
          %420 = vsyncadd [#allocation9], %s419
          %s421 = sshll.u32 [#allocation10], 4
          %s422 = int_to_ptr.vmem [resolvable:$true] %s421
          %427 = dma.hbm_to_vmem [thread:$0]  %s5, 512, %s422, [#allocation9], 128, 128, 8
        $region28: #{tpu_custom_call.1} parent=11 // pred_fallthru
          _
        // Predicated region
        $region29: #{tpu_custom_call.1} parent=11 // pred_check
          %p428 = pneg %p193
        $region30: #{tpu_custom_call.1} parent=11 // pred_check_branch
          %430 = sbr.rel (%p428) target = $region32
        $region31: #{tpu_custom_call.1} parent=11 // pred_region
          _
        $region32: #{tpu_custom_call.1} parent=11 // pred_fallthru
          _
        // Predicated region
        $region33: #{tpu_custom_call.1} parent=11 // pred_check
          %p431 = pneg %p214
        $region34: #{tpu_custom_call.1} parent=11 // pred_check_branch
          %433 = sbr.rel (%p431) target = $region36
        $region35: #{tpu_custom_call.1} parent=11 // pred_region
          %s435 = ssub.s32 512, 512
          %436 = vsyncadd [#allocation12], %s435
          %s437 = sshll.u32 [#allocation11], 4
          %s438 = int_to_ptr.vmem [resolvable:$true] %s437
          %443 = dma.hbm_to_vmem [thread:$0]  %s7, 512, %s438, [#allocation12], 128, 128, 8
        $region36: #{tpu_custom_call.1} parent=11 // pred_fallthru
          _
        // Predicated region
        $region37: #{tpu_custom_call.1} parent=11 // pred_check
          %p444 = pneg %p235
        $region38: #{tpu_custom_call.1} parent=11 // pred_check_branch
          %446 = sbr.rel (%p444) target = $region40
        $region39: #{tpu_custom_call.1} parent=11 // pred_region
          %s448 = ssub.s32 16, 16
          %449 = vsyncadd [#allocation12], %s448
          %s451 = sshll.u32 [#allocation13], 4
          %s452 = int_to_ptr.vmem [resolvable:$true] %s451
          %454 = dma.hbm_to_vmem [thread:$0]  %s8, 16, %s452, [#allocation12]
        $region40: #{tpu_custom_call.1} parent=11 // pred_fallthru
          _
        // Predicated region
        $region41: #{tpu_custom_call.1} parent=11 // pred_check
          %p455 = pneg %p256
        $region42: #{tpu_custom_call.1} parent=11 // pred_check_branch
          %457 = sbr.rel (%p455) target = $region44
        $region43: #{tpu_custom_call.1} parent=11 // pred_region
          _
        $region44: #{tpu_custom_call.1} parent=11 // pred_fallthru
          _
        // Predicated region
        $region45: #{tpu_custom_call.1} parent=11 // pred_check
          %p458 = pneg %p277
        $region46: #{tpu_custom_call.1} parent=11 // pred_check_branch
          %460 = sbr.rel (%p458) target = $region48
        $region47: #{tpu_custom_call.1} parent=11 // pred_region
          _
        $region48: #{tpu_custom_call.1} parent=11 // pred_fallthru
          _
        // Predicated region
        $region49: #{tpu_custom_call.1} parent=11 // pred_check
          %p461 = pneg %p298
        $region50: #{tpu_custom_call.1} parent=11 // pred_check_branch
          %463 = sbr.rel (%p461) target = $region52
        $region51: #{tpu_custom_call.1} parent=11 // pred_region
          %s465 = ssub.s32 512, 512
          %466 = vsyncadd [#allocation15], %s465
          %s467 = sshll.u32 [#allocation14], 4
          %s468 = int_to_ptr.vmem [resolvable:$true] %s467
          %473 = dma.hbm_to_vmem [thread:$0]  %s11, 512, %s468, [#allocation15], 128, 128, 8
        $region52: #{tpu_custom_call.1} parent=11 // pred_fallthru
          _
        // Predicated region
        $region53: #{tpu_custom_call.1} parent=11 // pred_check
          %p474 = pneg %p319
        $region54: #{tpu_custom_call.1} parent=11 // pred_check_branch
          %476 = sbr.rel (%p474) target = $region56
        $region55: #{tpu_custom_call.1} parent=11 // pred_region
          _
        $region56: #{tpu_custom_call.1} parent=11 // pred_fallthru
          _
      $region12: #{tpu_custom_call.1} parent=5 // pred_fallthru
        _
      %p477 = scmp.lt.s32.totalorder %s36, 4
      // Predicated region
      $region57: #{tpu_custom_call.1} parent=5 // pred_check
        %p478 = pneg %p477
      $region58: #{tpu_custom_call.1} parent=5 // pred_check_branch
        %480 = sbr.rel (%p478) target = $region60
      $region59: #{tpu_custom_call.1} parent=5 // pred_region
        // Predicated region
        $region61: #{tpu_custom_call.1} parent=59 // pred_check
          %p481 = pneg %p56
        $region62: #{tpu_custom_call.1} parent=59 // pred_check_branch
          %483 = sbr.rel (%p481) target = $region64
        $region63: #{tpu_custom_call.1} parent=59 // pred_region
          %s484 = sand.u32 %s46, 1
          %s485 = scalar_lea.sflag [#allocation3], %s484
          %s486 = sand.u32 %s46, 1
          %s487 = smul.addr %s486, 32
          %s488 = scalar_lea.vmem [#allocation2], %s487
          %s489 = smul.u32 2, %s36
          %s491 = ssub.s32 512, 512
          %492 = vsyncadd %s485, %s491
          %s493 = smul.addr %s489, 2
          %s494 = smul.addr %s493, 128
          %s495 = scalar_lea.hbm %s0, %s494
          %s496 = sshll.u32 %s488, 4
          %s497 = int_to_ptr.vmem [resolvable:$true] %s496
          %502 = dma.hbm_to_vmem [thread:$0]  %s495, 512, %s497, %s485, 128, 128, 8
        $region64: #{tpu_custom_call.1} parent=59 // pred_fallthru
          _
        // Predicated region
        $region65: #{tpu_custom_call.1} parent=59 // pred_check
          %p503 = pneg %p82
        $region66: #{tpu_custom_call.1} parent=59 // pred_check_branch
          %505 = sbr.rel (%p503) target = $region68
        $region67: #{tpu_custom_call.1} parent=59 // pred_region
          %s506 = sand.u32 %s36, 1
          %s507 = scalar_lea.sflag [#allocation6], %s506
          %s508 = sand.u32 %s72, 1
          %s509 = smul.addr %s508, 32
          %s510 = scalar_lea.vmem [#allocation5], %s509
          %s511 = smul.u32 2, %s36
          %s513 = ssub.s32 512, 512
          %514 = vsyncadd %s507, %s513
          %s515 = smul.addr %s511, 2
          %s516 = smul.addr %s515, 128
          %s517 = scalar_lea.hbm %s1, %s516
          %s518 = sshll.u32 %s510, 4
          %s519 = int_to_ptr.vmem [resolvable:$true] %s518
          %524 = dma.hbm_to_vmem [thread:$0]  %s517, 512, %s519, %s507, 128, 128, 8
        $region68: #{tpu_custom_call.1} parent=59 // pred_fallthru
          _
      $region60: #{tpu_custom_call.1} parent=5 // pred_fallthru
        _
      %p525 = scmp.le.s32.totalorder 1, %s36
      %p526 = scmp.lt.s32.totalorder %s36, 5
      %p527 = pnand %p525, %p526
      %p528 = pneg %p527
      // Predicated region
      $region69: #{tpu_custom_call.1} parent=5 // pred_check
        _
      $region70: #{tpu_custom_call.1} parent=5 // pred_check_branch
        %530 = sbr.rel (%p527) target = $region72
      $region71: #{tpu_custom_call.1} parent=5 // pred_region
        %s531 = ssub.s32 %s36, 1
        %s532 = sand.u32 %s49, 1
        %s533 = scalar_lea.sflag [#allocation3], %s532
        %s534 = sand.u32 %s49, 1
        %s535 = smul.addr %s534, 32
        %s536 = scalar_lea.vmem [#allocation2], %s535
        // Predicated region
        $region73: #{tpu_custom_call.1} parent=71 // pred_check
          %p537 = pneg %p62
        $region74: #{tpu_custom_call.1} parent=71 // pred_check_branch
          %539 = sbr.rel (%p537) target = $region76
        $region75: #{tpu_custom_call.1} parent=71 // pred_region
          %540 = dma.done %s533, 512
        $region76: #{tpu_custom_call.1} parent=71 // pred_fallthru
          _
        %s541 = sand.u32 %s41, 1
        %s542 = scalar_lea.sflag [#allocation6], %s541
        %s543 = sand.u32 %s75, 1
        %s544 = smul.addr %s543, 32
        %s545 = scalar_lea.vmem [#allocation5], %s544
        // Predicated region
        $region77: #{tpu_custom_call.1} parent=71 // pred_check
          %p546 = pneg %p88
        $region78: #{tpu_custom_call.1} parent=71 // pred_check_branch
          %548 = sbr.rel (%p546) target = $region80
        $region79: #{tpu_custom_call.1} parent=71 // pred_region
          %549 = dma.done %s542, 512
        $region80: #{tpu_custom_call.1} parent=71 // pred_fallthru
          _
        // Predicated region
        $region81: #{tpu_custom_call.1} parent=71 // pred_check
          %p550 = pneg %p109
        $region82: #{tpu_custom_call.1} parent=71 // pred_check_branch
          %552 = sbr.rel (%p550) target = $region84
        $region83: #{tpu_custom_call.1} parent=71 // pred_region
          %553 = dma.done [#allocation6], 1024
        $region84: #{tpu_custom_call.1} parent=71 // pred_fallthru
          _
        // Predicated region
        $region85: #{tpu_custom_call.1} parent=71 // pred_check
          %p554 = pneg %p130
        $region86: #{tpu_custom_call.1} parent=71 // pred_check_branch
          %556 = sbr.rel (%p554) target = $region88
        $region87: #{tpu_custom_call.1} parent=71 // pred_region
          %557 = dma.done [#allocation9], 512
        $region88: #{tpu_custom_call.1} parent=71 // pred_fallthru
          _
        // Predicated region
        $region89: #{tpu_custom_call.1} parent=71 // pred_check
          %p558 = pneg %p172
        $region90: #{tpu_custom_call.1} parent=71 // pred_check_branch
          %560 = sbr.rel (%p558) target = $region92
        $region91: #{tpu_custom_call.1} parent=71 // pred_region
          %561 = dma.done [#allocation9], 512
        $region92: #{tpu_custom_call.1} parent=71 // pred_fallthru
          _
        // Predicated region
        $region93: #{tpu_custom_call.1} parent=71 // pred_check
          %p562 = pneg %p214
        $region94: #{tpu_custom_call.1} parent=71 // pred_check_branch
          %564 = sbr.rel (%p562) target = $region96
        $region95: #{tpu_custom_call.1} parent=71 // pred_region
          %565 = dma.done [#allocation12], 512
        $region96: #{tpu_custom_call.1} parent=71 // pred_fallthru
          _
        // Predicated region
        $region97: #{tpu_custom_call.1} parent=71 // pred_check
          %p566 = pneg %p235
        $region98: #{tpu_custom_call.1} parent=71 // pred_check_branch
          %568 = sbr.rel (%p566) target = $region100
        $region99: #{tpu_custom_call.1} parent=71 // pred_region
          %569 = dma.done [#allocation12], 16
        $region100: #{tpu_custom_call.1} parent=71 // pred_fallthru
          _
        // Predicated region
        $region101: #{tpu_custom_call.1} parent=71 // pred_check
          %p570 = pneg %p298
        $region102: #{tpu_custom_call.1} parent=71 // pred_check_branch
          %572 = sbr.rel (%p570) target = $region104
        $region103: #{tpu_custom_call.1} parent=71 // pred_region
          %573 = dma.done [#allocation15], 512
        $region104: #{tpu_custom_call.1} parent=71 // pred_fallthru
          _
        %s574 = sand.u32 %s49, 1
        %s575 = scalar_lea.sflag [#allocation3], %s574
        %s576 = sand.u32 %s49, 1
        %s577 = smul.addr %s576, 32
        %s578 = scalar_lea.vmem [#allocation2], %s577
        %p579 = pneg %p62
        %p580 = pneg %p59
        %s581 = sand.u32 %s41, 1
        %s582 = scalar_lea.sflag [#allocation6], %s581
        %s583 = sand.u32 %s75, 1
        %s584 = smul.addr %s583, 32
        %s585 = scalar_lea.vmem [#allocation5], %s584
        %p586 = pneg %p88
        %p587 = pneg %p85
        %p588 = pneg %p109
        %p589 = pneg %p106
        %p590 = pneg %p130
        %p591 = pneg %p127
        %p592 = pneg %p151
        %p593 = pneg %p148
        %p594 = pneg %p172
        %p595 = pneg %p169
        %p596 = pneg %p193
        %p597 = pneg %p190
        %p598 = pneg %p214
        %p599 = pneg %p211
        %p600 = pneg %p235
        %p601 = pneg %p232
        %p602 = pneg %p256
        %p603 = pneg %p253
        %p604 = pneg %p277
        %p605 = pneg %p274
        %p606 = pneg %p298
        %p607 = pneg %p295
        %p608 = pneg %p319
        %p609 = pneg %p316
        %p610 = pneg %p345
        %p611 = pneg %p342
        %s612 = sand.u32 %s332, 1
        %s613 = scalar_lea.sflag [#allocation4], %s612
        %s614 = sand.u32 %s332, 1
        %s615 = smul.addr %s614, 32
        %s616 = scalar_lea.vmem [#allocation16], %s615
        %p617 = pneg %p371
        %p618 = pneg %p368
        %s619 = sand.u32 %s358, 1
        %s620 = scalar_lea.sflag [#allocation18], %s619
        %s621 = sand.u32 %s358, 1
        %s622 = smul.addr %s621, 32
        %s623 = scalar_lea.vmem [#allocation17], %s622
        %s624 = smul.u32 2, %s41
        %s625 = smul.u32 2, %s41
        %s626 = smul.u32 2, %s41
        %s627 = smul.u32 2, %s41
        %v628 = vld [vmem:[%s536] sm:$0xff]
        %v629 = vld [vmem:[%s536 + $0x8] sm:$0xff]
        %v630 = vld [vmem:[%s536 + $0x10] sm:$0xff]
        %v631 = vld [vmem:[%s536 + $0x18] sm:$0xff]
        %v632 = vld [vmem:[%s545] sm:$0xff]
        %v633 = vld [vmem:[%s545 + $0x8] sm:$0xff]
        %v634 = vld [vmem:[%s545 + $0x10] sm:$0xff]
        %v635 = vld [vmem:[%s545 + $0x18] sm:$0xff]
        %v636 = vsub.f32 %v632, %v628
        %v637 = vsub.f32 %v633, %v629
        %v638 = vsub.f32 %v634, %v630
        %v639 = vsub.f32 %v635, %v631
        %v640 = vand.u32 2147483647, %v636
        %v641 = vand.u32 2147483647, %v637
        %v642 = vand.u32 2147483647, %v638
        %v643 = vand.u32 2147483647, %v639
        %v644 = vld [vmem:[#allocation10] sm:$0xff]
        %v645 = vld [vmem:[#allocation10 + $0x8] sm:$0xff]
        %v646 = vld [vmem:[#allocation10 + $0x10] sm:$0xff]
        %v647 = vld [vmem:[#allocation10 + $0x18] sm:$0xff]
        %v648 = vld [vmem:[%s6] sm:$0x1]
        %v650 = vlaneseq
        %v651 = vshrl.u32 %v650, 7
        %v652 = vsub.s32 0, %v651
        %v653 = vrot.slane %v648, %v652
        %vm655 = vcmask 261120
        %v657 = vsel %vm655, %v628, 0
        %v660 = vsel %vm655, %v629, 0
        %v663 = vsel %vm655, %v630, 0
        %v666 = vsel %vm655, %v631, 0
        %668 = vmatprep.subr.mxu0 0.0
        %669 = vmatpush1.msra.mxu0 %v644
        %670 = vmatprep.subr.mxu0 0.0
        %671 = vmatpush1.msra.mxu0 %v645
        %672 = vmatprep.subr.mxu0 0.0
        %673 = vmatpush1.msra.mxu0 %v646
        %674 = vmatprep.subr.mxu0 0.0
        %675 = vmatpush1.msra.mxu0 %v647
        %676 = vmatprep.subr.mxu0 0.0
        %677 = vmatpush1.msra.mxu0 0.0
        %678 = vmatprep.subr.mxu0 0.0
        %679 = vmatpush1.msra.mxu0 0.0
        %680 = vmatprep.subr.mxu0 0.0
        %681 = vmatpush1.msra.mxu0 0.0
        %682 = vmatprep.subr.mxu0 0.0
        %683 = vmatpush1.msra.mxu0 0.0
        %684 = vmatprep.subr.mxu0 0.0
        %685 = vmatpush1.msra.mxu0 0.0
        %686 = vmatprep.subr.mxu0 0.0
        %687 = vmatpush1.msra.mxu0 0.0
        %688 = vmatprep.subr.mxu0 0.0
        %689 = vmatpush1.msra.mxu0 0.0
        %690 = vmatprep.subr.mxu0 0.0
        %691 = vmatpush1.msra.mxu0 0.0
        %692 = vmatprep.subr.mxu0 0.0
        %693 = vmatpush1.msra.mxu0 0.0
        %694 = vmatprep.subr.mxu0 0.0
        %695 = vmatpush1.msra.mxu0 0.0
        %696 = vmatprep.subr.mxu0 0.0
        %697 = vmatpush1.msra.mxu0 0.0
        %698 = vmatprep.subr.mxu0 0.0
        %699 = vmatpush1.msra.mxu0 0.0
        %700 = vmatprep.subr.mxu0 0.0
        %701 = vmatpush1.msra.mxu0 0.0
        %702 = vmatprep.subr.mxu0 0.0
        %703 = vmatpush1.msra.mxu0 0.0
        %704 = vmatprep.subr.mxu0 0.0
        %705 = vmatpush1.msra.mxu0 0.0
        %706 = vmatprep.subr.mxu0 0.0
        %707 = vmatpush1.msra.mxu0 0.0
        %708 = vmatprep.subr.mxu0 0.0
        %709 = vmatpush1.msra.mxu0 0.0
        %710 = vmatprep.subr.mxu0 0.0
        %711 = vmatpush1.msra.mxu0 0.0
        %712 = vmatprep.subr.mxu0 0.0
        %713 = vmatpush1.msra.mxu0 0.0
        %714 = vmatprep.subr.mxu0 0.0
        %715 = vmatpush1.msra.mxu0 0.0
        %716 = vmatprep.subr.mxu0 0.0
        %717 = vmatpush1.msra.mxu0 0.0
        %718 = vmatprep.subr.mxu0 0.0
        %719 = vmatpush1.msra.mxu0 0.0
        %720 = vmatprep.subr.mxu0 0.0
        %721 = vmatpush1.msra.mxu0 0.0
        %722 = vmatprep.subr.mxu0 0.0
        %723 = vmatpush1.msra.mxu0 0.0
        %724 = vmatprep.subr.mxu0 0.0
        %725 = vmatpush1.msra.mxu0 0.0
        %726 = vmatprep.subr.mxu0 0.0
        %727 = vmatpush1.msra.mxu0 0.0
        %728 = vmatprep.subr.mxu0 0.0
        %729 = vmatpush1.msra.mxu0 0.0
        %730 = vmatprep.subr.mxu0 0.0
        %731 = vmatpush1.msra.mxu0 0.0
        %732 = vmatprep.mubr.f32.mxu0 0.0
        %733 = vmatmul.mubr.f32.gmra.mrb[0].mxu0 %v657
        %v734 = vpop.f32.mrb[0].mxu0
        %v735 = vadd.f32 %v653, %v734
        %v736 = vpop.f32.mrb[0].mxu0
        %737 = vmatprep.mubr.f32.mxu0 0.0
        %738 = vmatmul.mubr.f32.gmra.mrb[0].mxu0 %v660
        %v739 = vpop.f32.mrb[0].mxu0
        %v740 = vadd.f32 %v653, %v739
        %v741 = vpop.f32.mrb[0].mxu0
        %742 = vmatprep.mubr.f32.mxu0 0.0
        %743 = vmatmul.mubr.f32.gmra.mrb[0].mxu0 %v663
        %v744 = vpop.f32.mrb[0].mxu0
        %v745 = vadd.f32 %v653, %v744
        %v746 = vpop.f32.mrb[0].mxu0
        %747 = vmatprep.mubr.f32.mxu0 0.0
        %748 = vmatmul.mubr.f32.gmra.mrb[0].mxu0 %v666
        %v749 = vpop.f32.mrb[0].mxu0
        %v750 = vadd.f32 %v653, %v749
        %v751 = vpop.f32.mrb[0].mxu0
        %752 = vdwg.mxu0
        %v753 = vld [vmem:[#allocation11] sm:$0xff]
        %v754 = vld [vmem:[#allocation11 + $0x8] sm:$0xff]
        %v755 = vld [vmem:[#allocation11 + $0x10] sm:$0xff]
        %v756 = vld [vmem:[#allocation11 + $0x18] sm:$0xff]
        %v757 = vld [vmem:[#allocation13] sm:$0x1]
        %v759 = vlaneseq
        %v760 = vshrl.u32 %v759, 7
        %v761 = vsub.s32 0, %v760
        %v762 = vrot.slane %v757, %v761
        %v765 = vsel %vm655, %v632, 0
        %v768 = vsel %vm655, %v633, 0
        %v771 = vsel %vm655, %v634, 0
        %v774 = vsel %vm655, %v635, 0
        %776 = vmatprep.subr.mxu0 0.0
        %777 = vmatpush1.msra.mxu0 %v753
        %778 = vmatprep.subr.mxu0 0.0
        %779 = vmatpush1.msra.mxu0 %v754
        %780 = vmatprep.subr.mxu0 0.0
        %781 = vmatpush1.msra.mxu0 %v755
        %782 = vmatprep.subr.mxu0 0.0
        %783 = vmatpush1.msra.mxu0 %v756
        %784 = vmatprep.subr.mxu0 0.0
        %785 = vmatpush1.msra.mxu0 0.0
        %786 = vmatprep.subr.mxu0 0.0
        %787 = vmatpush1.msra.mxu0 0.0
        %788 = vmatprep.subr.mxu0 0.0
        %789 = vmatpush1.msra.mxu0 0.0
        %790 = vmatprep.subr.mxu0 0.0
        %791 = vmatpush1.msra.mxu0 0.0
        %792 = vmatprep.subr.mxu0 0.0
        %793 = vmatpush1.msra.mxu0 0.0
        %794 = vmatprep.subr.mxu0 0.0
        %795 = vmatpush1.msra.mxu0 0.0
        %796 = vmatprep.subr.mxu0 0.0
        %797 = vmatpush1.msra.mxu0 0.0
        %798 = vmatprep.subr.mxu0 0.0
        %799 = vmatpush1.msra.mxu0 0.0
        %800 = vmatprep.subr.mxu0 0.0
        %801 = vmatpush1.msra.mxu0 0.0
        %802 = vmatprep.subr.mxu0 0.0
        %803 = vmatpush1.msra.mxu0 0.0
        %804 = vmatprep.subr.mxu0 0.0
        %805 = vmatpush1.msra.mxu0 0.0
        %806 = vmatprep.subr.mxu0 0.0
        %807 = vmatpush1.msra.mxu0 0.0
        %808 = vmatprep.subr.mxu0 0.0
        %809 = vmatpush1.msra.mxu0 0.0
        %810 = vmatprep.subr.mxu0 0.0
        %811 = vmatpush1.msra.mxu0 0.0
        %812 = vmatprep.subr.mxu0 0.0
        %813 = vmatpush1.msra.mxu0 0.0
        %814 = vmatprep.subr.mxu0 0.0
        %815 = vmatpush1.msra.mxu0 0.0
        %816 = vmatprep.subr.mxu0 0.0
        %817 = vmatpush1.msra.mxu0 0.0
        %818 = vmatprep.subr.mxu0 0.0
        %819 = vmatpush1.msra.mxu0 0.0
        %820 = vmatprep.subr.mxu0 0.0
        %821 = vmatpush1.msra.mxu0 0.0
        %822 = vmatprep.subr.mxu0 0.0
        %823 = vmatpush1.msra.mxu0 0.0
        %824 = vmatprep.subr.mxu0 0.0
        %825 = vmatpush1.msra.mxu0 0.0
        %826 = vmatprep.subr.mxu0 0.0
        %827 = vmatpush1.msra.mxu0 0.0
        %828 = vmatprep.subr.mxu0 0.0
        %829 = vmatpush1.msra.mxu0 0.0
        %830 = vmatprep.subr.mxu0 0.0
        %831 = vmatpush1.msra.mxu0 0.0
        %832 = vmatprep.subr.mxu0 0.0
        %833 = vmatpush1.msra.mxu0 0.0
        %834 = vmatprep.subr.mxu0 0.0
        %835 = vmatpush1.msra.mxu0 0.0
        %836 = vmatprep.subr.mxu0 0.0
        %837 = vmatpush1.msra.mxu0 0.0
        %838 = vmatprep.subr.mxu0 0.0
        %839 = vmatpush1.msra.mxu0 0.0
        %840 = vmatprep.mubr.f32.mxu0 0.0
        %841 = vmatmul.mubr.f32.gmra.mrb[0].mxu0 %v765
        %v842 = vpop.f32.mrb[0].mxu0
        %v843 = vadd.f32 %v762, %v842
        %v844 = vpop.f32.mrb[0].mxu0
        %845 = vmatprep.mubr.f32.mxu0 0.0
        %846 = vmatmul.mubr.f32.gmra.mrb[0].mxu0 %v768
        %v847 = vpop.f32.mrb[0].mxu0
        %v848 = vadd.f32 %v762, %v847
        %v849 = vpop.f32.mrb[0].mxu0
        %850 = vmatprep.mubr.f32.mxu0 0.0
        %851 = vmatmul.mubr.f32.gmra.mrb[0].mxu0 %v771
        %v852 = vpop.f32.mrb[0].mxu0
        %v853 = vadd.f32 %v762, %v852
        %v854 = vpop.f32.mrb[0].mxu0
        %855 = vmatprep.mubr.f32.mxu0 0.0
        %856 = vmatmul.mubr.f32.gmra.mrb[0].mxu0 %v774
        %v857 = vpop.f32.mrb[0].mxu0
        %v858 = vadd.f32 %v762, %v857
        %v859 = vpop.f32.mrb[0].mxu0
        %860 = vdwg.mxu0
        %v861 = vld [vmem:[#allocation8] sm:$0xff]
        %v862 = vld [vmem:[#allocation8 + $0x8] sm:$0xff]
        %v863 = vld [vmem:[#allocation8 + $0x10] sm:$0xff]
        %v864 = vld [vmem:[#allocation8 + $0x18] sm:$0xff]
        %v865 = vld [vmem:[%s4] sm:$0x1]
        %v867 = vlaneseq
        %v868 = vshrl.u32 %v867, 7
        %v869 = vsub.s32 0, %v868
        %v870 = vrot.slane %v865, %v869
        %v873 = vsel %vm655, %v640, 0
        %v876 = vsel %vm655, %v641, 0
        %v879 = vsel %vm655, %v642, 0
        %v882 = vsel %vm655, %v643, 0
        %884 = vmatprep.subr.mxu0 0.0
        %885 = vmatpush1.msra.mxu0 %v861
        %886 = vmatprep.subr.mxu0 0.0
        %887 = vmatpush1.msra.mxu0 %v862
        %888 = vmatprep.subr.mxu0 0.0
        %889 = vmatpush1.msra.mxu0 %v863
        %890 = vmatprep.subr.mxu0 0.0
        %891 = vmatpush1.msra.mxu0 %v864
        %892 = vmatprep.subr.mxu0 0.0
        %893 = vmatpush1.msra.mxu0 0.0
        %894 = vmatprep.subr.mxu0 0.0
        %895 = vmatpush1.msra.mxu0 0.0
        %896 = vmatprep.subr.mxu0 0.0
        %897 = vmatpush1.msra.mxu0 0.0
        %898 = vmatprep.subr.mxu0 0.0
        %899 = vmatpush1.msra.mxu0 0.0
        %900 = vmatprep.subr.mxu0 0.0
        %901 = vmatpush1.msra.mxu0 0.0
        %902 = vmatprep.subr.mxu0 0.0
        %903 = vmatpush1.msra.mxu0 0.0
        %904 = vmatprep.subr.mxu0 0.0
        %905 = vmatpush1.msra.mxu0 0.0
        %906 = vmatprep.subr.mxu0 0.0
        %907 = vmatpush1.msra.mxu0 0.0
        %908 = vmatprep.subr.mxu0 0.0
        %909 = vmatpush1.msra.mxu0 0.0
        %910 = vmatprep.subr.mxu0 0.0
        %911 = vmatpush1.msra.mxu0 0.0
        %912 = vmatprep.subr.mxu0 0.0
        %913 = vmatpush1.msra.mxu0 0.0
        %914 = vmatprep.subr.mxu0 0.0
        %915 = vmatpush1.msra.mxu0 0.0
        %916 = vmatprep.subr.mxu0 0.0
        %917 = vmatpush1.msra.mxu0 0.0
        %918 = vmatprep.subr.mxu0 0.0
        %919 = vmatpush1.msra.mxu0 0.0
        %920 = vmatprep.subr.mxu0 0.0
        %921 = vmatpush1.msra.mxu0 0.0
        %922 = vmatprep.subr.mxu0 0.0
        %923 = vmatpush1.msra.mxu0 0.0
        %924 = vmatprep.subr.mxu0 0.0
        %925 = vmatpush1.msra.mxu0 0.0
        %926 = vmatprep.subr.mxu0 0.0
        %927 = vmatpush1.msra.mxu0 0.0
        %928 = vmatprep.subr.mxu0 0.0
        %929 = vmatpush1.msra.mxu0 0.0
        %930 = vmatprep.subr.mxu0 0.0
        %931 = vmatpush1.msra.mxu0 0.0
        %932 = vmatprep.subr.mxu0 0.0
        %933 = vmatpush1.msra.mxu0 0.0
        %934 = vmatprep.subr.mxu0 0.0
        %935 = vmatpush1.msra.mxu0 0.0
        %936 = vmatprep.subr.mxu0 0.0
        %937 = vmatpush1.msra.mxu0 0.0
        %938 = vmatprep.subr.mxu0 0.0
        %939 = vmatpush1.msra.mxu0 0.0
        %940 = vmatprep.subr.mxu0 0.0
        %941 = vmatpush1.msra.mxu0 0.0
        %942 = vmatprep.subr.mxu0 0.0
        %943 = vmatpush1.msra.mxu0 0.0
        %944 = vmatprep.subr.mxu0 0.0
        %945 = vmatpush1.msra.mxu0 0.0
        %946 = vmatprep.subr.mxu0 0.0
        %947 = vmatpush1.msra.mxu0 0.0
        %948 = vmatprep.mubr.f32.mxu0 0.0
        %949 = vmatmul.mubr.f32.gmra.mrb[0].mxu0 %v873
        %v950 = vpop.f32.mrb[0].mxu0
        %v951 = vadd.f32 %v870, %v950
        %v952 = vpop.f32.mrb[0].mxu0
        %953 = vmatprep.mubr.f32.mxu0 0.0
        %954 = vmatmul.mubr.f32.gmra.mrb[0].mxu0 %v876
        %v955 = vpop.f32.mrb[0].mxu0
        %v956 = vadd.f32 %v870, %v955
        %v957 = vpop.f32.mrb[0].mxu0
        %958 = vmatprep.mubr.f32.mxu0 0.0
        %959 = vmatmul.mubr.f32.gmra.mrb[0].mxu0 %v879
        %v960 = vpop.f32.mrb[0].mxu0
        %v961 = vadd.f32 %v870, %v960
        %v962 = vpop.f32.mrb[0].mxu0
        %963 = vmatprep.mubr.f32.mxu0 0.0
        %964 = vmatmul.mubr.f32.gmra.mrb[0].mxu0 %v882
        %v965 = vpop.f32.mrb[0].mxu0
        %v966 = vadd.f32 %v870, %v965
        %v967 = vpop.f32.mrb[0].mxu0
        %968 = vdwg.mxu0
        %v969 = vld [vmem:[#allocation7] sm:$0xff]
        %v970 = vld [vmem:[#allocation7 + $0x8] sm:$0xff]
        %v971 = vld [vmem:[#allocation7 + $0x10] sm:$0xff]
        %v972 = vld [vmem:[#allocation7 + $0x18] sm:$0xff]
        %v973 = vld [vmem:[#allocation7 + $0x20] sm:$0xff]
        %v974 = vld [vmem:[#allocation7 + $0x28] sm:$0xff]
        %v975 = vld [vmem:[#allocation7 + $0x30] sm:$0xff]
        %v976 = vld [vmem:[#allocation7 + $0x38] sm:$0xff]
        %v977 = vmul.f32 %v951, %v951
        %v978 = vmul.f32 %v956, %v956
        %v979 = vmul.f32 %v961, %v961
        %v980 = vmul.f32 %v966, %v966
        %985 = vrot.lane.b32.xlu0 %v977, 120
        %v986 = vpop.permute.xlu0 %985
        %987 = vrot.lane.b32.xlu0 %v978, 120
        %v988 = vpop.permute.xlu0 %987
        %989 = vrot.lane.b32.xlu0 %v979, 120
        %v990 = vpop.permute.xlu0 %989
        %991 = vrot.lane.b32.xlu0 %v980, 120
        %v992 = vpop.permute.xlu0 %991
        %v997 = vadd.f32 %v977, %v986
        %v998 = vadd.f32 %v978, %v988
        %v999 = vadd.f32 %v979, %v990
        %v1000 = vadd.f32 %v980, %v992
        %1001 = vrot.lane.b32.xlu0 %v977, 112
        %v1002 = vpop.permute.xlu0 %1001
        %1003 = vrot.lane.b32.xlu0 %v978, 112
        %v1004 = vpop.permute.xlu0 %1003
        %1005 = vrot.lane.b32.xlu0 %v979, 112
        %v1006 = vpop.permute.xlu0 %1005
        %1007 = vrot.lane.b32.xlu0 %v980, 112
        %v1008 = vpop.permute.xlu0 %1007
        %v1013 = vadd.f32 %v997, %v1002
        %v1014 = vadd.f32 %v998, %v1004
        %v1015 = vadd.f32 %v999, %v1006
        %v1016 = vadd.f32 %v1000, %v1008
        %1017 = vrot.lane.b32.xlu0 %v977, 104
        %v1018 = vpop.permute.xlu0 %1017
        %1019 = vrot.lane.b32.xlu0 %v978, 104
        %v1020 = vpop.permute.xlu0 %1019
        %1021 = vrot.lane.b32.xlu0 %v979, 104
        %v1022 = vpop.permute.xlu0 %1021
        %1023 = vrot.lane.b32.xlu0 %v980, 104
        %v1024 = vpop.permute.xlu0 %1023
        %v1029 = vadd.f32 %v1013, %v1018
        %v1030 = vadd.f32 %v1014, %v1020
        %v1031 = vadd.f32 %v1015, %v1022
        %v1032 = vadd.f32 %v1016, %v1024
        %v1033 = vmax.f32 %v1029, 1e-24
        %v1034 = vmax.f32 %v1030, 1e-24
        %v1035 = vmax.f32 %v1031, 1e-24
        %v1036 = vmax.f32 %v1032, 1e-24
        %v1037 = vrsqrt.pop %v1033
        %v1038 = vrsqrt.pop %v1034
        %v1039 = vrsqrt.pop %v1035
        %v1040 = vrsqrt.pop %v1036
        %1045 = vrot.lane.b32.xlu0 %v1037, 8
        %v1046 = vpop.permute.xlu0 %1045
        %1047 = vrot.lane.b32.xlu0 %v1038, 8
        %v1048 = vpop.permute.xlu0 %1047
        %1049 = vrot.lane.b32.xlu0 %v1039, 8
        %v1050 = vpop.permute.xlu0 %1049
        %1051 = vrot.lane.b32.xlu0 %v1040, 8
        %v1052 = vpop.permute.xlu0 %1051
        %1057 = vrot.lane.b32.xlu0 %v1037, 16
        %v1058 = vpop.permute.xlu0 %1057
        %1059 = vrot.lane.b32.xlu0 %v1038, 16
        %v1060 = vpop.permute.xlu0 %1059
        %1061 = vrot.lane.b32.xlu0 %v1039, 16
        %v1062 = vpop.permute.xlu0 %1061
        %1063 = vrot.lane.b32.xlu0 %v1040, 16
        %v1064 = vpop.permute.xlu0 %1063
        %1069 = vrot.lane.b32.xlu0 %v1037, 24
        %v1070 = vpop.permute.xlu0 %1069
        %1071 = vrot.lane.b32.xlu0 %v1038, 24
        %v1072 = vpop.permute.xlu0 %1071
        %1073 = vrot.lane.b32.xlu0 %v1039, 24
        %v1074 = vpop.permute.xlu0 %1073
        %1075 = vrot.lane.b32.xlu0 %v1040, 24
        %v1076 = vpop.permute.xlu0 %1075
        %vm1081 = vcmask 64512
        %v1082 = vsel %vm1081, %v1037, %v1046
        %v1083 = vsel %vm1081, %v1038, %v1048
        %v1084 = vsel %vm1081, %v1039, %v1050
        %v1085 = vsel %vm1081, %v1040, %v1052
        %vm1086 = vcmask 130048
        %v1087 = vsel %vm1086, %v1082, %v1058
        %v1088 = vsel %vm1086, %v1083, %v1060
        %v1089 = vsel %vm1086, %v1084, %v1062
        %v1090 = vsel %vm1086, %v1085, %v1064
        %vm1091 = vcmask 195584
        %v1092 = vsel %vm1091, %v1087, %v1070
        %v1093 = vsel %vm1091, %v1088, %v1072
        %v1094 = vsel %vm1091, %v1089, %v1074
        %v1095 = vsel %vm1091, %v1090, %v1076
        %v1096 = vmul.f32 %v951, %v1092
        %v1097 = vmul.f32 %v956, %v1093
        %v1098 = vmul.f32 %v961, %v1094
        %v1099 = vmul.f32 %v966, %v1095
        %v1100 = vmul.f32 %v735, %v735
        %v1101 = vmul.f32 %v740, %v740
        %v1102 = vmul.f32 %v745, %v745
        %v1103 = vmul.f32 %v750, %v750
        %1108 = vrot.lane.b32.xlu0 %v1100, 120
        %v1109 = vpop.permute.xlu0 %1108
        %1110 = vrot.lane.b32.xlu0 %v1101, 120
        %v1111 = vpop.permute.xlu0 %1110
        %1112 = vrot.lane.b32.xlu0 %v1102, 120
        %v1113 = vpop.permute.xlu0 %1112
        %1114 = vrot.lane.b32.xlu0 %v1103, 120
        %v1115 = vpop.permute.xlu0 %1114
        %v1120 = vadd.f32 %v1100, %v1109
        %v1121 = vadd.f32 %v1101, %v1111
        %v1122 = vadd.f32 %v1102, %v1113
        %v1123 = vadd.f32 %v1103, %v1115
        %1124 = vrot.lane.b32.xlu0 %v1100, 112
        %v1125 = vpop.permute.xlu0 %1124
        %1126 = vrot.lane.b32.xlu0 %v1101, 112
        %v1127 = vpop.permute.xlu0 %1126
        %1128 = vrot.lane.b32.xlu0 %v1102, 112
        %v1129 = vpop.permute.xlu0 %1128
        %1130 = vrot.lane.b32.xlu0 %v1103, 112
        %v1131 = vpop.permute.xlu0 %1130
        %v1136 = vadd.f32 %v1120, %v1125
        %v1137 = vadd.f32 %v1121, %v1127
        %v1138 = vadd.f32 %v1122, %v1129
        %v1139 = vadd.f32 %v1123, %v1131
        %1140 = vrot.lane.b32.xlu0 %v1100, 104
        %v1141 = vpop.permute.xlu0 %1140
        %1142 = vrot.lane.b32.xlu0 %v1101, 104
        %v1143 = vpop.permute.xlu0 %1142
        %1144 = vrot.lane.b32.xlu0 %v1102, 104
        %v1145 = vpop.permute.xlu0 %1144
        %1146 = vrot.lane.b32.xlu0 %v1103, 104
        %v1147 = vpop.permute.xlu0 %1146
        %v1152 = vadd.f32 %v1136, %v1141
        %v1153 = vadd.f32 %v1137, %v1143
        %v1154 = vadd.f32 %v1138, %v1145
        %v1155 = vadd.f32 %v1139, %v1147
        %v1156 = vmax.f32 %v1152, 1e-24
        %v1157 = vmax.f32 %v1153, 1e-24
        %v1158 = vmax.f32 %v1154, 1e-24
        %v1159 = vmax.f32 %v1155, 1e-24
        %v1160 = vrsqrt.pop %v1156
        %v1161 = vrsqrt.pop %v1157
        %v1162 = vrsqrt.pop %v1158
        %v1163 = vrsqrt.pop %v1159
        %1168 = vrot.lane.b32.xlu0 %v1160, 8
        %v1169 = vpop.permute.xlu0 %1168
        %1170 = vrot.lane.b32.xlu0 %v1161, 8
        %v1171 = vpop.permute.xlu0 %1170
        %1172 = vrot.lane.b32.xlu0 %v1162, 8
        %v1173 = vpop.permute.xlu0 %1172
        %1174 = vrot.lane.b32.xlu0 %v1163, 8
        %v1175 = vpop.permute.xlu0 %1174
        %1180 = vrot.lane.b32.xlu0 %v1160, 16
        %v1181 = vpop.permute.xlu0 %1180
        %1182 = vrot.lane.b32.xlu0 %v1161, 16
        %v1183 = vpop.permute.xlu0 %1182
        %1184 = vrot.lane.b32.xlu0 %v1162, 16
        %v1185 = vpop.permute.xlu0 %1184
        %1186 = vrot.lane.b32.xlu0 %v1163, 16
        %v1187 = vpop.permute.xlu0 %1186
        %1192 = vrot.lane.b32.xlu0 %v1160, 24
        %v1193 = vpop.permute.xlu0 %1192
        %1194 = vrot.lane.b32.xlu0 %v1161, 24
        %v1195 = vpop.permute.xlu0 %1194
        %1196 = vrot.lane.b32.xlu0 %v1162, 24
        %v1197 = vpop.permute.xlu0 %1196
        %1198 = vrot.lane.b32.xlu0 %v1163, 24
        %v1199 = vpop.permute.xlu0 %1198
        %v1204 = vsel %vm1081, %v1160, %v1169
        %v1205 = vsel %vm1081, %v1161, %v1171
        %v1206 = vsel %vm1081, %v1162, %v1173
        %v1207 = vsel %vm1081, %v1163, %v1175
        %v1208 = vsel %vm1086, %v1204, %v1181
        %v1209 = vsel %vm1086, %v1205, %v1183
        %v1210 = vsel %vm1086, %v1206, %v1185
        %v1211 = vsel %vm1086, %v1207, %v1187
        %v1212 = vsel %vm1091, %v1208, %v1193
        %v1213 = vsel %vm1091, %v1209, %v1195
        %v1214 = vsel %vm1091, %v1210, %v1197
        %v1215 = vsel %vm1091, %v1211, %v1199
        %v1216 = vmul.f32 %v735, %v1212
        %v1217 = vmul.f32 %v740, %v1213
        %v1218 = vmul.f32 %v745, %v1214
        %v1219 = vmul.f32 %v750, %v1215
        %v1220 = vmul.f32 %v843, %v843
        %v1221 = vmul.f32 %v848, %v848
        %v1222 = vmul.f32 %v853, %v853
        %v1223 = vmul.f32 %v858, %v858
        %1228 = vrot.lane.b32.xlu0 %v1220, 120
        %v1229 = vpop.permute.xlu0 %1228
        %1230 = vrot.lane.b32.xlu0 %v1221, 120
        %v1231 = vpop.permute.xlu0 %1230
        %1232 = vrot.lane.b32.xlu0 %v1222, 120
        %v1233 = vpop.permute.xlu0 %1232
        %1234 = vrot.lane.b32.xlu0 %v1223, 120
        %v1235 = vpop.permute.xlu0 %1234
        %v1240 = vadd.f32 %v1220, %v1229
        %v1241 = vadd.f32 %v1221, %v1231
        %v1242 = vadd.f32 %v1222, %v1233
        %v1243 = vadd.f32 %v1223, %v1235
        %1244 = vrot.lane.b32.xlu0 %v1220, 112
        %v1245 = vpop.permute.xlu0 %1244
        %1246 = vrot.lane.b32.xlu0 %v1221, 112
        %v1247 = vpop.permute.xlu0 %1246
        %1248 = vrot.lane.b32.xlu0 %v1222, 112
        %v1249 = vpop.permute.xlu0 %1248
        %1250 = vrot.lane.b32.xlu0 %v1223, 112
        %v1251 = vpop.permute.xlu0 %1250
        %v1256 = vadd.f32 %v1240, %v1245
        %v1257 = vadd.f32 %v1241, %v1247
        %v1258 = vadd.f32 %v1242, %v1249
        %v1259 = vadd.f32 %v1243, %v1251
        %1260 = vrot.lane.b32.xlu0 %v1220, 104
        %v1261 = vpop.permute.xlu0 %1260
        %1262 = vrot.lane.b32.xlu0 %v1221, 104
        %v1263 = vpop.permute.xlu0 %1262
        %1264 = vrot.lane.b32.xlu0 %v1222, 104
        %v1265 = vpop.permute.xlu0 %1264
        %1266 = vrot.lane.b32.xlu0 %v1223, 104
        %v1267 = vpop.permute.xlu0 %1266
        %v1272 = vadd.f32 %v1256, %v1261
        %v1273 = vadd.f32 %v1257, %v1263
        %v1274 = vadd.f32 %v1258, %v1265
        %v1275 = vadd.f32 %v1259, %v1267
        %v1276 = vmax.f32 %v1272, 1e-24
        %v1277 = vmax.f32 %v1273, 1e-24
        %v1278 = vmax.f32 %v1274, 1e-24
        %v1279 = vmax.f32 %v1275, 1e-24
        %v1280 = vrsqrt.pop %v1276
        %v1281 = vrsqrt.pop %v1277
        %v1282 = vrsqrt.pop %v1278
        %v1283 = vrsqrt.pop %v1279
        %1288 = vrot.lane.b32.xlu0 %v1280, 8
        %v1289 = vpop.permute.xlu0 %1288
        %1290 = vrot.lane.b32.xlu0 %v1281, 8
        %v1291 = vpop.permute.xlu0 %1290
        %1292 = vrot.lane.b32.xlu0 %v1282, 8
        %v1293 = vpop.permute.xlu0 %1292
        %1294 = vrot.lane.b32.xlu0 %v1283, 8
        %v1295 = vpop.permute.xlu0 %1294
        %1300 = vrot.lane.b32.xlu0 %v1280, 16
        %v1301 = vpop.permute.xlu0 %1300
        %1302 = vrot.lane.b32.xlu0 %v1281, 16
        %v1303 = vpop.permute.xlu0 %1302
        %1304 = vrot.lane.b32.xlu0 %v1282, 16
        %v1305 = vpop.permute.xlu0 %1304
        %1306 = vrot.lane.b32.xlu0 %v1283, 16
        %v1307 = vpop.permute.xlu0 %1306
        %1312 = vrot.lane.b32.xlu0 %v1280, 24
        %v1313 = vpop.permute.xlu0 %1312
        %1314 = vrot.lane.b32.xlu0 %v1281, 24
        %v1315 = vpop.permute.xlu0 %1314
        %1316 = vrot.lane.b32.xlu0 %v1282, 24
        %v1317 = vpop.permute.xlu0 %1316
        %1318 = vrot.lane.b32.xlu0 %v1283, 24
        %v1319 = vpop.permute.xlu0 %1318
        %v1324 = vsel %vm1081, %v1280, %v1289
        %v1325 = vsel %vm1081, %v1281, %v1291
        %v1326 = vsel %vm1081, %v1282, %v1293
        %v1327 = vsel %vm1081, %v1283, %v1295
        %v1328 = vsel %vm1086, %v1324, %v1301
        %v1329 = vsel %vm1086, %v1325, %v1303
        %v1330 = vsel %vm1086, %v1326, %v1305
        %v1331 = vsel %vm1086, %v1327, %v1307
        %v1332 = vsel %vm1091, %v1328, %v1313
        %v1333 = vsel %vm1091, %v1329, %v1315
        %v1334 = vsel %vm1091, %v1330, %v1317
        %v1335 = vsel %vm1091, %v1331, %v1319
        %v1336 = vmul.f32 %v843, %v1332
        %v1337 = vmul.f32 %v848, %v1333
        %v1338 = vmul.f32 %v853, %v1334
        %v1339 = vmul.f32 %v858, %v1335
        %v1341 = vsel %vm1081, %v1096, 0
        %v1344 = vsel %vm1081, %v1097, 0
        %v1347 = vsel %vm1081, %v1336, 0
        %v1350 = vsel %vm1081, %v1337, 0
        %1352 = vmatprep.subr.mxu0 0.0
        %1353 = vmatpush1.xpose.msra.mxu0 %v1347
        %1354 = vmatprep.subr.mxu0 0.0
        %1355 = vmatpush1.xpose.msra.mxu0 %v1350
        %1356 = vmatprep.subr.mxu0 0.0
        %1357 = vmatpush1.xpose.msra.mxu0 0.0
        %1358 = vmatprep.subr.mxu0 0.0
        %1359 = vmatpush1.xpose.msra.mxu0 0.0
        %1360 = vmatprep.subr.mxu0 0.0
        %1361 = vmatpush1.xpose.msra.mxu0 0.0
        %1362 = vmatprep.subr.mxu0 0.0
        %1363 = vmatpush1.xpose.msra.mxu0 0.0
        %1364 = vmatprep.subr.mxu0 0.0
        %1365 = vmatpush1.xpose.msra.mxu0 0.0
        %1366 = vmatprep.subr.mxu0 0.0
        %1367 = vmatpush1.xpose.msra.mxu0 0.0
        %1368 = vmatprep.subr.mxu0 0.0
        %1369 = vmatpush1.xpose.msra.mxu0 0.0
        %1370 = vmatprep.subr.mxu0 0.0
        %1371 = vmatpush1.xpose.msra.mxu0 0.0
        %1372 = vmatprep.subr.mxu0 0.0
        %1373 = vmatpush1.xpose.msra.mxu0 0.0
        %1374 = vmatprep.subr.mxu0 0.0
        %1375 = vmatpush1.xpose.msra.mxu0 0.0
        %1376 = vmatprep.subr.mxu0 0.0
        %1377 = vmatpush1.xpose.msra.mxu0 0.0
        %1378 = vmatprep.subr.mxu0 0.0
        %1379 = vmatpush1.xpose.msra.mxu0 0.0
        %1380 = vmatprep.subr.mxu0 0.0
        %1381 = vmatpush1.xpose.msra.mxu0 0.0
        %1382 = vmatprep.subr.mxu0 0.0
        %1383 = vmatpush1.xpose.msra.mxu0 0.0
        %1384 = vmatprep.subr.mxu0 0.0
        %1385 = vmatpush1.xpose.msra.mxu0 0.0
        %1386 = vmatprep.subr.mxu0 0.0
        %1387 = vmatpush1.xpose.msra.mxu0 0.0
        %1388 = vmatprep.subr.mxu0 0.0
        %1389 = vmatpush1.xpose.msra.mxu0 0.0
        %1390 = vmatprep.subr.mxu0 0.0
        %1391 = vmatpush1.xpose.msra.mxu0 0.0
        %1392 = vmatprep.subr.mxu0 0.0
        %1393 = vmatpush1.xpose.msra.mxu0 0.0
        %1394 = vmatprep.subr.mxu0 0.0
        %1395 = vmatpush1.xpose.msra.mxu0 0.0
        %1396 = vmatprep.subr.mxu0 0.0
        %1397 = vmatpush1.xpose.msra.mxu0 0.0
        %1398 = vmatprep.subr.mxu0 0.0
        %1399 = vmatpush1.xpose.msra.mxu0 0.0
        %1400 = vmatprep.subr.mxu0 0.0
        %1401 = vmatpush1.xpose.msra.mxu0 0.0
        %1402 = vmatprep.subr.mxu0 0.0
        %1403 = vmatpush1.xpose.msra.mxu0 0.0
        %1404 = vmatprep.subr.mxu0 0.0
        %1405 = vmatpush1.xpose.msra.mxu0 0.0
        %1406 = vmatprep.subr.mxu0 0.0
        %1407 = vmatpush1.xpose.msra.mxu0 0.0
        %1408 = vmatprep.subr.mxu0 0.0
        %1409 = vmatpush1.xpose.msra.mxu0 0.0
        %1410 = vmatprep.subr.mxu0 0.0
        %1411 = vmatpush1.xpose.msra.mxu0 0.0
        %1412 = vmatprep.subr.mxu0 0.0
        %1413 = vmatpush1.xpose.msra.mxu0 0.0
        %1414 = vmatprep.subr.mxu0 0.0
        %1415 = vmatpush1.xpose.msra.mxu0 0.0
        %1416 = vmatprep.mubr.f32.mxu0 0.0
        %1417 = vmatmul.mubr.f32.gmra.mrb[0].mxu0 %v1341
        %v1418 = vpop.f32.mrb[0].mxu0
        %v1419 = vadd.f32 %v969, %v1418
        %v1420 = vpop.f32.mrb[0].mxu0
        %1421 = vmatprep.mubr.f32.mxu0 0.0
        %1422 = vmatmul.mubr.f32.gmra.mrb[0].mxu0 %v1344
        %v1423 = vpop.f32.mrb[0].mxu0
        %v1424 = vadd.f32 %v970, %v1423
        %v1425 = vpop.f32.mrb[0].mxu0
        %1426 = vdwg.mxu0
        %v1428 = vsel %vm1081, %v1098, 0
        %v1431 = vsel %vm1081, %v1099, 0
        %v1434 = vsel %vm1081, %v1338, 0
        %v1437 = vsel %vm1081, %v1339, 0
        %1439 = vmatprep.subr.mxu0 0.0
        %1440 = vmatpush1.xpose.msra.mxu0 %v1434
        %1441 = vmatprep.subr.mxu0 0.0
        %1442 = vmatpush1.xpose.msra.mxu0 %v1437
        %1443 = vmatprep.subr.mxu0 0.0
        %1444 = vmatpush1.xpose.msra.mxu0 0.0
        %1445 = vmatprep.subr.mxu0 0.0
        %1446 = vmatpush1.xpose.msra.mxu0 0.0
        %1447 = vmatprep.subr.mxu0 0.0
        %1448 = vmatpush1.xpose.msra.mxu0 0.0
        %1449 = vmatprep.subr.mxu0 0.0
        %1450 = vmatpush1.xpose.msra.mxu0 0.0
        %1451 = vmatprep.subr.mxu0 0.0
        %1452 = vmatpush1.xpose.msra.mxu0 0.0
        %1453 = vmatprep.subr.mxu0 0.0
        %1454 = vmatpush1.xpose.msra.mxu0 0.0
        %1455 = vmatprep.subr.mxu0 0.0
        %1456 = vmatpush1.xpose.msra.mxu0 0.0
        %1457 = vmatprep.subr.mxu0 0.0
        %1458 = vmatpush1.xpose.msra.mxu0 0.0
        %1459 = vmatprep.subr.mxu0 0.0
        %1460 = vmatpush1.xpose.msra.mxu0 0.0
        %1461 = vmatprep.subr.mxu0 0.0
        %1462 = vmatpush1.xpose.msra.mxu0 0.0
        %1463 = vmatprep.subr.mxu0 0.0
        %1464 = vmatpush1.xpose.msra.mxu0 0.0
        %1465 = vmatprep.subr.mxu0 0.0
        %1466 = vmatpush1.xpose.msra.mxu0 0.0
        %1467 = vmatprep.subr.mxu0 0.0
        %1468 = vmatpush1.xpose.msra.mxu0 0.0
        %1469 = vmatprep.subr.mxu0 0.0
        %1470 = vmatpush1.xpose.msra.mxu0 0.0
        %1471 = vmatprep.subr.mxu0 0.0
        %1472 = vmatpush1.xpose.msra.mxu0 0.0
        %1473 = vmatprep.subr.mxu0 0.0
        %1474 = vmatpush1.xpose.msra.mxu0 0.0
        %1475 = vmatprep.subr.mxu0 0.0
        %1476 = vmatpush1.xpose.msra.mxu0 0.0
        %1477 = vmatprep.subr.mxu0 0.0
        %1478 = vmatpush1.xpose.msra.mxu0 0.0
        %1479 = vmatprep.subr.mxu0 0.0
        %1480 = vmatpush1.xpose.msra.mxu0 0.0
        %1481 = vmatprep.subr.mxu0 0.0
        %1482 = vmatpush1.xpose.msra.mxu0 0.0
        %1483 = vmatprep.subr.mxu0 0.0
        %1484 = vmatpush1.xpose.msra.mxu0 0.0
        %1485 = vmatprep.subr.mxu0 0.0
        %1486 = vmatpush1.xpose.msra.mxu0 0.0
        %1487 = vmatprep.subr.mxu0 0.0
        %1488 = vmatpush1.xpose.msra.mxu0 0.0
        %1489 = vmatprep.subr.mxu0 0.0
        %1490 = vmatpush1.xpose.msra.mxu0 0.0
        %1491 = vmatprep.subr.mxu0 0.0
        %1492 = vmatpush1.xpose.msra.mxu0 0.0
        %1493 = vmatprep.subr.mxu0 0.0
        %1494 = vmatpush1.xpose.msra.mxu0 0.0
        %1495 = vmatprep.subr.mxu0 0.0
        %1496 = vmatpush1.xpose.msra.mxu0 0.0
        %1497 = vmatprep.subr.mxu0 0.0
        %1498 = vmatpush1.xpose.msra.mxu0 0.0
        %1499 = vmatprep.subr.mxu0 0.0
        %1500 = vmatpush1.xpose.msra.mxu0 0.0
        %1501 = vmatprep.subr.mxu0 0.0
        %1502 = vmatpush1.xpose.msra.mxu0 0.0
        %1503 = vmatprep.mubr.f32.mxu0 0.0
        %1504 = vmatmul.mubr.f32.gmra.mrb[0].mxu0 %v1428
        %v1505 = vpop.f32.mrb[0].mxu0
        %v1506 = vadd.f32 %v969, %v1505
        %v1507 = vpop.f32.mrb[0].mxu0
        %1508 = vmatprep.mubr.f32.mxu0 0.0
        %1509 = vmatmul.mubr.f32.gmra.mrb[0].mxu0 %v1431
        %v1510 = vpop.f32.mrb[0].mxu0
        %v1511 = vadd.f32 %v970, %v1510
        %v1512 = vpop.f32.mrb[0].mxu0
        %1513 = vdwg.mxu0
        %v1514 = vsel %vm1086, %v1419, -inf
        %1515 = vmax.xlane.f32.xlu0 %v1514
        %v1516 = vpop.xlane.xlu0 %1515
        %v1517 = vsel %vm1086, %v1424, -inf
        %1518 = vmax.xlane.f32.xlu0 %v1517
        %v1519 = vpop.xlane.xlu0 %1518
        %v1520 = vsel %vm1086, %v1506, -inf
        %1521 = vmax.xlane.f32.xlu0 %v1520
        %v1522 = vpop.xlane.xlu0 %1521
        %v1523 = vsel %vm1086, %v1511, -inf
        %1524 = vmax.xlane.f32.xlu0 %v1523
        %v1525 = vpop.xlane.xlu0 %1524
        %v1526 = vsub.f32 %v1419, %v1516
        %v1527 = vsub.f32 %v1424, %v1519
        %v1528 = vsub.f32 %v1506, %v1522
        %v1529 = vsub.f32 %v1511, %v1525
        %v1530 = vmul.f32 %v1526, 1.442695
        %v1531 = vpow.pop %v1530
        %v1532 = vmul.f32 %v1527, 1.442695
        %v1533 = vpow.pop %v1532
        %v1534 = vmul.f32 %v1528, 1.442695
        %v1535 = vpow.pop %v1534
        %v1536 = vmul.f32 %v1529, 1.442695
        %v1537 = vpow.pop %v1536
        %1540 = vrot.lane.b32.xlu0 %v843, 96
        %v1541 = vpop.permute.xlu0 %1540
        %1542 = vrot.lane.b32.xlu0 %v848, 96
        %v1543 = vpop.permute.xlu0 %1542
        %v1547 = vsel %vm1086, %v1531, 0
        %v1550 = vsel %vm1086, %v1533, 0
        %1552 = vmatprep.subr.mxu0 0.0
        %1553 = vmatpush1.msra.mxu0 %v1541
        %1554 = vmatprep.subr.mxu0 0.0
        %1555 = vmatpush1.msra.mxu0 %v1543
        %1556 = vmatprep.subr.mxu0 0.0
        %1557 = vmatpush1.msra.mxu0 0.0
        %1558 = vmatprep.subr.mxu0 0.0
        %1559 = vmatpush1.msra.mxu0 0.0
        %1560 = vmatprep.subr.mxu0 0.0
        %1561 = vmatpush1.msra.mxu0 0.0
        %1562 = vmatprep.subr.mxu0 0.0
        %1563 = vmatpush1.msra.mxu0 0.0
        %1564 = vmatprep.subr.mxu0 0.0
        %1565 = vmatpush1.msra.mxu0 0.0
        %1566 = vmatprep.subr.mxu0 0.0
        %1567 = vmatpush1.msra.mxu0 0.0
        %1568 = vmatprep.subr.mxu0 0.0
        %1569 = vmatpush1.msra.mxu0 0.0
        %1570 = vmatprep.subr.mxu0 0.0
        %1571 = vmatpush1.msra.mxu0 0.0
        %1572 = vmatprep.subr.mxu0 0.0
        %1573 = vmatpush1.msra.mxu0 0.0
        %1574 = vmatprep.subr.mxu0 0.0
        %1575 = vmatpush1.msra.mxu0 0.0
        %1576 = vmatprep.subr.mxu0 0.0
        %1577 = vmatpush1.msra.mxu0 0.0
        %1578 = vmatprep.subr.mxu0 0.0
        %1579 = vmatpush1.msra.mxu0 0.0
        %1580 = vmatprep.subr.mxu0 0.0
        %1581 = vmatpush1.msra.mxu0 0.0
        %1582 = vmatprep.subr.mxu0 0.0
        %1583 = vmatpush1.msra.mxu0 0.0
        %1584 = vmatprep.subr.mxu0 0.0
        %1585 = vmatpush1.msra.mxu0 0.0
        %1586 = vmatprep.subr.mxu0 0.0
        %1587 = vmatpush1.msra.mxu0 0.0
        %1588 = vmatprep.subr.mxu0 0.0
        %1589 = vmatpush1.msra.mxu0 0.0
        %1590 = vmatprep.subr.mxu0 0.0
        %1591 = vmatpush1.msra.mxu0 0.0
        %1592 = vmatprep.subr.mxu0 0.0
        %1593 = vmatpush1.msra.mxu0 0.0
        %1594 = vmatprep.subr.mxu0 0.0
        %1595 = vmatpush1.msra.mxu0 0.0
        %1596 = vmatprep.subr.mxu0 0.0
        %1597 = vmatpush1.msra.mxu0 0.0
        %1598 = vmatprep.subr.mxu0 0.0
        %1599 = vmatpush1.msra.mxu0 0.0
        %1600 = vmatprep.subr.mxu0 0.0
        %1601 = vmatpush1.msra.mxu0 0.0
        %1602 = vmatprep.subr.mxu0 0.0
        %1603 = vmatpush1.msra.mxu0 0.0
        %1604 = vmatprep.subr.mxu0 0.0
        %1605 = vmatpush1.msra.mxu0 0.0
        %1606 = vmatprep.subr.mxu0 0.0
        %1607 = vmatpush1.msra.mxu0 0.0
        %1608 = vmatprep.subr.mxu0 0.0
        %1609 = vmatpush1.msra.mxu0 0.0
        %1610 = vmatprep.subr.mxu0 0.0
        %1611 = vmatpush1.msra.mxu0 0.0
        %1612 = vmatprep.subr.mxu0 0.0
        %1613 = vmatpush1.msra.mxu0 0.0
        %1614 = vmatprep.subr.mxu0 0.0
        %1615 = vmatpush1.msra.mxu0 0.0
        %1616 = vmatprep.mubr.f32.mxu0 0.0
        %1617 = vmatmul.mubr.f32.gmra.mrb[0].mxu0 %v1547
        %v1618 = vpop.f32.mrb[0].mxu0
        %v1619 = vadd.f32 0.0, %v1618
        %v1620 = vpop.f32.mrb[0].mxu0
        %1621 = vmatprep.mubr.f32.mxu0 0.0
        %1622 = vmatmul.mubr.f32.gmra.mrb[0].mxu0 %v1550
        %v1623 = vpop.f32.mrb[0].mxu0
        %v1624 = vadd.f32 0.0, %v1623
        %v1625 = vpop.f32.mrb[0].mxu0
        %1626 = vdwg.mxu0
        %1629 = vrot.lane.b32.xlu0 %v853, 96
        %v1630 = vpop.permute.xlu0 %1629
        %1631 = vrot.lane.b32.xlu0 %v858, 96
        %v1632 = vpop.permute.xlu0 %1631
        %v1636 = vsel %vm1086, %v1535, 0
        %v1639 = vsel %vm1086, %v1537, 0
        %1641 = vmatprep.subr.mxu0 0.0
        %1642 = vmatpush1.msra.mxu0 %v1630
        %1643 = vmatprep.subr.mxu0 0.0
        %1644 = vmatpush1.msra.mxu0 %v1632
        %1645 = vmatprep.subr.mxu0 0.0
        %1646 = vmatpush1.msra.mxu0 0.0
        %1647 = vmatprep.subr.mxu0 0.0
        %1648 = vmatpush1.msra.mxu0 0.0
        %1649 = vmatprep.subr.mxu0 0.0
        %1650 = vmatpush1.msra.mxu0 0.0
        %1651 = vmatprep.subr.mxu0 0.0
        %1652 = vmatpush1.msra.mxu0 0.0
        %1653 = vmatprep.subr.mxu0 0.0
        %1654 = vmatpush1.msra.mxu0 0.0
        %1655 = vmatprep.subr.mxu0 0.0
        %1656 = vmatpush1.msra.mxu0 0.0
        %1657 = vmatprep.subr.mxu0 0.0
        %1658 = vmatpush1.msra.mxu0 0.0
        %1659 = vmatprep.subr.mxu0 0.0
        %1660 = vmatpush1.msra.mxu0 0.0
        %1661 = vmatprep.subr.mxu0 0.0
        %1662 = vmatpush1.msra.mxu0 0.0
        %1663 = vmatprep.subr.mxu0 0.0
        %1664 = vmatpush1.msra.mxu0 0.0
        %1665 = vmatprep.subr.mxu0 0.0
        %1666 = vmatpush1.msra.mxu0 0.0
        %1667 = vmatprep.subr.mxu0 0.0
        %1668 = vmatpush1.msra.mxu0 0.0
        %1669 = vmatprep.subr.mxu0 0.0
        %1670 = vmatpush1.msra.mxu0 0.0
        %1671 = vmatprep.subr.mxu0 0.0
        %1672 = vmatpush1.msra.mxu0 0.0
        %1673 = vmatprep.subr.mxu0 0.0
        %1674 = vmatpush1.msra.mxu0 0.0
        %1675 = vmatprep.subr.mxu0 0.0
        %1676 = vmatpush1.msra.mxu0 0.0
        %1677 = vmatprep.subr.mxu0 0.0
        %1678 = vmatpush1.msra.mxu0 0.0
        %1679 = vmatprep.subr.mxu0 0.0
        %1680 = vmatpush1.msra.mxu0 0.0
        %1681 = vmatprep.subr.mxu0 0.0
        %1682 = vmatpush1.msra.mxu0 0.0
        %1683 = vmatprep.subr.mxu0 0.0
        %1684 = vmatpush1.msra.mxu0 0.0
        %1685 = vmatprep.subr.mxu0 0.0
        %1686 = vmatpush1.msra.mxu0 0.0
        %1687 = vmatprep.subr.mxu0 0.0
        %1688 = vmatpush1.msra.mxu0 0.0
        %1689 = vmatprep.subr.mxu0 0.0
        %1690 = vmatpush1.msra.mxu0 0.0
        %1691 = vmatprep.subr.mxu0 0.0
        %1692 = vmatpush1.msra.mxu0 0.0
        %1693 = vmatprep.subr.mxu0 0.0
        %1694 = vmatpush1.msra.mxu0 0.0
        %1695 = vmatprep.subr.mxu0 0.0
        %1696 = vmatpush1.msra.mxu0 0.0
        %1697 = vmatprep.subr.mxu0 0.0
        %1698 = vmatpush1.msra.mxu0 0.0
        %1699 = vmatprep.subr.mxu0 0.0
        %1700 = vmatpush1.msra.mxu0 0.0
        %1701 = vmatprep.subr.mxu0 0.0
        %1702 = vmatpush1.msra.mxu0 0.0
        %1703 = vmatprep.subr.mxu0 0.0
        %1704 = vmatpush1.msra.mxu0 0.0
        %1705 = vmatprep.mubr.f32.mxu0 0.0
        %1706 = vmatmul.mubr.f32.gmra.mrb[0].mxu0 %v1636
        %v1707 = vpop.f32.mrb[0].mxu0
        %v1708 = vadd.f32 0.0, %v1707
        %v1709 = vpop.f32.mrb[0].mxu0
        %1710 = vmatprep.mubr.f32.mxu0 0.0
        %1711 = vmatmul.mubr.f32.gmra.mrb[0].mxu0 %v1639
        %v1712 = vpop.f32.mrb[0].mxu0
        %v1713 = vadd.f32 0.0, %v1712
        %v1714 = vpop.f32.mrb[0].mxu0
        %1715 = vdwg.mxu0
        %v1716 = vsel %vm1086, %v1531, 0.0
        %1717 = vadd.xlane.f32.xlu0 %v1716
        %v1718 = vpop.xlane.xlu0 %1717
        %v1719 = vsel %vm1086, %v1533, 0.0
        %1720 = vadd.xlane.f32.xlu0 %v1719
        %v1721 = vpop.xlane.xlu0 %1720
        %v1722 = vsel %vm1086, %v1535, 0.0
        %1723 = vadd.xlane.f32.xlu0 %v1722
        %v1724 = vpop.xlane.xlu0 %1723
        %v1725 = vsel %vm1086, %v1537, 0.0
        %1726 = vadd.xlane.f32.xlu0 %v1725
        %v1727 = vpop.xlane.xlu0 %1726
        %v1728 = vrcp.pop %v1718
        %v1729 = vrcp.pop %v1721
        %v1730 = vrcp.pop %v1724
        %v1731 = vrcp.pop %v1727
        %v1732 = vmul.f32 %v1619, %v1728
        %v1733 = vmul.f32 %v1624, %v1729
        %v1734 = vmul.f32 %v1708, %v1730
        %v1735 = vmul.f32 %v1713, %v1731
        %1736 = vrot.lane.b32.xlu0 %v1096, 120
        %v1737 = vpop.permute.xlu0 %1736
        %1738 = vrot.lane.b32.xlu0 %v1097, 120
        %v1739 = vpop.permute.xlu0 %1738
        %1740 = vrot.lane.b32.xlu0 %v1336, 120
        %v1741 = vpop.permute.xlu0 %1740
        %1742 = vrot.lane.b32.xlu0 %v1337, 120
        %v1743 = vpop.permute.xlu0 %1742
        %v1744 = vsel %vm1081, %v1737, 0
        %v1746 = vsel %vm1081, %v1739, 0
        %v1748 = vsel %vm1081, %v1741, 0
        %v1750 = vsel %vm1081, %v1743, 0
        %1752 = vmatprep.subr.mxu0 0.0
        %1753 = vmatpush1.xpose.msra.mxu0 %v1748
        %1754 = vmatprep.subr.mxu0 0.0
        %1755 = vmatpush1.xpose.msra.mxu0 %v1750
        %1756 = vmatprep.subr.mxu0 0.0
        %1757 = vmatpush1.xpose.msra.mxu0 0.0
        %1758 = vmatprep.subr.mxu0 0.0
        %1759 = vmatpush1.xpose.msra.mxu0 0.0
        %1760 = vmatprep.subr.mxu0 0.0
        %1761 = vmatpush1.xpose.msra.mxu0 0.0
        %1762 = vmatprep.subr.mxu0 0.0
        %1763 = vmatpush1.xpose.msra.mxu0 0.0
        %1764 = vmatprep.subr.mxu0 0.0
        %1765 = vmatpush1.xpose.msra.mxu0 0.0
        %1766 = vmatprep.subr.mxu0 0.0
        %1767 = vmatpush1.xpose.msra.mxu0 0.0
        %1768 = vmatprep.subr.mxu0 0.0
        %1769 = vmatpush1.xpose.msra.mxu0 0.0
        %1770 = vmatprep.subr.mxu0 0.0
        %1771 = vmatpush1.xpose.msra.mxu0 0.0
        %1772 = vmatprep.subr.mxu0 0.0
        %1773 = vmatpush1.xpose.msra.mxu0 0.0
        %1774 = vmatprep.subr.mxu0 0.0
        %1775 = vmatpush1.xpose.msra.mxu0 0.0
        %1776 = vmatprep.subr.mxu0 0.0
        %1777 = vmatpush1.xpose.msra.mxu0 0.0
        %1778 = vmatprep.subr.mxu0 0.0
        %1779 = vmatpush1.xpose.msra.mxu0 0.0
        %1780 = vmatprep.subr.mxu0 0.0
        %1781 = vmatpush1.xpose.msra.mxu0 0.0
        %1782 = vmatprep.subr.mxu0 0.0
        %1783 = vmatpush1.xpose.msra.mxu0 0.0
        %1784 = vmatprep.subr.mxu0 0.0
        %1785 = vmatpush1.xpose.msra.mxu0 0.0
        %1786 = vmatprep.subr.mxu0 0.0
        %1787 = vmatpush1.xpose.msra.mxu0 0.0
        %1788 = vmatprep.subr.mxu0 0.0
        %1789 = vmatpush1.xpose.msra.mxu0 0.0
        %1790 = vmatprep.subr.mxu0 0.0
        %1791 = vmatpush1.xpose.msra.mxu0 0.0
        %1792 = vmatprep.subr.mxu0 0.0
        %1793 = vmatpush1.xpose.msra.mxu0 0.0
        %1794 = vmatprep.subr.mxu0 0.0
        %1795 = vmatpush1.xpose.msra.mxu0 0.0
        %1796 = vmatprep.subr.mxu0 0.0
        %1797 = vmatpush1.xpose.msra.mxu0 0.0
        %1798 = vmatprep.subr.mxu0 0.0
        %1799 = vmatpush1.xpose.msra.mxu0 0.0
        %1800 = vmatprep.subr.mxu0 0.0
        %1801 = vmatpush1.xpose.msra.mxu0 0.0
        %1802 = vmatprep.subr.mxu0 0.0
        %1803 = vmatpush1.xpose.msra.mxu0 0.0
        %1804 = vmatprep.subr.mxu0 0.0
        %1805 = vmatpush1.xpose.msra.mxu0 0.0
        %1806 = vmatprep.subr.mxu0 0.0
        %1807 = vmatpush1.xpose.msra.mxu0 0.0
        %1808 = vmatprep.subr.mxu0 0.0
        %1809 = vmatpush1.xpose.msra.mxu0 0.0
        %1810 = vmatprep.subr.mxu0 0.0
        %1811 = vmatpush1.xpose.msra.mxu0 0.0
        %1812 = vmatprep.subr.mxu0 0.0
        %1813 = vmatpush1.xpose.msra.mxu0 0.0
        %1814 = vmatprep.subr.mxu0 0.0
        %1815 = vmatpush1.xpose.msra.mxu0 0.0
        %1816 = vmatprep.mubr.f32.mxu0 0.0
        %1817 = vmatmul.mubr.f32.gmra.mrb[0].mxu0 %v1744
        %v1818 = vpop.f32.mrb[0].mxu0
        %v1819 = vadd.f32 %v971, %v1818
        %v1820 = vpop.f32.mrb[0].mxu0
        %1821 = vmatprep.mubr.f32.mxu0 0.0
        %1822 = vmatmul.mubr.f32.gmra.mrb[0].mxu0 %v1746
        %v1823 = vpop.f32.mrb[0].mxu0
        %v1824 = vadd.f32 %v972, %v1823
        %v1825 = vpop.f32.mrb[0].mxu0
        %1826 = vdwg.mxu0
        %1827 = vrot.lane.b32.xlu0 %v1098, 120
        %v1828 = vpop.permute.xlu0 %1827
        %1829 = vrot.lane.b32.xlu0 %v1099, 120
        %v1830 = vpop.permute.xlu0 %1829
        %1831 = vrot.lane.b32.xlu0 %v1338, 120
        %v1832 = vpop.permute.xlu0 %1831
        %1833 = vrot.lane.b32.xlu0 %v1339, 120
        %v1834 = vpop.permute.xlu0 %1833
        %v1835 = vsel %vm1081, %v1828, 0
        %v1837 = vsel %vm1081, %v1830, 0
        %v1839 = vsel %vm1081, %v1832, 0
        %v1841 = vsel %vm1081, %v1834, 0
        %1843 = vmatprep.subr.mxu0 0.0
        %1844 = vmatpush1.xpose.msra.mxu0 %v1839
        %1845 = vmatprep.subr.mxu0 0.0
        %1846 = vmatpush1.xpose.msra.mxu0 %v1841
        %1847 = vmatprep.subr.mxu0 0.0
        %1848 = vmatpush1.xpose.msra.mxu0 0.0
        %1849 = vmatprep.subr.mxu0 0.0
        %1850 = vmatpush1.xpose.msra.mxu0 0.0
        %1851 = vmatprep.subr.mxu0 0.0
        %1852 = vmatpush1.xpose.msra.mxu0 0.0
        %1853 = vmatprep.subr.mxu0 0.0
        %1854 = vmatpush1.xpose.msra.mxu0 0.0
        %1855 = vmatprep.subr.mxu0 0.0
        %1856 = vmatpush1.xpose.msra.mxu0 0.0
        %1857 = vmatprep.subr.mxu0 0.0
        %1858 = vmatpush1.xpose.msra.mxu0 0.0
        %1859 = vmatprep.subr.mxu0 0.0
        %1860 = vmatpush1.xpose.msra.mxu0 0.0
        %1861 = vmatprep.subr.mxu0 0.0
        %1862 = vmatpush1.xpose.msra.mxu0 0.0
        %1863 = vmatprep.subr.mxu0 0.0
        %1864 = vmatpush1.xpose.msra.mxu0 0.0
        %1865 = vmatprep.subr.mxu0 0.0
        %1866 = vmatpush1.xpose.msra.mxu0 0.0
        %1867 = vmatprep.subr.mxu0 0.0
        %1868 = vmatpush1.xpose.msra.mxu0 0.0
        %1869 = vmatprep.subr.mxu0 0.0
        %1870 = vmatpush1.xpose.msra.mxu0 0.0
        %1871 = vmatprep.subr.mxu0 0.0
        %1872 = vmatpush1.xpose.msra.mxu0 0.0
        %1873 = vmatprep.subr.mxu0 0.0
        %1874 = vmatpush1.xpose.msra.mxu0 0.0
        %1875 = vmatprep.subr.mxu0 0.0
        %1876 = vmatpush1.xpose.msra.mxu0 0.0
        %1877 = vmatprep.subr.mxu0 0.0
        %1878 = vmatpush1.xpose.msra.mxu0 0.0
        %1879 = vmatprep.subr.mxu0 0.0
        %1880 = vmatpush1.xpose.msra.mxu0 0.0
        %1881 = vmatprep.subr.mxu0 0.0
        %1882 = vmatpush1.xpose.msra.mxu0 0.0
        %1883 = vmatprep.subr.mxu0 0.0
        %1884 = vmatpush1.xpose.msra.mxu0 0.0
        %1885 = vmatprep.subr.mxu0 0.0
        %1886 = vmatpush1.xpose.msra.mxu0 0.0
        %1887 = vmatprep.subr.mxu0 0.0
        %1888 = vmatpush1.xpose.msra.mxu0 0.0
        %1889 = vmatprep.subr.mxu0 0.0
        %1890 = vmatpush1.xpose.msra.mxu0 0.0
        %1891 = vmatprep.subr.mxu0 0.0
        %1892 = vmatpush1.xpose.msra.mxu0 0.0
        %1893 = vmatprep.subr.mxu0 0.0
        %1894 = vmatpush1.xpose.msra.mxu0 0.0
        %1895 = vmatprep.subr.mxu0 0.0
        %1896 = vmatpush1.xpose.msra.mxu0 0.0
        %1897 = vmatprep.subr.mxu0 0.0
        %1898 = vmatpush1.xpose.msra.mxu0 0.0
        %1899 = vmatprep.subr.mxu0 0.0
        %1900 = vmatpush1.xpose.msra.mxu0 0.0
        %1901 = vmatprep.subr.mxu0 0.0
        %1902 = vmatpush1.xpose.msra.mxu0 0.0
        %1903 = vmatprep.subr.mxu0 0.0
        %1904 = vmatpush1.xpose.msra.mxu0 0.0
        %1905 = vmatprep.subr.mxu0 0.0
        %1906 = vmatpush1.xpose.msra.mxu0 0.0
        %1907 = vmatprep.mubr.f32.mxu0 0.0
        %1908 = vmatmul.mubr.f32.gmra.mrb[0].mxu0 %v1835
        %v1909 = vpop.f32.mrb[0].mxu0
        %v1910 = vadd.f32 %v971, %v1909
        %v1911 = vpop.f32.mrb[0].mxu0
        %1912 = vmatprep.mubr.f32.mxu0 0.0
        %1913 = vmatmul.mubr.f32.gmra.mrb[0].mxu0 %v1837
        %v1914 = vpop.f32.mrb[0].mxu0
        %v1915 = vadd.f32 %v972, %v1914
        %v1916 = vpop.f32.mrb[0].mxu0
        %1917 = vdwg.mxu0
        %v1918 = vsel %vm1086, %v1819, -inf
        %1919 = vmax.xlane.f32.xlu0 %v1918
        %v1920 = vpop.xlane.xlu0 %1919
        %v1921 = vsel %vm1086, %v1824, -inf
        %1922 = vmax.xlane.f32.xlu0 %v1921
        %v1923 = vpop.xlane.xlu0 %1922
        %v1924 = vsel %vm1086, %v1910, -inf
        %1925 = vmax.xlane.f32.xlu0 %v1924
        %v1926 = vpop.xlane.xlu0 %1925
        %v1927 = vsel %vm1086, %v1915, -inf
        %1928 = vmax.xlane.f32.xlu0 %v1927
        %v1929 = vpop.xlane.xlu0 %1928
        %v1930 = vsub.f32 %v1819, %v1920
        %v1931 = vsub.f32 %v1824, %v1923
        %v1932 = vsub.f32 %v1910, %v1926
        %v1933 = vsub.f32 %v1915, %v1929
        %v1934 = vmul.f32 %v1930, 1.442695
        %v1935 = vpow.pop %v1934
        %v1936 = vmul.f32 %v1931, 1.442695
        %v1937 = vpow.pop %v1936
        %v1938 = vmul.f32 %v1932, 1.442695
        %v1939 = vpow.pop %v1938
        %v1940 = vmul.f32 %v1933, 1.442695
        %v1941 = vpow.pop %v1940
        %1942 = vrot.lane.b32.xlu0 %v843, 88
        %v1943 = vpop.permute.xlu0 %1942
        %1944 = vrot.lane.b32.xlu0 %v848, 88
        %v1945 = vpop.permute.xlu0 %1944
        %v1949 = vsel %vm1086, %v1935, 0
        %v1952 = vsel %vm1086, %v1937, 0
        %1954 = vmatprep.subr.mxu0 0.0
        %1955 = vmatpush1.msra.mxu0 %v1943
        %1956 = vmatprep.subr.mxu0 0.0
        %1957 = vmatpush1.msra.mxu0 %v1945
        %1958 = vmatprep.subr.mxu0 0.0
        %1959 = vmatpush1.msra.mxu0 0.0
        %1960 = vmatprep.subr.mxu0 0.0
        %1961 = vmatpush1.msra.mxu0 0.0
        %1962 = vmatprep.subr.mxu0 0.0
        %1963 = vmatpush1.msra.mxu0 0.0
        %1964 = vmatprep.subr.mxu0 0.0
        %1965 = vmatpush1.msra.mxu0 0.0
        %1966 = vmatprep.subr.mxu0 0.0
        %1967 = vmatpush1.msra.mxu0 0.0
        %1968 = vmatprep.subr.mxu0 0.0
        %1969 = vmatpush1.msra.mxu0 0.0
        %1970 = vmatprep.subr.mxu0 0.0
        %1971 = vmatpush1.msra.mxu0 0.0
        %1972 = vmatprep.subr.mxu0 0.0
        %1973 = vmatpush1.msra.mxu0 0.0
        %1974 = vmatprep.subr.mxu0 0.0
        %1975 = vmatpush1.msra.mxu0 0.0
        %1976 = vmatprep.subr.mxu0 0.0
        %1977 = vmatpush1.msra.mxu0 0.0
        %1978 = vmatprep.subr.mxu0 0.0
        %1979 = vmatpush1.msra.mxu0 0.0
        %1980 = vmatprep.subr.mxu0 0.0
        %1981 = vmatpush1.msra.mxu0 0.0
        %1982 = vmatprep.subr.mxu0 0.0
        %1983 = vmatpush1.msra.mxu0 0.0
        %1984 = vmatprep.subr.mxu0 0.0
        %1985 = vmatpush1.msra.mxu0 0.0
        %1986 = vmatprep.subr.mxu0 0.0
        %1987 = vmatpush1.msra.mxu0 0.0
        %1988 = vmatprep.subr.mxu0 0.0
        %1989 = vmatpush1.msra.mxu0 0.0
        %1990 = vmatprep.subr.mxu0 0.0
        %1991 = vmatpush1.msra.mxu0 0.0
        %1992 = vmatprep.subr.mxu0 0.0
        %1993 = vmatpush1.msra.mxu0 0.0
        %1994 = vmatprep.subr.mxu0 0.0
        %1995 = vmatpush1.msra.mxu0 0.0
        %1996 = vmatprep.subr.mxu0 0.0
        %1997 = vmatpush1.msra.mxu0 0.0
        %1998 = vmatprep.subr.mxu0 0.0
        %1999 = vmatpush1.msra.mxu0 0.0
        %2000 = vmatprep.subr.mxu0 0.0
        %2001 = vmatpush1.msra.mxu0 0.0
        %2002 = vmatprep.subr.mxu0 0.0
        %2003 = vmatpush1.msra.mxu0 0.0
        %2004 = vmatprep.subr.mxu0 0.0
        %2005 = vmatpush1.msra.mxu0 0.0
        %2006 = vmatprep.subr.mxu0 0.0
        %2007 = vmatpush1.msra.mxu0 0.0
        %2008 = vmatprep.subr.mxu0 0.0
        %2009 = vmatpush1.msra.mxu0 0.0
        %2010 = vmatprep.subr.mxu0 0.0
        %2011 = vmatpush1.msra.mxu0 0.0
        %2012 = vmatprep.subr.mxu0 0.0
        %2013 = vmatpush1.msra.mxu0 0.0
        %2014 = vmatprep.subr.mxu0 0.0
        %2015 = vmatpush1.msra.mxu0 0.0
        %2016 = vmatprep.subr.mxu0 0.0
        %2017 = vmatpush1.msra.mxu0 0.0
        %2018 = vmatprep.mubr.f32.mxu0 0.0
        %2019 = vmatmul.mubr.f32.gmra.mrb[0].mxu0 %v1949
        %v2020 = vpop.f32.mrb[0].mxu0
        %v2021 = vadd.f32 0.0, %v2020
        %v2022 = vpop.f32.mrb[0].mxu0
        %2023 = vmatprep.mubr.f32.mxu0 0.0
        %2024 = vmatmul.mubr.f32.gmra.mrb[0].mxu0 %v1952
        %v2025 = vpop.f32.mrb[0].mxu0
        %v2026 = vadd.f32 0.0, %v2025
        %v2027 = vpop.f32.mrb[0].mxu0
        %2028 = vdwg.mxu0
        %2029 = vrot.lane.b32.xlu0 %v853, 88
        %v2030 = vpop.permute.xlu0 %2029
        %2031 = vrot.lane.b32.xlu0 %v858, 88
        %v2032 = vpop.permute.xlu0 %2031
        %v2036 = vsel %vm1086, %v1939, 0
        %v2039 = vsel %vm1086, %v1941, 0
        %2041 = vmatprep.subr.mxu0 0.0
        %2042 = vmatpush1.msra.mxu0 %v2030
        %2043 = vmatprep.subr.mxu0 0.0
        %2044 = vmatpush1.msra.mxu0 %v2032
        %2045 = vmatprep.subr.mxu0 0.0
        %2046 = vmatpush1.msra.mxu0 0.0
        %2047 = vmatprep.subr.mxu0 0.0
        %2048 = vmatpush1.msra.mxu0 0.0
        %2049 = vmatprep.subr.mxu0 0.0
        %2050 = vmatpush1.msra.mxu0 0.0
        %2051 = vmatprep.subr.mxu0 0.0
        %2052 = vmatpush1.msra.mxu0 0.0
        %2053 = vmatprep.subr.mxu0 0.0
        %2054 = vmatpush1.msra.mxu0 0.0
        %2055 = vmatprep.subr.mxu0 0.0
        %2056 = vmatpush1.msra.mxu0 0.0
        %2057 = vmatprep.subr.mxu0 0.0
        %2058 = vmatpush1.msra.mxu0 0.0
        %2059 = vmatprep.subr.mxu0 0.0
        %2060 = vmatpush1.msra.mxu0 0.0
        %2061 = vmatprep.subr.mxu0 0.0
        %2062 = vmatpush1.msra.mxu0 0.0
        %2063 = vmatprep.subr.mxu0 0.0
        %2064 = vmatpush1.msra.mxu0 0.0
        %2065 = vmatprep.subr.mxu0 0.0
        %2066 = vmatpush1.msra.mxu0 0.0
        %2067 = vmatprep.subr.mxu0 0.0
        %2068 = vmatpush1.msra.mxu0 0.0
        %2069 = vmatprep.subr.mxu0 0.0
        %2070 = vmatpush1.msra.mxu0 0.0
        %2071 = vmatprep.subr.mxu0 0.0
        %2072 = vmatpush1.msra.mxu0 0.0
        %2073 = vmatprep.subr.mxu0 0.0
        %2074 = vmatpush1.msra.mxu0 0.0
        %2075 = vmatprep.subr.mxu0 0.0
        %2076 = vmatpush1.msra.mxu0 0.0
        %2077 = vmatprep.subr.mxu0 0.0
        %2078 = vmatpush1.msra.mxu0 0.0
        %2079 = vmatprep.subr.mxu0 0.0
        %2080 = vmatpush1.msra.mxu0 0.0
        %2081 = vmatprep.subr.mxu0 0.0
        %2082 = vmatpush1.msra.mxu0 0.0
        %2083 = vmatprep.subr.mxu0 0.0
        %2084 = vmatpush1.msra.mxu0 0.0
        %2085 = vmatprep.subr.mxu0 0.0
        %2086 = vmatpush1.msra.mxu0 0.0
        %2087 = vmatprep.subr.mxu0 0.0
        %2088 = vmatpush1.msra.mxu0 0.0
        %2089 = vmatprep.subr.mxu0 0.0
        %2090 = vmatpush1.msra.mxu0 0.0
        %2091 = vmatprep.subr.mxu0 0.0
        %2092 = vmatpush1.msra.mxu0 0.0
        %2093 = vmatprep.subr.mxu0 0.0
        %2094 = vmatpush1.msra.mxu0 0.0
        %2095 = vmatprep.subr.mxu0 0.0
        %2096 = vmatpush1.msra.mxu0 0.0
        %2097 = vmatprep.subr.mxu0 0.0
        %2098 = vmatpush1.msra.mxu0 0.0
        %2099 = vmatprep.subr.mxu0 0.0
        %2100 = vmatpush1.msra.mxu0 0.0
        %2101 = vmatprep.subr.mxu0 0.0
        %2102 = vmatpush1.msra.mxu0 0.0
        %2103 = vmatprep.subr.mxu0 0.0
        %2104 = vmatpush1.msra.mxu0 0.0
        %2105 = vmatprep.mubr.f32.mxu0 0.0
        %2106 = vmatmul.mubr.f32.gmra.mrb[0].mxu0 %v2036
        %v2107 = vpop.f32.mrb[0].mxu0
        %v2108 = vadd.f32 0.0, %v2107
        %v2109 = vpop.f32.mrb[0].mxu0
        %2110 = vmatprep.mubr.f32.mxu0 0.0
        %2111 = vmatmul.mubr.f32.gmra.mrb[0].mxu0 %v2039
        %v2112 = vpop.f32.mrb[0].mxu0
        %v2113 = vadd.f32 0.0, %v2112
        %v2114 = vpop.f32.mrb[0].mxu0
        %2115 = vdwg.mxu0
        %v2116 = vsel %vm1086, %v1935, 0.0
        %2117 = vadd.xlane.f32.xlu0 %v2116
        %v2118 = vpop.xlane.xlu0 %2117
        %v2119 = vsel %vm1086, %v1937, 0.0
        %2120 = vadd.xlane.f32.xlu0 %v2119
        %v2121 = vpop.xlane.xlu0 %2120
        %v2122 = vsel %vm1086, %v1939, 0.0
        %2123 = vadd.xlane.f32.xlu0 %v2122
        %v2124 = vpop.xlane.xlu0 %2123
        %v2125 = vsel %vm1086, %v1941, 0.0
        %2126 = vadd.xlane.f32.xlu0 %v2125
        %v2127 = vpop.xlane.xlu0 %2126
        %v2128 = vrcp.pop %v2118
        %v2129 = vrcp.pop %v2121
        %v2130 = vrcp.pop %v2124
        %v2131 = vrcp.pop %v2127
        %v2132 = vmul.f32 %v2021, %v2128
        %v2133 = vmul.f32 %v2026, %v2129
        %v2134 = vmul.f32 %v2108, %v2130
        %v2135 = vmul.f32 %v2113, %v2131
        %2136 = vrot.lane.b32.xlu0 %v1096, 112
        %v2137 = vpop.permute.xlu0 %2136
        %2138 = vrot.lane.b32.xlu0 %v1097, 112
        %v2139 = vpop.permute.xlu0 %2138
        %2140 = vrot.lane.b32.xlu0 %v1336, 112
        %v2141 = vpop.permute.xlu0 %2140
        %2142 = vrot.lane.b32.xlu0 %v1337, 112
        %v2143 = vpop.permute.xlu0 %2142
        %v2144 = vsel %vm1081, %v2137, 0
        %v2146 = vsel %vm1081, %v2139, 0
        %v2148 = vsel %vm1081, %v2141, 0
        %v2150 = vsel %vm1081, %v2143, 0
        %2152 = vmatprep.subr.mxu0 0.0
        %2153 = vmatpush1.xpose.msra.mxu0 %v2148
        %2154 = vmatprep.subr.mxu0 0.0
        %2155 = vmatpush1.xpose.msra.mxu0 %v2150
        %2156 = vmatprep.subr.mxu0 0.0
        %2157 = vmatpush1.xpose.msra.mxu0 0.0
        %2158 = vmatprep.subr.mxu0 0.0
        %2159 = vmatpush1.xpose.msra.mxu0 0.0
        %2160 = vmatprep.subr.mxu0 0.0
        %2161 = vmatpush1.xpose.msra.mxu0 0.0
        %2162 = vmatprep.subr.mxu0 0.0
        %2163 = vmatpush1.xpose.msra.mxu0 0.0
        %2164 = vmatprep.subr.mxu0 0.0
        %2165 = vmatpush1.xpose.msra.mxu0 0.0
        %2166 = vmatprep.subr.mxu0 0.0
        %2167 = vmatpush1.xpose.msra.mxu0 0.0
        %2168 = vmatprep.subr.mxu0 0.0
        %2169 = vmatpush1.xpose.msra.mxu0 0.0
        %2170 = vmatprep.subr.mxu0 0.0
        %2171 = vmatpush1.xpose.msra.mxu0 0.0
        %2172 = vmatprep.subr.mxu0 0.0
        %2173 = vmatpush1.xpose.msra.mxu0 0.0
        %2174 = vmatprep.subr.mxu0 0.0
        %2175 = vmatpush1.xpose.msra.mxu0 0.0
        %2176 = vmatprep.subr.mxu0 0.0
        %2177 = vmatpush1.xpose.msra.mxu0 0.0
        %2178 = vmatprep.subr.mxu0 0.0
        %2179 = vmatpush1.xpose.msra.mxu0 0.0
        %2180 = vmatprep.subr.mxu0 0.0
        %2181 = vmatpush1.xpose.msra.mxu0 0.0
        %2182 = vmatprep.subr.mxu0 0.0
        %2183 = vmatpush1.xpose.msra.mxu0 0.0
        %2184 = vmatprep.subr.mxu0 0.0
        %2185 = vmatpush1.xpose.msra.mxu0 0.0
        %2186 = vmatprep.subr.mxu0 0.0
        %2187 = vmatpush1.xpose.msra.mxu0 0.0
        %2188 = vmatprep.subr.mxu0 0.0
        %2189 = vmatpush1.xpose.msra.mxu0 0.0
        %2190 = vmatprep.subr.mxu0 0.0
        %2191 = vmatpush1.xpose.msra.mxu0 0.0
        %2192 = vmatprep.subr.mxu0 0.0
        %2193 = vmatpush1.xpose.msra.mxu0 0.0
        %2194 = vmatprep.subr.mxu0 0.0
        %2195 = vmatpush1.xpose.msra.mxu0 0.0
        %2196 = vmatprep.subr.mxu0 0.0
        %2197 = vmatpush1.xpose.msra.mxu0 0.0
        %2198 = vmatprep.subr.mxu0 0.0
        %2199 = vmatpush1.xpose.msra.mxu0 0.0
        %2200 = vmatprep.subr.mxu0 0.0
        %2201 = vmatpush1.xpose.msra.mxu0 0.0
        %2202 = vmatprep.subr.mxu0 0.0
        %2203 = vmatpush1.xpose.msra.mxu0 0.0
        %2204 = vmatprep.subr.mxu0 0.0
        %2205 = vmatpush1.xpose.msra.mxu0 0.0
        %2206 = vmatprep.subr.mxu0 0.0
        %2207 = vmatpush1.xpose.msra.mxu0 0.0
        %2208 = vmatprep.subr.mxu0 0.0
        %2209 = vmatpush1.xpose.msra.mxu0 0.0
        %2210 = vmatprep.subr.mxu0 0.0
        %2211 = vmatpush1.xpose.msra.mxu0 0.0
        %2212 = vmatprep.subr.mxu0 0.0
        %2213 = vmatpush1.xpose.msra.mxu0 0.0
        %2214 = vmatprep.subr.mxu0 0.0
        %2215 = vmatpush1.xpose.msra.mxu0 0.0
        %2216 = vmatprep.mubr.f32.mxu0 0.0
        %2217 = vmatmul.mubr.f32.gmra.mrb[0].mxu0 %v2144
        %v2218 = vpop.f32.mrb[0].mxu0
        %v2219 = vadd.f32 %v973, %v2218
        %v2220 = vpop.f32.mrb[0].mxu0
        %2221 = vmatprep.mubr.f32.mxu0 0.0
        %2222 = vmatmul.mubr.f32.gmra.mrb[0].mxu0 %v2146
        %v2223 = vpop.f32.mrb[0].mxu0
        %v2224 = vadd.f32 %v974, %v2223
        %v2225 = vpop.f32.mrb[0].mxu0
        %2226 = vdwg.mxu0
        %2227 = vrot.lane.b32.xlu0 %v1098, 112
        %v2228 = vpop.permute.xlu0 %2227
        %2229 = vrot.lane.b32.xlu0 %v1099, 112
        %v2230 = vpop.permute.xlu0 %2229
        %2231 = vrot.lane.b32.xlu0 %v1338, 112
        %v2232 = vpop.permute.xlu0 %2231
        %2233 = vrot.lane.b32.xlu0 %v1339, 112
        %v2234 = vpop.permute.xlu0 %2233
        %v2235 = vsel %vm1081, %v2228, 0
        %v2237 = vsel %vm1081, %v2230, 0
        %v2239 = vsel %vm1081, %v2232, 0
        %v2241 = vsel %vm1081, %v2234, 0
        %2243 = vmatprep.subr.mxu0 0.0
        %2244 = vmatpush1.xpose.msra.mxu0 %v2239
        %2245 = vmatprep.subr.mxu0 0.0
        %2246 = vmatpush1.xpose.msra.mxu0 %v2241
        %2247 = vmatprep.subr.mxu0 0.0
        %2248 = vmatpush1.xpose.msra.mxu0 0.0
        %2249 = vmatprep.subr.mxu0 0.0
        %2250 = vmatpush1.xpose.msra.mxu0 0.0
        %2251 = vmatprep.subr.mxu0 0.0
        %2252 = vmatpush1.xpose.msra.mxu0 0.0
        %2253 = vmatprep.subr.mxu0 0.0
        %2254 = vmatpush1.xpose.msra.mxu0 0.0
        %2255 = vmatprep.subr.mxu0 0.0
        %2256 = vmatpush1.xpose.msra.mxu0 0.0
        %2257 = vmatprep.subr.mxu0 0.0
        %2258 = vmatpush1.xpose.msra.mxu0 0.0
        %2259 = vmatprep.subr.mxu0 0.0
        %2260 = vmatpush1.xpose.msra.mxu0 0.0
        %2261 = vmatprep.subr.mxu0 0.0
        %2262 = vmatpush1.xpose.msra.mxu0 0.0
        %2263 = vmatprep.subr.mxu0 0.0
        %2264 = vmatpush1.xpose.msra.mxu0 0.0
        %2265 = vmatprep.subr.mxu0 0.0
        %2266 = vmatpush1.xpose.msra.mxu0 0.0
        %2267 = vmatprep.subr.mxu0 0.0
        %2268 = vmatpush1.xpose.msra.mxu0 0.0
        %2269 = vmatprep.subr.mxu0 0.0
        %2270 = vmatpush1.xpose.msra.mxu0 0.0
        %2271 = vmatprep.subr.mxu0 0.0
        %2272 = vmatpush1.xpose.msra.mxu0 0.0
        %2273 = vmatprep.subr.mxu0 0.0
        %2274 = vmatpush1.xpose.msra.mxu0 0.0
        %2275 = vmatprep.subr.mxu0 0.0
        %2276 = vmatpush1.xpose.msra.mxu0 0.0
        %2277 = vmatprep.subr.mxu0 0.0
        %2278 = vmatpush1.xpose.msra.mxu0 0.0
        %2279 = vmatprep.subr.mxu0 0.0
        %2280 = vmatpush1.xpose.msra.mxu0 0.0
        %2281 = vmatprep.subr.mxu0 0.0
        %2282 = vmatpush1.xpose.msra.mxu0 0.0
        %2283 = vmatprep.subr.mxu0 0.0
        %2284 = vmatpush1.xpose.msra.mxu0 0.0
        %2285 = vmatprep.subr.mxu0 0.0
        %2286 = vmatpush1.xpose.msra.mxu0 0.0
        %2287 = vmatprep.subr.mxu0 0.0
        %2288 = vmatpush1.xpose.msra.mxu0 0.0
        %2289 = vmatprep.subr.mxu0 0.0
        %2290 = vmatpush1.xpose.msra.mxu0 0.0
        %2291 = vmatprep.subr.mxu0 0.0
        %2292 = vmatpush1.xpose.msra.mxu0 0.0
        %2293 = vmatprep.subr.mxu0 0.0
        %2294 = vmatpush1.xpose.msra.mxu0 0.0
        %2295 = vmatprep.subr.mxu0 0.0
        %2296 = vmatpush1.xpose.msra.mxu0 0.0
        %2297 = vmatprep.subr.mxu0 0.0
        %2298 = vmatpush1.xpose.msra.mxu0 0.0
        %2299 = vmatprep.subr.mxu0 0.0
        %2300 = vmatpush1.xpose.msra.mxu0 0.0
        %2301 = vmatprep.subr.mxu0 0.0
        %2302 = vmatpush1.xpose.msra.mxu0 0.0
        %2303 = vmatprep.subr.mxu0 0.0
        %2304 = vmatpush1.xpose.msra.mxu0 0.0
        %2305 = vmatprep.subr.mxu0 0.0
        %2306 = vmatpush1.xpose.msra.mxu0 0.0
        %2307 = vmatprep.mubr.f32.mxu0 0.0
        %2308 = vmatmul.mubr.f32.gmra.mrb[0].mxu0 %v2235
        %v2309 = vpop.f32.mrb[0].mxu0
        %v2310 = vadd.f32 %v973, %v2309
        %v2311 = vpop.f32.mrb[0].mxu0
        %2312 = vmatprep.mubr.f32.mxu0 0.0
        %2313 = vmatmul.mubr.f32.gmra.mrb[0].mxu0 %v2237
        %v2314 = vpop.f32.mrb[0].mxu0
        %v2315 = vadd.f32 %v974, %v2314
        %v2316 = vpop.f32.mrb[0].mxu0
        %2317 = vdwg.mxu0
        %v2318 = vsel %vm1086, %v2219, -inf
        %2319 = vmax.xlane.f32.xlu0 %v2318
        %v2320 = vpop.xlane.xlu0 %2319
        %v2321 = vsel %vm1086, %v2224, -inf
        %2322 = vmax.xlane.f32.xlu0 %v2321
        %v2323 = vpop.xlane.xlu0 %2322
        %v2324 = vsel %vm1086, %v2310, -inf
        %2325 = vmax.xlane.f32.xlu0 %v2324
        %v2326 = vpop.xlane.xlu0 %2325
        %v2327 = vsel %vm1086, %v2315, -inf
        %2328 = vmax.xlane.f32.xlu0 %v2327
        %v2329 = vpop.xlane.xlu0 %2328
        %v2330 = vsub.f32 %v2219, %v2320
        %v2331 = vsub.f32 %v2224, %v2323
        %v2332 = vsub.f32 %v2310, %v2326
        %v2333 = vsub.f32 %v2315, %v2329
        %v2334 = vmul.f32 %v2330, 1.442695
        %v2335 = vpow.pop %v2334
        %v2336 = vmul.f32 %v2331, 1.442695
        %v2337 = vpow.pop %v2336
        %v2338 = vmul.f32 %v2332, 1.442695
        %v2339 = vpow.pop %v2338
        %v2340 = vmul.f32 %v2333, 1.442695
        %v2341 = vpow.pop %v2340
        %2342 = vrot.lane.b32.xlu0 %v843, 80
        %v2343 = vpop.permute.xlu0 %2342
        %2344 = vrot.lane.b32.xlu0 %v848, 80
        %v2345 = vpop.permute.xlu0 %2344
        %v2349 = vsel %vm1086, %v2335, 0
        %v2352 = vsel %vm1086, %v2337, 0
        %2354 = vmatprep.subr.mxu0 0.0
        %2355 = vmatpush1.msra.mxu0 %v2343
        %2356 = vmatprep.subr.mxu0 0.0
        %2357 = vmatpush1.msra.mxu0 %v2345
        %2358 = vmatprep.subr.mxu0 0.0
        %2359 = vmatpush1.msra.mxu0 0.0
        %2360 = vmatprep.subr.mxu0 0.0
        %2361 = vmatpush1.msra.mxu0 0.0
        %2362 = vmatprep.subr.mxu0 0.0
        %2363 = vmatpush1.msra.mxu0 0.0
        %2364 = vmatprep.subr.mxu0 0.0
        %2365 = vmatpush1.msra.mxu0 0.0
        %2366 = vmatprep.subr.mxu0 0.0
        %2367 = vmatpush1.msra.mxu0 0.0
        %2368 = vmatprep.subr.mxu0 0.0
        %2369 = vmatpush1.msra.mxu0 0.0
        %2370 = vmatprep.subr.mxu0 0.0
        %2371 = vmatpush1.msra.mxu0 0.0
        %2372 = vmatprep.subr.mxu0 0.0
        %2373 = vmatpush1.msra.mxu0 0.0
        %2374 = vmatprep.subr.mxu0 0.0
        %2375 = vmatpush1.msra.mxu0 0.0
        %2376 = vmatprep.subr.mxu0 0.0
        %2377 = vmatpush1.msra.mxu0 0.0
        %2378 = vmatprep.subr.mxu0 0.0
        %2379 = vmatpush1.msra.mxu0 0.0
        %2380 = vmatprep.subr.mxu0 0.0
        %2381 = vmatpush1.msra.mxu0 0.0
        %2382 = vmatprep.subr.mxu0 0.0
        %2383 = vmatpush1.msra.mxu0 0.0
        %2384 = vmatprep.subr.mxu0 0.0
        %2385 = vmatpush1.msra.mxu0 0.0
        %2386 = vmatprep.subr.mxu0 0.0
        %2387 = vmatpush1.msra.mxu0 0.0
        %2388 = vmatprep.subr.mxu0 0.0
        %2389 = vmatpush1.msra.mxu0 0.0
        %2390 = vmatprep.subr.mxu0 0.0
        %2391 = vmatpush1.msra.mxu0 0.0
        %2392 = vmatprep.subr.mxu0 0.0
        %2393 = vmatpush1.msra.mxu0 0.0
        %2394 = vmatprep.subr.mxu0 0.0
        %2395 = vmatpush1.msra.mxu0 0.0
        %2396 = vmatprep.subr.mxu0 0.0
        %2397 = vmatpush1.msra.mxu0 0.0
        %2398 = vmatprep.subr.mxu0 0.0
        %2399 = vmatpush1.msra.mxu0 0.0
        %2400 = vmatprep.subr.mxu0 0.0
        %2401 = vmatpush1.msra.mxu0 0.0
        %2402 = vmatprep.subr.mxu0 0.0
        %2403 = vmatpush1.msra.mxu0 0.0
        %2404 = vmatprep.subr.mxu0 0.0
        %2405 = vmatpush1.msra.mxu0 0.0
        %2406 = vmatprep.subr.mxu0 0.0
        %2407 = vmatpush1.msra.mxu0 0.0
        %2408 = vmatprep.subr.mxu0 0.0
        %2409 = vmatpush1.msra.mxu0 0.0
        %2410 = vmatprep.subr.mxu0 0.0
        %2411 = vmatpush1.msra.mxu0 0.0
        %2412 = vmatprep.subr.mxu0 0.0
        %2413 = vmatpush1.msra.mxu0 0.0
        %2414 = vmatprep.subr.mxu0 0.0
        %2415 = vmatpush1.msra.mxu0 0.0
        %2416 = vmatprep.subr.mxu0 0.0
        %2417 = vmatpush1.msra.mxu0 0.0
        %2418 = vmatprep.mubr.f32.mxu0 0.0
        %2419 = vmatmul.mubr.f32.gmra.mrb[0].mxu0 %v2349
        %v2420 = vpop.f32.mrb[0].mxu0
        %v2421 = vadd.f32 0.0, %v2420
        %v2422 = vpop.f32.mrb[0].mxu0
        %2423 = vmatprep.mubr.f32.mxu0 0.0
        %2424 = vmatmul.mubr.f32.gmra.mrb[0].mxu0 %v2352
        %v2425 = vpop.f32.mrb[0].mxu0
        %v2426 = vadd.f32 0.0, %v2425
        %v2427 = vpop.f32.mrb[0].mxu0
        %2428 = vdwg.mxu0
        %2429 = vrot.lane.b32.xlu0 %v853, 80
        %v2430 = vpop.permute.xlu0 %2429
        %2431 = vrot.lane.b32.xlu0 %v858, 80
        %v2432 = vpop.permute.xlu0 %2431
        %v2436 = vsel %vm1086, %v2339, 0
        %v2439 = vsel %vm1086, %v2341, 0
        %2441 = vmatprep.subr.mxu0 0.0
        %2442 = vmatpush1.msra.mxu0 %v2430
        %2443 = vmatprep.subr.mxu0 0.0
        %2444 = vmatpush1.msra.mxu0 %v2432
        %2445 = vmatprep.subr.mxu0 0.0
        %2446 = vmatpush1.msra.mxu0 0.0
        %2447 = vmatprep.subr.mxu0 0.0
        %2448 = vmatpush1.msra.mxu0 0.0
        %2449 = vmatprep.subr.mxu0 0.0
        %2450 = vmatpush1.msra.mxu0 0.0
        %2451 = vmatprep.subr.mxu0 0.0
        %2452 = vmatpush1.msra.mxu0 0.0
        %2453 = vmatprep.subr.mxu0 0.0
        %2454 = vmatpush1.msra.mxu0 0.0
        %2455 = vmatprep.subr.mxu0 0.0
        %2456 = vmatpush1.msra.mxu0 0.0
        %2457 = vmatprep.subr.mxu0 0.0
        %2458 = vmatpush1.msra.mxu0 0.0
        %2459 = vmatprep.subr.mxu0 0.0
        %2460 = vmatpush1.msra.mxu0 0.0
        %2461 = vmatprep.subr.mxu0 0.0
        %2462 = vmatpush1.msra.mxu0 0.0
        %2463 = vmatprep.subr.mxu0 0.0
        %2464 = vmatpush1.msra.mxu0 0.0
        %2465 = vmatprep.subr.mxu0 0.0
        %2466 = vmatpush1.msra.mxu0 0.0
        %2467 = vmatprep.subr.mxu0 0.0
        %2468 = vmatpush1.msra.mxu0 0.0
        %2469 = vmatprep.subr.mxu0 0.0
        %2470 = vmatpush1.msra.mxu0 0.0
        %2471 = vmatprep.subr.mxu0 0.0
        %2472 = vmatpush1.msra.mxu0 0.0
        %2473 = vmatprep.subr.mxu0 0.0
        %2474 = vmatpush1.msra.mxu0 0.0
        %2475 = vmatprep.subr.mxu0 0.0
        %2476 = vmatpush1.msra.mxu0 0.0
        %2477 = vmatprep.subr.mxu0 0.0
        %2478 = vmatpush1.msra.mxu0 0.0
        %2479 = vmatprep.subr.mxu0 0.0
        %2480 = vmatpush1.msra.mxu0 0.0
        %2481 = vmatprep.subr.mxu0 0.0
        %2482 = vmatpush1.msra.mxu0 0.0
        %2483 = vmatprep.subr.mxu0 0.0
        %2484 = vmatpush1.msra.mxu0 0.0
        %2485 = vmatprep.subr.mxu0 0.0
        %2486 = vmatpush1.msra.mxu0 0.0
        %2487 = vmatprep.subr.mxu0 0.0
        %2488 = vmatpush1.msra.mxu0 0.0
        %2489 = vmatprep.subr.mxu0 0.0
        %2490 = vmatpush1.msra.mxu0 0.0
        %2491 = vmatprep.subr.mxu0 0.0
        %2492 = vmatpush1.msra.mxu0 0.0
        %2493 = vmatprep.subr.mxu0 0.0
        %2494 = vmatpush1.msra.mxu0 0.0
        %2495 = vmatprep.subr.mxu0 0.0
        %2496 = vmatpush1.msra.mxu0 0.0
        %2497 = vmatprep.subr.mxu0 0.0
        %2498 = vmatpush1.msra.mxu0 0.0
        %2499 = vmatprep.subr.mxu0 0.0
        %2500 = vmatpush1.msra.mxu0 0.0
        %2501 = vmatprep.subr.mxu0 0.0
        %2502 = vmatpush1.msra.mxu0 0.0
        %2503 = vmatprep.subr.mxu0 0.0
        %2504 = vmatpush1.msra.mxu0 0.0
        %2505 = vmatprep.mubr.f32.mxu0 0.0
        %2506 = vmatmul.mubr.f32.gmra.mrb[0].mxu0 %v2436
        %v2507 = vpop.f32.mrb[0].mxu0
        %v2508 = vadd.f32 0.0, %v2507
        %v2509 = vpop.f32.mrb[0].mxu0
        %2510 = vmatprep.mubr.f32.mxu0 0.0
        %2511 = vmatmul.mubr.f32.gmra.mrb[0].mxu0 %v2439
        %v2512 = vpop.f32.mrb[0].mxu0
        %v2513 = vadd.f32 0.0, %v2512
        %v2514 = vpop.f32.mrb[0].mxu0
        %2515 = vdwg.mxu0
        %v2516 = vsel %vm1086, %v2335, 0.0
        %2517 = vadd.xlane.f32.xlu0 %v2516
        %v2518 = vpop.xlane.xlu0 %2517
        %v2519 = vsel %vm1086, %v2337, 0.0
        %2520 = vadd.xlane.f32.xlu0 %v2519
        %v2521 = vpop.xlane.xlu0 %2520
        %v2522 = vsel %vm1086, %v2339, 0.0
        %2523 = vadd.xlane.f32.xlu0 %v2522
        %v2524 = vpop.xlane.xlu0 %2523
        %v2525 = vsel %vm1086, %v2341, 0.0
        %2526 = vadd.xlane.f32.xlu0 %v2525
        %v2527 = vpop.xlane.xlu0 %2526
        %v2528 = vrcp.pop %v2518
        %v2529 = vrcp.pop %v2521
        %v2530 = vrcp.pop %v2524
        %v2531 = vrcp.pop %v2527
        %v2532 = vmul.f32 %v2421, %v2528
        %v2533 = vmul.f32 %v2426, %v2529
        %v2534 = vmul.f32 %v2508, %v2530
        %v2535 = vmul.f32 %v2513, %v2531
        %2536 = vrot.lane.b32.xlu0 %v1096, 104
        %v2537 = vpop.permute.xlu0 %2536
        %2538 = vrot.lane.b32.xlu0 %v1097, 104
        %v2539 = vpop.permute.xlu0 %2538
        %2540 = vrot.lane.b32.xlu0 %v1336, 104
        %v2541 = vpop.permute.xlu0 %2540
        %2542 = vrot.lane.b32.xlu0 %v1337, 104
        %v2543 = vpop.permute.xlu0 %2542
        %v2544 = vsel %vm1081, %v2537, 0
        %v2546 = vsel %vm1081, %v2539, 0
        %v2548 = vsel %vm1081, %v2541, 0
        %v2550 = vsel %vm1081, %v2543, 0
        %2552 = vmatprep.subr.mxu0 0.0
        %2553 = vmatpush1.xpose.msra.mxu0 %v2548
        %2554 = vmatprep.subr.mxu0 0.0
        %2555 = vmatpush1.xpose.msra.mxu0 %v2550
        %2556 = vmatprep.subr.mxu0 0.0
        %2557 = vmatpush1.xpose.msra.mxu0 0.0
        %2558 = vmatprep.subr.mxu0 0.0
        %2559 = vmatpush1.xpose.msra.mxu0 0.0
        %2560 = vmatprep.subr.mxu0 0.0
        %2561 = vmatpush1.xpose.msra.mxu0 0.0
        %2562 = vmatprep.subr.mxu0 0.0
        %2563 = vmatpush1.xpose.msra.mxu0 0.0
        %2564 = vmatprep.subr.mxu0 0.0
        %2565 = vmatpush1.xpose.msra.mxu0 0.0
        %2566 = vmatprep.subr.mxu0 0.0
        %2567 = vmatpush1.xpose.msra.mxu0 0.0
        %2568 = vmatprep.subr.mxu0 0.0
        %2569 = vmatpush1.xpose.msra.mxu0 0.0
        %2570 = vmatprep.subr.mxu0 0.0
        %2571 = vmatpush1.xpose.msra.mxu0 0.0
        %2572 = vmatprep.subr.mxu0 0.0
        %2573 = vmatpush1.xpose.msra.mxu0 0.0
        %2574 = vmatprep.subr.mxu0 0.0
        %2575 = vmatpush1.xpose.msra.mxu0 0.0
        %2576 = vmatprep.subr.mxu0 0.0
        %2577 = vmatpush1.xpose.msra.mxu0 0.0
        %2578 = vmatprep.subr.mxu0 0.0
        %2579 = vmatpush1.xpose.msra.mxu0 0.0
        %2580 = vmatprep.subr.mxu0 0.0
        %2581 = vmatpush1.xpose.msra.mxu0 0.0
        %2582 = vmatprep.subr.mxu0 0.0
        %2583 = vmatpush1.xpose.msra.mxu0 0.0
        %2584 = vmatprep.subr.mxu0 0.0
        %2585 = vmatpush1.xpose.msra.mxu0 0.0
        %2586 = vmatprep.subr.mxu0 0.0
        %2587 = vmatpush1.xpose.msra.mxu0 0.0
        %2588 = vmatprep.subr.mxu0 0.0
        %2589 = vmatpush1.xpose.msra.mxu0 0.0
        %2590 = vmatprep.subr.mxu0 0.0
        %2591 = vmatpush1.xpose.msra.mxu0 0.0
        %2592 = vmatprep.subr.mxu0 0.0
        %2593 = vmatpush1.xpose.msra.mxu0 0.0
        %2594 = vmatprep.subr.mxu0 0.0
        %2595 = vmatpush1.xpose.msra.mxu0 0.0
        %2596 = vmatprep.subr.mxu0 0.0
        %2597 = vmatpush1.xpose.msra.mxu0 0.0
        %2598 = vmatprep.subr.mxu0 0.0
        %2599 = vmatpush1.xpose.msra.mxu0 0.0
        %2600 = vmatprep.subr.mxu0 0.0
        %2601 = vmatpush1.xpose.msra.mxu0 0.0
        %2602 = vmatprep.subr.mxu0 0.0
        %2603 = vmatpush1.xpose.msra.mxu0 0.0
        %2604 = vmatprep.subr.mxu0 0.0
        %2605 = vmatpush1.xpose.msra.mxu0 0.0
        %2606 = vmatprep.subr.mxu0 0.0
        %2607 = vmatpush1.xpose.msra.mxu0 0.0
        %2608 = vmatprep.subr.mxu0 0.0
        %2609 = vmatpush1.xpose.msra.mxu0 0.0
        %2610 = vmatprep.subr.mxu0 0.0
        %2611 = vmatpush1.xpose.msra.mxu0 0.0
        %2612 = vmatprep.subr.mxu0 0.0
        %2613 = vmatpush1.xpose.msra.mxu0 0.0
        %2614 = vmatprep.subr.mxu0 0.0
        %2615 = vmatpush1.xpose.msra.mxu0 0.0
        %2616 = vmatprep.mubr.f32.mxu0 0.0
        %2617 = vmatmul.mubr.f32.gmra.mrb[0].mxu0 %v2544
        %v2618 = vpop.f32.mrb[0].mxu0
        %v2619 = vadd.f32 %v975, %v2618
        %v2620 = vpop.f32.mrb[0].mxu0
        %2621 = vmatprep.mubr.f32.mxu0 0.0
        %2622 = vmatmul.mubr.f32.gmra.mrb[0].mxu0 %v2546
        %v2623 = vpop.f32.mrb[0].mxu0
        %v2624 = vadd.f32 %v976, %v2623
        %v2625 = vpop.f32.mrb[0].mxu0
        %2626 = vdwg.mxu0
        %2627 = vrot.lane.b32.xlu0 %v1098, 104
        %v2628 = vpop.permute.xlu0 %2627
        %2629 = vrot.lane.b32.xlu0 %v1099, 104
        %v2630 = vpop.permute.xlu0 %2629
        %2631 = vrot.lane.b32.xlu0 %v1338, 104
        %v2632 = vpop.permute.xlu0 %2631
        %2633 = vrot.lane.b32.xlu0 %v1339, 104
        %v2634 = vpop.permute.xlu0 %2633
        %v2635 = vsel %vm1081, %v2628, 0
        %v2637 = vsel %vm1081, %v2630, 0
        %v2639 = vsel %vm1081, %v2632, 0
        %v2641 = vsel %vm1081, %v2634, 0
        %2643 = vmatprep.subr.mxu0 0.0
        %2644 = vmatpush1.xpose.msra.mxu0 %v2639
        %2645 = vmatprep.subr.mxu0 0.0
        %2646 = vmatpush1.xpose.msra.mxu0 %v2641
        %2647 = vmatprep.subr.mxu0 0.0
        %2648 = vmatpush1.xpose.msra.mxu0 0.0
        %2649 = vmatprep.subr.mxu0 0.0
        %2650 = vmatpush1.xpose.msra.mxu0 0.0
        %2651 = vmatprep.subr.mxu0 0.0
        %2652 = vmatpush1.xpose.msra.mxu0 0.0
        %2653 = vmatprep.subr.mxu0 0.0
        %2654 = vmatpush1.xpose.msra.mxu0 0.0
        %2655 = vmatprep.subr.mxu0 0.0
        %2656 = vmatpush1.xpose.msra.mxu0 0.0
        %2657 = vmatprep.subr.mxu0 0.0
        %2658 = vmatpush1.xpose.msra.mxu0 0.0
        %2659 = vmatprep.subr.mxu0 0.0
        %2660 = vmatpush1.xpose.msra.mxu0 0.0
        %2661 = vmatprep.subr.mxu0 0.0
        %2662 = vmatpush1.xpose.msra.mxu0 0.0
        %2663 = vmatprep.subr.mxu0 0.0
        %2664 = vmatpush1.xpose.msra.mxu0 0.0
        %2665 = vmatprep.subr.mxu0 0.0
        %2666 = vmatpush1.xpose.msra.mxu0 0.0
        %2667 = vmatprep.subr.mxu0 0.0
        %2668 = vmatpush1.xpose.msra.mxu0 0.0
        %2669 = vmatprep.subr.mxu0 0.0
        %2670 = vmatpush1.xpose.msra.mxu0 0.0
        %2671 = vmatprep.subr.mxu0 0.0
        %2672 = vmatpush1.xpose.msra.mxu0 0.0
        %2673 = vmatprep.subr.mxu0 0.0
        %2674 = vmatpush1.xpose.msra.mxu0 0.0
        %2675 = vmatprep.subr.mxu0 0.0
        %2676 = vmatpush1.xpose.msra.mxu0 0.0
        %2677 = vmatprep.subr.mxu0 0.0
        %2678 = vmatpush1.xpose.msra.mxu0 0.0
        %2679 = vmatprep.subr.mxu0 0.0
        %2680 = vmatpush1.xpose.msra.mxu0 0.0
        %2681 = vmatprep.subr.mxu0 0.0
        %2682 = vmatpush1.xpose.msra.mxu0 0.0
        %2683 = vmatprep.subr.mxu0 0.0
        %2684 = vmatpush1.xpose.msra.mxu0 0.0
        %2685 = vmatprep.subr.mxu0 0.0
        %2686 = vmatpush1.xpose.msra.mxu0 0.0
        %2687 = vmatprep.subr.mxu0 0.0
        %2688 = vmatpush1.xpose.msra.mxu0 0.0
        %2689 = vmatprep.subr.mxu0 0.0
        %2690 = vmatpush1.xpose.msra.mxu0 0.0
        %2691 = vmatprep.subr.mxu0 0.0
        %2692 = vmatpush1.xpose.msra.mxu0 0.0
        %2693 = vmatprep.subr.mxu0 0.0
        %2694 = vmatpush1.xpose.msra.mxu0 0.0
        %2695 = vmatprep.subr.mxu0 0.0
        %2696 = vmatpush1.xpose.msra.mxu0 0.0
        %2697 = vmatprep.subr.mxu0 0.0
        %2698 = vmatpush1.xpose.msra.mxu0 0.0
        %2699 = vmatprep.subr.mxu0 0.0
        %2700 = vmatpush1.xpose.msra.mxu0 0.0
        %2701 = vmatprep.subr.mxu0 0.0
        %2702 = vmatpush1.xpose.msra.mxu0 0.0
        %2703 = vmatprep.subr.mxu0 0.0
        %2704 = vmatpush1.xpose.msra.mxu0 0.0
        %2705 = vmatprep.subr.mxu0 0.0
        %2706 = vmatpush1.xpose.msra.mxu0 0.0
        %2707 = vmatprep.mubr.f32.mxu0 0.0
        %2708 = vmatmul.mubr.f32.gmra.mrb[0].mxu0 %v2635
        %v2709 = vpop.f32.mrb[0].mxu0
        %v2710 = vadd.f32 %v975, %v2709
        %v2711 = vpop.f32.mrb[0].mxu0
        %2712 = vmatprep.mubr.f32.mxu0 0.0
        %2713 = vmatmul.mubr.f32.gmra.mrb[0].mxu0 %v2637
        %v2714 = vpop.f32.mrb[0].mxu0
        %v2715 = vadd.f32 %v976, %v2714
        %v2716 = vpop.f32.mrb[0].mxu0
        %2717 = vdwg.mxu0
        %v2718 = vsel %vm1086, %v2619, -inf
        %2719 = vmax.xlane.f32.xlu0 %v2718
        %v2720 = vpop.xlane.xlu0 %2719
        %v2721 = vsel %vm1086, %v2624, -inf
        %2722 = vmax.xlane.f32.xlu0 %v2721
        %v2723 = vpop.xlane.xlu0 %2722
        %v2724 = vsel %vm1086, %v2710, -inf
        %2725 = vmax.xlane.f32.xlu0 %v2724
        %v2726 = vpop.xlane.xlu0 %2725
        %v2727 = vsel %vm1086, %v2715, -inf
        %2728 = vmax.xlane.f32.xlu0 %v2727
        %v2729 = vpop.xlane.xlu0 %2728
        %v2730 = vsub.f32 %v2619, %v2720
        %v2731 = vsub.f32 %v2624, %v2723
        %v2732 = vsub.f32 %v2710, %v2726
        %v2733 = vsub.f32 %v2715, %v2729
        %v2734 = vmul.f32 %v2730, 1.442695
        %v2735 = vpow.pop %v2734
        %v2736 = vmul.f32 %v2731, 1.442695
        %v2737 = vpow.pop %v2736
        %v2738 = vmul.f32 %v2732, 1.442695
        %v2739 = vpow.pop %v2738
        %v2740 = vmul.f32 %v2733, 1.442695
        %v2741 = vpow.pop %v2740
        %2742 = vrot.lane.b32.xlu0 %v843, 72
        %v2743 = vpop.permute.xlu0 %2742
        %2744 = vrot.lane.b32.xlu0 %v848, 72
        %v2745 = vpop.permute.xlu0 %2744
        %v2749 = vsel %vm1086, %v2735, 0
        %v2752 = vsel %vm1086, %v2737, 0
        %2754 = vmatprep.subr.mxu0 0.0
        %2755 = vmatpush1.msra.mxu0 %v2743
        %2756 = vmatprep.subr.mxu0 0.0
        %2757 = vmatpush1.msra.mxu0 %v2745
        %2758 = vmatprep.subr.mxu0 0.0
        %2759 = vmatpush1.msra.mxu0 0.0
        %2760 = vmatprep.subr.mxu0 0.0
        %2761 = vmatpush1.msra.mxu0 0.0
        %2762 = vmatprep.subr.mxu0 0.0
        %2763 = vmatpush1.msra.mxu0 0.0
        %2764 = vmatprep.subr.mxu0 0.0
        %2765 = vmatpush1.msra.mxu0 0.0
        %2766 = vmatprep.subr.mxu0 0.0
        %2767 = vmatpush1.msra.mxu0 0.0
        %2768 = vmatprep.subr.mxu0 0.0
        %2769 = vmatpush1.msra.mxu0 0.0
        %2770 = vmatprep.subr.mxu0 0.0
        %2771 = vmatpush1.msra.mxu0 0.0
        %2772 = vmatprep.subr.mxu0 0.0
        %2773 = vmatpush1.msra.mxu0 0.0
        %2774 = vmatprep.subr.mxu0 0.0
        %2775 = vmatpush1.msra.mxu0 0.0
        %2776 = vmatprep.subr.mxu0 0.0
        %2777 = vmatpush1.msra.mxu0 0.0
        %2778 = vmatprep.subr.mxu0 0.0
        %2779 = vmatpush1.msra.mxu0 0.0
        %2780 = vmatprep.subr.mxu0 0.0
        %2781 = vmatpush1.msra.mxu0 0.0
        %2782 = vmatprep.subr.mxu0 0.0
        %2783 = vmatpush1.msra.mxu0 0.0
        %2784 = vmatprep.subr.mxu0 0.0
        %2785 = vmatpush1.msra.mxu0 0.0
        %2786 = vmatprep.subr.mxu0 0.0
        %2787 = vmatpush1.msra.mxu0 0.0
        %2788 = vmatprep.subr.mxu0 0.0
        %2789 = vmatpush1.msra.mxu0 0.0
        %2790 = vmatprep.subr.mxu0 0.0
        %2791 = vmatpush1.msra.mxu0 0.0
        %2792 = vmatprep.subr.mxu0 0.0
        %2793 = vmatpush1.msra.mxu0 0.0
        %2794 = vmatprep.subr.mxu0 0.0
        %2795 = vmatpush1.msra.mxu0 0.0
        %2796 = vmatprep.subr.mxu0 0.0
        %2797 = vmatpush1.msra.mxu0 0.0
        %2798 = vmatprep.subr.mxu0 0.0
        %2799 = vmatpush1.msra.mxu0 0.0
        %2800 = vmatprep.subr.mxu0 0.0
        %2801 = vmatpush1.msra.mxu0 0.0
        %2802 = vmatprep.subr.mxu0 0.0
        %2803 = vmatpush1.msra.mxu0 0.0
        %2804 = vmatprep.subr.mxu0 0.0
        %2805 = vmatpush1.msra.mxu0 0.0
        %2806 = vmatprep.subr.mxu0 0.0
        %2807 = vmatpush1.msra.mxu0 0.0
        %2808 = vmatprep.subr.mxu0 0.0
        %2809 = vmatpush1.msra.mxu0 0.0
        %2810 = vmatprep.subr.mxu0 0.0
        %2811 = vmatpush1.msra.mxu0 0.0
        %2812 = vmatprep.subr.mxu0 0.0
        %2813 = vmatpush1.msra.mxu0 0.0
        %2814 = vmatprep.subr.mxu0 0.0
        %2815 = vmatpush1.msra.mxu0 0.0
        %2816 = vmatprep.subr.mxu0 0.0
        %2817 = vmatpush1.msra.mxu0 0.0
        %2818 = vmatprep.mubr.f32.mxu0 0.0
        %2819 = vmatmul.mubr.f32.gmra.mrb[0].mxu0 %v2749
        %v2820 = vpop.f32.mrb[0].mxu0
        %v2821 = vadd.f32 0.0, %v2820
        %v2822 = vpop.f32.mrb[0].mxu0
        %2823 = vmatprep.mubr.f32.mxu0 0.0
        %2824 = vmatmul.mubr.f32.gmra.mrb[0].mxu0 %v2752
        %v2825 = vpop.f32.mrb[0].mxu0
        %v2826 = vadd.f32 0.0, %v2825
        %v2827 = vpop.f32.mrb[0].mxu0
        %2828 = vdwg.mxu0
        %2829 = vrot.lane.b32.xlu0 %v853, 72
        %v2830 = vpop.permute.xlu0 %2829
        %2831 = vrot.lane.b32.xlu0 %v858, 72
        %v2832 = vpop.permute.xlu0 %2831
        %v2836 = vsel %vm1086, %v2739, 0
        %v2839 = vsel %vm1086, %v2741, 0
        %2841 = vmatprep.subr.mxu0 0.0
        %2842 = vmatpush1.msra.mxu0 %v2830
        %2843 = vmatprep.subr.mxu0 0.0
        %2844 = vmatpush1.msra.mxu0 %v2832
        %2845 = vmatprep.subr.mxu0 0.0
        %2846 = vmatpush1.msra.mxu0 0.0
        %2847 = vmatprep.subr.mxu0 0.0
        %2848 = vmatpush1.msra.mxu0 0.0
        %2849 = vmatprep.subr.mxu0 0.0
        %2850 = vmatpush1.msra.mxu0 0.0
        %2851 = vmatprep.subr.mxu0 0.0
        %2852 = vmatpush1.msra.mxu0 0.0
        %2853 = vmatprep.subr.mxu0 0.0
        %2854 = vmatpush1.msra.mxu0 0.0
        %2855 = vmatprep.subr.mxu0 0.0
        %2856 = vmatpush1.msra.mxu0 0.0
        %2857 = vmatprep.subr.mxu0 0.0
        %2858 = vmatpush1.msra.mxu0 0.0
        %2859 = vmatprep.subr.mxu0 0.0
        %2860 = vmatpush1.msra.mxu0 0.0
        %2861 = vmatprep.subr.mxu0 0.0
        %2862 = vmatpush1.msra.mxu0 0.0
        %2863 = vmatprep.subr.mxu0 0.0
        %2864 = vmatpush1.msra.mxu0 0.0
        %2865 = vmatprep.subr.mxu0 0.0
        %2866 = vmatpush1.msra.mxu0 0.0
        %2867 = vmatprep.subr.mxu0 0.0
        %2868 = vmatpush1.msra.mxu0 0.0
        %2869 = vmatprep.subr.mxu0 0.0
        %2870 = vmatpush1.msra.mxu0 0.0
        %2871 = vmatprep.subr.mxu0 0.0
        %2872 = vmatpush1.msra.mxu0 0.0
        %2873 = vmatprep.subr.mxu0 0.0
        %2874 = vmatpush1.msra.mxu0 0.0
        %2875 = vmatprep.subr.mxu0 0.0
        %2876 = vmatpush1.msra.mxu0 0.0
        %2877 = vmatprep.subr.mxu0 0.0
        %2878 = vmatpush1.msra.mxu0 0.0
        %2879 = vmatprep.subr.mxu0 0.0
        %2880 = vmatpush1.msra.mxu0 0.0
        %2881 = vmatprep.subr.mxu0 0.0
        %2882 = vmatpush1.msra.mxu0 0.0
        %2883 = vmatprep.subr.mxu0 0.0
        %2884 = vmatpush1.msra.mxu0 0.0
        %2885 = vmatprep.subr.mxu0 0.0
        %2886 = vmatpush1.msra.mxu0 0.0
        %2887 = vmatprep.subr.mxu0 0.0
        %2888 = vmatpush1.msra.mxu0 0.0
        %2889 = vmatprep.subr.mxu0 0.0
        %2890 = vmatpush1.msra.mxu0 0.0
        %2891 = vmatprep.subr.mxu0 0.0
        %2892 = vmatpush1.msra.mxu0 0.0
        %2893 = vmatprep.subr.mxu0 0.0
        %2894 = vmatpush1.msra.mxu0 0.0
        %2895 = vmatprep.subr.mxu0 0.0
        %2896 = vmatpush1.msra.mxu0 0.0
        %2897 = vmatprep.subr.mxu0 0.0
        %2898 = vmatpush1.msra.mxu0 0.0
        %2899 = vmatprep.subr.mxu0 0.0
        %2900 = vmatpush1.msra.mxu0 0.0
        %2901 = vmatprep.subr.mxu0 0.0
        %2902 = vmatpush1.msra.mxu0 0.0
        %2903 = vmatprep.subr.mxu0 0.0
        %2904 = vmatpush1.msra.mxu0 0.0
        %2905 = vmatprep.mubr.f32.mxu0 0.0
        %2906 = vmatmul.mubr.f32.gmra.mrb[0].mxu0 %v2836
        %v2907 = vpop.f32.mrb[0].mxu0
        %v2908 = vadd.f32 0.0, %v2907
        %v2909 = vpop.f32.mrb[0].mxu0
        %2910 = vmatprep.mubr.f32.mxu0 0.0
        %2911 = vmatmul.mubr.f32.gmra.mrb[0].mxu0 %v2839
        %v2912 = vpop.f32.mrb[0].mxu0
        %v2913 = vadd.f32 0.0, %v2912
        %v2914 = vpop.f32.mrb[0].mxu0
        %2915 = vdwg.mxu0
        %v2916 = vsel %vm1086, %v2735, 0.0
        %2917 = vadd.xlane.f32.xlu0 %v2916
        %v2918 = vpop.xlane.xlu0 %2917
        %v2919 = vsel %vm1086, %v2737, 0.0
        %2920 = vadd.xlane.f32.xlu0 %v2919
        %v2921 = vpop.xlane.xlu0 %2920
        %v2922 = vsel %vm1086, %v2739, 0.0
        %2923 = vadd.xlane.f32.xlu0 %v2922
        %v2924 = vpop.xlane.xlu0 %2923
        %v2925 = vsel %vm1086, %v2741, 0.0
        %2926 = vadd.xlane.f32.xlu0 %v2925
        %v2927 = vpop.xlane.xlu0 %2926
        %v2928 = vrcp.pop %v2918
        %v2929 = vrcp.pop %v2921
        %v2930 = vrcp.pop %v2924
        %v2931 = vrcp.pop %v2927
        %v2932 = vmul.f32 %v2821, %v2928
        %v2933 = vmul.f32 %v2826, %v2929
        %v2934 = vmul.f32 %v2908, %v2930
        %v2935 = vmul.f32 %v2913, %v2931
        %2940 = vrot.lane.b32.xlu0 %v2132, 8
        %v2941 = vpop.permute.xlu0 %2940
        %2942 = vrot.lane.b32.xlu0 %v2133, 8
        %v2943 = vpop.permute.xlu0 %2942
        %2944 = vrot.lane.b32.xlu0 %v2134, 8
        %v2945 = vpop.permute.xlu0 %2944
        %2946 = vrot.lane.b32.xlu0 %v2135, 8
        %v2947 = vpop.permute.xlu0 %2946
        %2956 = vrot.lane.b32.xlu0 %v2532, 16
        %v2957 = vpop.permute.xlu0 %2956
        %2958 = vrot.lane.b32.xlu0 %v2533, 16
        %v2959 = vpop.permute.xlu0 %2958
        %2960 = vrot.lane.b32.xlu0 %v2534, 16
        %v2961 = vpop.permute.xlu0 %2960
        %2962 = vrot.lane.b32.xlu0 %v2535, 16
        %v2963 = vpop.permute.xlu0 %2962
        %2972 = vrot.lane.b32.xlu0 %v2932, 24
        %v2973 = vpop.permute.xlu0 %2972
        %2974 = vrot.lane.b32.xlu0 %v2933, 24
        %v2975 = vpop.permute.xlu0 %2974
        %2976 = vrot.lane.b32.xlu0 %v2934, 24
        %v2977 = vpop.permute.xlu0 %2976
        %2978 = vrot.lane.b32.xlu0 %v2935, 24
        %v2979 = vpop.permute.xlu0 %2978
        %v2984 = vsel %vm1081, %v1732, %v2941
        %v2985 = vsel %vm1081, %v1733, %v2943
        %v2986 = vsel %vm1081, %v1734, %v2945
        %v2987 = vsel %vm1081, %v1735, %v2947
        %v2988 = vsel %vm1086, %v2984, %v2957
        %v2989 = vsel %vm1086, %v2985, %v2959
        %v2990 = vsel %vm1086, %v2986, %v2961
        %v2991 = vsel %vm1086, %v2987, %v2963
        %v2992 = vsel %vm1091, %v2988, %v2973
        %v2993 = vsel %vm1091, %v2989, %v2975
        %v2994 = vsel %vm1091, %v2990, %v2977
        %v2995 = vsel %vm1091, %v2991, %v2979
        %v2996 = vsub.f32 %v2992, %v951
        %v2997 = vsub.f32 %v2993, %v956
        %v2998 = vsub.f32 %v2994, %v961
        %v2999 = vsub.f32 %v2995, %v966
        %v3000 = vld [vmem:[%s9] sm:$0xff]
        %v3001 = vld [vmem:[%s9 + $0x8] sm:$0xff]
        %v3002 = vld [vmem:[%s9 + $0x10] sm:$0xff]
        %v3003 = vld [vmem:[%s9 + $0x18] sm:$0xff]
        %v3004 = vld [vmem:[%s10] sm:$0x1]
        %v3006 = vlaneseq
        %v3007 = vshrl.u32 %v3006, 7
        %v3008 = vsub.s32 0, %v3007
        %v3009 = vrot.slane %v3004, %v3008
        %v3012 = vsel %vm655, %v2996, 0
        %v3015 = vsel %vm655, %v2997, 0
        %v3018 = vsel %vm655, %v2998, 0
        %v3021 = vsel %vm655, %v2999, 0
        %3023 = vmatprep.subr.mxu0 0.0
        %3024 = vmatpush1.msra.mxu0 %v3000
        %3025 = vmatprep.subr.mxu0 0.0
        %3026 = vmatpush1.msra.mxu0 %v3001
        %3027 = vmatprep.subr.mxu0 0.0
        %3028 = vmatpush1.msra.mxu0 %v3002
        %3029 = vmatprep.subr.mxu0 0.0
        %3030 = vmatpush1.msra.mxu0 %v3003
        %3031 = vmatprep.subr.mxu0 0.0
        %3032 = vmatpush1.msra.mxu0 0.0
        %3033 = vmatprep.subr.mxu0 0.0
        %3034 = vmatpush1.msra.mxu0 0.0
        %3035 = vmatprep.subr.mxu0 0.0
        %3036 = vmatpush1.msra.mxu0 0.0
        %3037 = vmatprep.subr.mxu0 0.0
        %3038 = vmatpush1.msra.mxu0 0.0
        %3039 = vmatprep.subr.mxu0 0.0
        %3040 = vmatpush1.msra.mxu0 0.0
        %3041 = vmatprep.subr.mxu0 0.0
        %3042 = vmatpush1.msra.mxu0 0.0
        %3043 = vmatprep.subr.mxu0 0.0
        %3044 = vmatpush1.msra.mxu0 0.0
        %3045 = vmatprep.subr.mxu0 0.0
        %3046 = vmatpush1.msra.mxu0 0.0
        %3047 = vmatprep.subr.mxu0 0.0
        %3048 = vmatpush1.msra.mxu0 0.0
        %3049 = vmatprep.subr.mxu0 0.0
        %3050 = vmatpush1.msra.mxu0 0.0
        %3051 = vmatprep.subr.mxu0 0.0
        %3052 = vmatpush1.msra.mxu0 0.0
        %3053 = vmatprep.subr.mxu0 0.0
        %3054 = vmatpush1.msra.mxu0 0.0
        %3055 = vmatprep.subr.mxu0 0.0
        %3056 = vmatpush1.msra.mxu0 0.0
        %3057 = vmatprep.subr.mxu0 0.0
        %3058 = vmatpush1.msra.mxu0 0.0
        %3059 = vmatprep.subr.mxu0 0.0
        %3060 = vmatpush1.msra.mxu0 0.0
        %3061 = vmatprep.subr.mxu0 0.0
        %3062 = vmatpush1.msra.mxu0 0.0
        %3063 = vmatprep.subr.mxu0 0.0
        %3064 = vmatpush1.msra.mxu0 0.0
        %3065 = vmatprep.subr.mxu0 0.0
        %3066 = vmatpush1.msra.mxu0 0.0
        %3067 = vmatprep.subr.mxu0 0.0
        %3068 = vmatpush1.msra.mxu0 0.0
        %3069 = vmatprep.subr.mxu0 0.0
        %3070 = vmatpush1.msra.mxu0 0.0
        %3071 = vmatprep.subr.mxu0 0.0
        %3072 = vmatpush1.msra.mxu0 0.0
        %3073 = vmatprep.subr.mxu0 0.0
        %3074 = vmatpush1.msra.mxu0 0.0
        %3075 = vmatprep.subr.mxu0 0.0
        %3076 = vmatpush1.msra.mxu0 0.0
        %3077 = vmatprep.subr.mxu0 0.0
        %3078 = vmatpush1.msra.mxu0 0.0
        %3079 = vmatprep.subr.mxu0 0.0
        %3080 = vmatpush1.msra.mxu0 0.0
        %3081 = vmatprep.subr.mxu0 0.0
        %3082 = vmatpush1.msra.mxu0 0.0
        %3083 = vmatprep.subr.mxu0 0.0
        %3084 = vmatpush1.msra.mxu0 0.0
        %3085 = vmatprep.subr.mxu0 0.0
        %3086 = vmatpush1.msra.mxu0 0.0
        %3087 = vmatprep.mubr.f32.mxu0 0.0
        %3088 = vmatmul.mubr.f32.gmra.mrb[0].mxu0 %v3012
        %v3089 = vpop.f32.mrb[0].mxu0
        %v3090 = vadd.f32 %v3009, %v3089
        %v3091 = vpop.f32.mrb[0].mxu0
        %3092 = vmatprep.mubr.f32.mxu0 0.0
        %3093 = vmatmul.mubr.f32.gmra.mrb[0].mxu0 %v3015
        %v3094 = vpop.f32.mrb[0].mxu0
        %v3095 = vadd.f32 %v3009, %v3094
        %v3096 = vpop.f32.mrb[0].mxu0
        %3097 = vmatprep.mubr.f32.mxu0 0.0
        %3098 = vmatmul.mubr.f32.gmra.mrb[0].mxu0 %v3018
        %v3099 = vpop.f32.mrb[0].mxu0
        %v3100 = vadd.f32 %v3009, %v3099
        %v3101 = vpop.f32.mrb[0].mxu0
        %3102 = vmatprep.mubr.f32.mxu0 0.0
        %3103 = vmatmul.mubr.f32.gmra.mrb[0].mxu0 %v3021
        %v3104 = vpop.f32.mrb[0].mxu0
        %v3105 = vadd.f32 %v3009, %v3104
        %v3106 = vpop.f32.mrb[0].mxu0
        %3107 = vdwg.mxu0
        %3108 = vst.msk [vmem:[%s616] sm:$0xff] %vm655, %v3090
        %3109 = vst.msk [vmem:[%s616 + $0x8] sm:$0xff] %vm655, %v3095
        %3110 = vst.msk [vmem:[%s616 + $0x10] sm:$0xff] %vm655, %v3100
        %3111 = vst.msk [vmem:[%s616 + $0x18] sm:$0xff] %vm655, %v3105
        %v3112 = vmul.f32 %v951, 0.35355338
        %v3113 = vmul.f32 %v956, 0.35355338
        %v3114 = vmul.f32 %v961, 0.35355338
        %v3115 = vmul.f32 %v966, 0.35355338
        %v3117 = vsel %vm1081, %v1216, 0
        %v3120 = vsel %vm1081, %v1217, 0
        %3122 = vmatprep.subr.mxu0 0.0
        %3123 = vmatpush1.xpose.msra.mxu0 %v3117
        %3124 = vmatprep.subr.mxu0 0.0
        %3125 = vmatpush1.xpose.msra.mxu0 %v3120
        %3126 = vmatprep.subr.mxu0 0.0
        %3127 = vmatpush1.xpose.msra.mxu0 0.0
        %3128 = vmatprep.subr.mxu0 0.0
        %3129 = vmatpush1.xpose.msra.mxu0 0.0
        %3130 = vmatprep.subr.mxu0 0.0
        %3131 = vmatpush1.xpose.msra.mxu0 0.0
        %3132 = vmatprep.subr.mxu0 0.0
        %3133 = vmatpush1.xpose.msra.mxu0 0.0
        %3134 = vmatprep.subr.mxu0 0.0
        %3135 = vmatpush1.xpose.msra.mxu0 0.0
        %3136 = vmatprep.subr.mxu0 0.0
        %3137 = vmatpush1.xpose.msra.mxu0 0.0
        %3138 = vmatprep.subr.mxu0 0.0
        %3139 = vmatpush1.xpose.msra.mxu0 0.0
        %3140 = vmatprep.subr.mxu0 0.0
        %3141 = vmatpush1.xpose.msra.mxu0 0.0
        %3142 = vmatprep.subr.mxu0 0.0
        %3143 = vmatpush1.xpose.msra.mxu0 0.0
        %3144 = vmatprep.subr.mxu0 0.0
        %3145 = vmatpush1.xpose.msra.mxu0 0.0
        %3146 = vmatprep.subr.mxu0 0.0
        %3147 = vmatpush1.xpose.msra.mxu0 0.0
        %3148 = vmatprep.subr.mxu0 0.0
        %3149 = vmatpush1.xpose.msra.mxu0 0.0
        %3150 = vmatprep.subr.mxu0 0.0
        %3151 = vmatpush1.xpose.msra.mxu0 0.0
        %3152 = vmatprep.subr.mxu0 0.0
        %3153 = vmatpush1.xpose.msra.mxu0 0.0
        %3154 = vmatprep.subr.mxu0 0.0
        %3155 = vmatpush1.xpose.msra.mxu0 0.0
        %3156 = vmatprep.subr.mxu0 0.0
        %3157 = vmatpush1.xpose.msra.mxu0 0.0
        %3158 = vmatprep.subr.mxu0 0.0
        %3159 = vmatpush1.xpose.msra.mxu0 0.0
        %3160 = vmatprep.subr.mxu0 0.0
        %3161 = vmatpush1.xpose.msra.mxu0 0.0
        %3162 = vmatprep.subr.mxu0 0.0
        %3163 = vmatpush1.xpose.msra.mxu0 0.0
        %3164 = vmatprep.subr.mxu0 0.0
        %3165 = vmatpush1.xpose.msra.mxu0 0.0
        %3166 = vmatprep.subr.mxu0 0.0
        %3167 = vmatpush1.xpose.msra.mxu0 0.0
        %3168 = vmatprep.subr.mxu0 0.0
        %3169 = vmatpush1.xpose.msra.mxu0 0.0
        %3170 = vmatprep.subr.mxu0 0.0
        %3171 = vmatpush1.xpose.msra.mxu0 0.0
        %3172 = vmatprep.subr.mxu0 0.0
        %3173 = vmatpush1.xpose.msra.mxu0 0.0
        %3174 = vmatprep.subr.mxu0 0.0
        %3175 = vmatpush1.xpose.msra.mxu0 0.0
        %3176 = vmatprep.subr.mxu0 0.0
        %3177 = vmatpush1.xpose.msra.mxu0 0.0
        %3178 = vmatprep.subr.mxu0 0.0
        %3179 = vmatpush1.xpose.msra.mxu0 0.0
        %3180 = vmatprep.subr.mxu0 0.0
        %3181 = vmatpush1.xpose.msra.mxu0 0.0
        %3182 = vmatprep.subr.mxu0 0.0
        %3183 = vmatpush1.xpose.msra.mxu0 0.0
        %3184 = vmatprep.subr.mxu0 0.0
        %3185 = vmatpush1.xpose.msra.mxu0 0.0
        %3186 = vmatprep.mubr.f32.mxu0 0.0
        %3187 = vmatmul.mubr.f32.gmra.mrb[0].mxu0 %v1341
        %v3188 = vpop.f32.mrb[0].mxu0
        %v3189 = vadd.f32 %v969, %v3188
        %v3190 = vpop.f32.mrb[0].mxu0
        %3191 = vmatprep.mubr.f32.mxu0 0.0
        %3192 = vmatmul.mubr.f32.gmra.mrb[0].mxu0 %v1344
        %v3193 = vpop.f32.mrb[0].mxu0
        %v3194 = vadd.f32 %v970, %v3193
        %v3195 = vpop.f32.mrb[0].mxu0
        %3196 = vdwg.mxu0
        %v3198 = vsel %vm1081, %v1218, 0
        %v3201 = vsel %vm1081, %v1219, 0
        %3203 = vmatprep.subr.mxu0 0.0
        %3204 = vmatpush1.xpose.msra.mxu0 %v3198
        %3205 = vmatprep.subr.mxu0 0.0
        %3206 = vmatpush1.xpose.msra.mxu0 %v3201
        %3207 = vmatprep.subr.mxu0 0.0
        %3208 = vmatpush1.xpose.msra.mxu0 0.0
        %3209 = vmatprep.subr.mxu0 0.0
        %3210 = vmatpush1.xpose.msra.mxu0 0.0
        %3211 = vmatprep.subr.mxu0 0.0
        %3212 = vmatpush1.xpose.msra.mxu0 0.0
        %3213 = vmatprep.subr.mxu0 0.0
        %3214 = vmatpush1.xpose.msra.mxu0 0.0
        %3215 = vmatprep.subr.mxu0 0.0
        %3216 = vmatpush1.xpose.msra.mxu0 0.0
        %3217 = vmatprep.subr.mxu0 0.0
        %3218 = vmatpush1.xpose.msra.mxu0 0.0
        %3219 = vmatprep.subr.mxu0 0.0
        %3220 = vmatpush1.xpose.msra.mxu0 0.0
        %3221 = vmatprep.subr.mxu0 0.0
        %3222 = vmatpush1.xpose.msra.mxu0 0.0
        %3223 = vmatprep.subr.mxu0 0.0
        %3224 = vmatpush1.xpose.msra.mxu0 0.0
        %3225 = vmatprep.subr.mxu0 0.0
        %3226 = vmatpush1.xpose.msra.mxu0 0.0
        %3227 = vmatprep.subr.mxu0 0.0
        %3228 = vmatpush1.xpose.msra.mxu0 0.0
        %3229 = vmatprep.subr.mxu0 0.0
        %3230 = vmatpush1.xpose.msra.mxu0 0.0
        %3231 = vmatprep.subr.mxu0 0.0
        %3232 = vmatpush1.xpose.msra.mxu0 0.0
        %3233 = vmatprep.subr.mxu0 0.0
        %3234 = vmatpush1.xpose.msra.mxu0 0.0
        %3235 = vmatprep.subr.mxu0 0.0
        %3236 = vmatpush1.xpose.msra.mxu0 0.0
        %3237 = vmatprep.subr.mxu0 0.0
        %3238 = vmatpush1.xpose.msra.mxu0 0.0
        %3239 = vmatprep.subr.mxu0 0.0
        %3240 = vmatpush1.xpose.msra.mxu0 0.0
        %3241 = vmatprep.subr.mxu0 0.0
        %3242 = vmatpush1.xpose.msra.mxu0 0.0
        %3243 = vmatprep.subr.mxu0 0.0
        %3244 = vmatpush1.xpose.msra.mxu0 0.0
        %3245 = vmatprep.subr.mxu0 0.0
        %3246 = vmatpush1.xpose.msra.mxu0 0.0
        %3247 = vmatprep.subr.mxu0 0.0
        %3248 = vmatpush1.xpose.msra.mxu0 0.0
        %3249 = vmatprep.subr.mxu0 0.0
        %3250 = vmatpush1.xpose.msra.mxu0 0.0
        %3251 = vmatprep.subr.mxu0 0.0
        %3252 = vmatpush1.xpose.msra.mxu0 0.0
        %3253 = vmatprep.subr.mxu0 0.0
        %3254 = vmatpush1.xpose.msra.mxu0 0.0
        %3255 = vmatprep.subr.mxu0 0.0
        %3256 = vmatpush1.xpose.msra.mxu0 0.0
        %3257 = vmatprep.subr.mxu0 0.0
        %3258 = vmatpush1.xpose.msra.mxu0 0.0
        %3259 = vmatprep.subr.mxu0 0.0
        %3260 = vmatpush1.xpose.msra.mxu0 0.0
        %3261 = vmatprep.subr.mxu0 0.0
        %3262 = vmatpush1.xpose.msra.mxu0 0.0
        %3263 = vmatprep.subr.mxu0 0.0
        %3264 = vmatpush1.xpose.msra.mxu0 0.0
        %3265 = vmatprep.subr.mxu0 0.0
        %3266 = vmatpush1.xpose.msra.mxu0 0.0
        %3267 = vmatprep.mubr.f32.mxu0 0.0
        %3268 = vmatmul.mubr.f32.gmra.mrb[0].mxu0 %v1428
        %v3269 = vpop.f32.mrb[0].mxu0
        %v3270 = vadd.f32 %v969, %v3269
        %v3271 = vpop.f32.mrb[0].mxu0
        %3272 = vmatprep.mubr.f32.mxu0 0.0
        %3273 = vmatmul.mubr.f32.gmra.mrb[0].mxu0 %v1431
        %v3274 = vpop.f32.mrb[0].mxu0
        %v3275 = vadd.f32 %v970, %v3274
        %v3276 = vpop.f32.mrb[0].mxu0
        %3277 = vdwg.mxu0
        %v3278 = vsel %vm1086, %v3189, -inf
        %3279 = vmax.xlane.f32.xlu0 %v3278
        %v3280 = vpop.xlane.xlu0 %3279
        %v3281 = vsel %vm1086, %v3194, -inf
        %3282 = vmax.xlane.f32.xlu0 %v3281
        %v3283 = vpop.xlane.xlu0 %3282
        %v3284 = vsel %vm1086, %v3270, -inf
        %3285 = vmax.xlane.f32.xlu0 %v3284
        %v3286 = vpop.xlane.xlu0 %3285
        %v3287 = vsel %vm1086, %v3275, -inf
        %3288 = vmax.xlane.f32.xlu0 %v3287
        %v3289 = vpop.xlane.xlu0 %3288
        %v3290 = vsub.f32 %v3189, %v3280
        %v3291 = vsub.f32 %v3194, %v3283
        %v3292 = vsub.f32 %v3270, %v3286
        %v3293 = vsub.f32 %v3275, %v3289
        %v3294 = vmul.f32 %v3290, 1.442695
        %v3295 = vpow.pop %v3294
        %v3296 = vmul.f32 %v3291, 1.442695
        %v3297 = vpow.pop %v3296
        %v3298 = vmul.f32 %v3292, 1.442695
        %v3299 = vpow.pop %v3298
        %v3300 = vmul.f32 %v3293, 1.442695
        %v3301 = vpow.pop %v3300
        %3304 = vrot.lane.b32.xlu0 %v735, 96
        %v3305 = vpop.permute.xlu0 %3304
        %3306 = vrot.lane.b32.xlu0 %v740, 96
        %v3307 = vpop.permute.xlu0 %3306
        %v3311 = vsel %vm1086, %v3295, 0
        %v3314 = vsel %vm1086, %v3297, 0
        %3316 = vmatprep.subr.mxu0 0.0
        %3317 = vmatpush1.msra.mxu0 %v3305
        %3318 = vmatprep.subr.mxu0 0.0
        %3319 = vmatpush1.msra.mxu0 %v3307
        %3320 = vmatprep.subr.mxu0 0.0
        %3321 = vmatpush1.msra.mxu0 0.0
        %3322 = vmatprep.subr.mxu0 0.0
        %3323 = vmatpush1.msra.mxu0 0.0
        %3324 = vmatprep.subr.mxu0 0.0
        %3325 = vmatpush1.msra.mxu0 0.0
        %3326 = vmatprep.subr.mxu0 0.0
        %3327 = vmatpush1.msra.mxu0 0.0
        %3328 = vmatprep.subr.mxu0 0.0
        %3329 = vmatpush1.msra.mxu0 0.0
        %3330 = vmatprep.subr.mxu0 0.0
        %3331 = vmatpush1.msra.mxu0 0.0
        %3332 = vmatprep.subr.mxu0 0.0
        %3333 = vmatpush1.msra.mxu0 0.0
        %3334 = vmatprep.subr.mxu0 0.0
        %3335 = vmatpush1.msra.mxu0 0.0
        %3336 = vmatprep.subr.mxu0 0.0
        %3337 = vmatpush1.msra.mxu0 0.0
        %3338 = vmatprep.subr.mxu0 0.0
        %3339 = vmatpush1.msra.mxu0 0.0
        %3340 = vmatprep.subr.mxu0 0.0
        %3341 = vmatpush1.msra.mxu0 0.0
        %3342 = vmatprep.subr.mxu0 0.0
        %3343 = vmatpush1.msra.mxu0 0.0
        %3344 = vmatprep.subr.mxu0 0.0
        %3345 = vmatpush1.msra.mxu0 0.0
        %3346 = vmatprep.subr.mxu0 0.0
        %3347 = vmatpush1.msra.mxu0 0.0
        %3348 = vmatprep.subr.mxu0 0.0
        %3349 = vmatpush1.msra.mxu0 0.0
        %3350 = vmatprep.subr.mxu0 0.0
        %3351 = vmatpush1.msra.mxu0 0.0
        %3352 = vmatprep.subr.mxu0 0.0
        %3353 = vmatpush1.msra.mxu0 0.0
        %3354 = vmatprep.subr.mxu0 0.0
        %3355 = vmatpush1.msra.mxu0 0.0
        %3356 = vmatprep.subr.mxu0 0.0
        %3357 = vmatpush1.msra.mxu0 0.0
        %3358 = vmatprep.subr.mxu0 0.0
        %3359 = vmatpush1.msra.mxu0 0.0
        %3360 = vmatprep.subr.mxu0 0.0
        %3361 = vmatpush1.msra.mxu0 0.0
        %3362 = vmatprep.subr.mxu0 0.0
        %3363 = vmatpush1.msra.mxu0 0.0
        %3364 = vmatprep.subr.mxu0 0.0
        %3365 = vmatpush1.msra.mxu0 0.0
        %3366 = vmatprep.subr.mxu0 0.0
        %3367 = vmatpush1.msra.mxu0 0.0
        %3368 = vmatprep.subr.mxu0 0.0
        %3369 = vmatpush1.msra.mxu0 0.0
        %3370 = vmatprep.subr.mxu0 0.0
        %3371 = vmatpush1.msra.mxu0 0.0
        %3372 = vmatprep.subr.mxu0 0.0
        %3373 = vmatpush1.msra.mxu0 0.0
        %3374 = vmatprep.subr.mxu0 0.0
        %3375 = vmatpush1.msra.mxu0 0.0
        %3376 = vmatprep.subr.mxu0 0.0
        %3377 = vmatpush1.msra.mxu0 0.0
        %3378 = vmatprep.subr.mxu0 0.0
        %3379 = vmatpush1.msra.mxu0 0.0
        %3380 = vmatprep.mubr.f32.mxu0 0.0
        %3381 = vmatmul.mubr.f32.gmra.mrb[0].mxu0 %v3311
        %v3382 = vpop.f32.mrb[0].mxu0
        %v3383 = vadd.f32 0.0, %v3382
        %v3384 = vpop.f32.mrb[0].mxu0
        %3385 = vmatprep.mubr.f32.mxu0 0.0
        %3386 = vmatmul.mubr.f32.gmra.mrb[0].mxu0 %v3314
        %v3387 = vpop.f32.mrb[0].mxu0
        %v3388 = vadd.f32 0.0, %v3387
        %v3389 = vpop.f32.mrb[0].mxu0
        %3390 = vdwg.mxu0
        %3393 = vrot.lane.b32.xlu0 %v745, 96
        %v3394 = vpop.permute.xlu0 %3393
        %3395 = vrot.lane.b32.xlu0 %v750, 96
        %v3396 = vpop.permute.xlu0 %3395
        %v3400 = vsel %vm1086, %v3299, 0
        %v3403 = vsel %vm1086, %v3301, 0
        %3405 = vmatprep.subr.mxu0 0.0
        %3406 = vmatpush1.msra.mxu0 %v3394
        %3407 = vmatprep.subr.mxu0 0.0
        %3408 = vmatpush1.msra.mxu0 %v3396
        %3409 = vmatprep.subr.mxu0 0.0
        %3410 = vmatpush1.msra.mxu0 0.0
        %3411 = vmatprep.subr.mxu0 0.0
        %3412 = vmatpush1.msra.mxu0 0.0
        %3413 = vmatprep.subr.mxu0 0.0
        %3414 = vmatpush1.msra.mxu0 0.0
        %3415 = vmatprep.subr.mxu0 0.0
        %3416 = vmatpush1.msra.mxu0 0.0
        %3417 = vmatprep.subr.mxu0 0.0
        %3418 = vmatpush1.msra.mxu0 0.0
        %3419 = vmatprep.subr.mxu0 0.0
        %3420 = vmatpush1.msra.mxu0 0.0
        %3421 = vmatprep.subr.mxu0 0.0
        %3422 = vmatpush1.msra.mxu0 0.0
        %3423 = vmatprep.subr.mxu0 0.0
        %3424 = vmatpush1.msra.mxu0 0.0
        %3425 = vmatprep.subr.mxu0 0.0
        %3426 = vmatpush1.msra.mxu0 0.0
        %3427 = vmatprep.subr.mxu0 0.0
        %3428 = vmatpush1.msra.mxu0 0.0
        %3429 = vmatprep.subr.mxu0 0.0
        %3430 = vmatpush1.msra.mxu0 0.0
        %3431 = vmatprep.subr.mxu0 0.0
        %3432 = vmatpush1.msra.mxu0 0.0
        %3433 = vmatprep.subr.mxu0 0.0
        %3434 = vmatpush1.msra.mxu0 0.0
        %3435 = vmatprep.subr.mxu0 0.0
        %3436 = vmatpush1.msra.mxu0 0.0
        %3437 = vmatprep.subr.mxu0 0.0
        %3438 = vmatpush1.msra.mxu0 0.0
        %3439 = vmatprep.subr.mxu0 0.0
        %3440 = vmatpush1.msra.mxu0 0.0
        %3441 = vmatprep.subr.mxu0 0.0
        %3442 = vmatpush1.msra.mxu0 0.0
        %3443 = vmatprep.subr.mxu0 0.0
        %3444 = vmatpush1.msra.mxu0 0.0
        %3445 = vmatprep.subr.mxu0 0.0
        %3446 = vmatpush1.msra.mxu0 0.0
        %3447 = vmatprep.subr.mxu0 0.0
        %3448 = vmatpush1.msra.mxu0 0.0
        %3449 = vmatprep.subr.mxu0 0.0
        %3450 = vmatpush1.msra.mxu0 0.0
        %3451 = vmatprep.subr.mxu0 0.0
        %3452 = vmatpush1.msra.mxu0 0.0
        %3453 = vmatprep.subr.mxu0 0.0
        %3454 = vmatpush1.msra.mxu0 0.0
        %3455 = vmatprep.subr.mxu0 0.0
        %3456 = vmatpush1.msra.mxu0 0.0
        %3457 = vmatprep.subr.mxu0 0.0
        %3458 = vmatpush1.msra.mxu0 0.0
        %3459 = vmatprep.subr.mxu0 0.0
        %3460 = vmatpush1.msra.mxu0 0.0
        %3461 = vmatprep.subr.mxu0 0.0
        %3462 = vmatpush1.msra.mxu0 0.0
        %3463 = vmatprep.subr.mxu0 0.0
        %3464 = vmatpush1.msra.mxu0 0.0
        %3465 = vmatprep.subr.mxu0 0.0
        %3466 = vmatpush1.msra.mxu0 0.0
        %3467 = vmatprep.subr.mxu0 0.0
        %3468 = vmatpush1.msra.mxu0 0.0
        %3469 = vmatprep.mubr.f32.mxu0 0.0
        %3470 = vmatmul.mubr.f32.gmra.mrb[0].mxu0 %v3400
        %v3471 = vpop.f32.mrb[0].mxu0
        %v3472 = vadd.f32 0.0, %v3471
        %v3473 = vpop.f32.mrb[0].mxu0
        %3474 = vmatprep.mubr.f32.mxu0 0.0
        %3475 = vmatmul.mubr.f32.gmra.mrb[0].mxu0 %v3403
        %v3476 = vpop.f32.mrb[0].mxu0
        %v3477 = vadd.f32 0.0, %v3476
        %v3478 = vpop.f32.mrb[0].mxu0
        %3479 = vdwg.mxu0
        %v3480 = vsel %vm1086, %v3295, 0.0
        %3481 = vadd.xlane.f32.xlu0 %v3480
        %v3482 = vpop.xlane.xlu0 %3481
        %v3483 = vsel %vm1086, %v3297, 0.0
        %3484 = vadd.xlane.f32.xlu0 %v3483
        %v3485 = vpop.xlane.xlu0 %3484
        %v3486 = vsel %vm1086, %v3299, 0.0
        %3487 = vadd.xlane.f32.xlu0 %v3486
        %v3488 = vpop.xlane.xlu0 %3487
        %v3489 = vsel %vm1086, %v3301, 0.0
        %3490 = vadd.xlane.f32.xlu0 %v3489
        %v3491 = vpop.xlane.xlu0 %3490
        %v3492 = vrcp.pop %v3482
        %v3493 = vrcp.pop %v3485
        %v3494 = vrcp.pop %v3488
        %v3495 = vrcp.pop %v3491
        %v3496 = vmul.f32 %v3383, %v3492
        %v3497 = vmul.f32 %v3388, %v3493
        %v3498 = vmul.f32 %v3472, %v3494
        %v3499 = vmul.f32 %v3477, %v3495
        %3500 = vrot.lane.b32.xlu0 %v1216, 120
        %v3501 = vpop.permute.xlu0 %3500
        %3502 = vrot.lane.b32.xlu0 %v1217, 120
        %v3503 = vpop.permute.xlu0 %3502
        %v3504 = vsel %vm1081, %v3501, 0
        %v3506 = vsel %vm1081, %v3503, 0
        %3508 = vmatprep.subr.mxu0 0.0
        %3509 = vmatpush1.xpose.msra.mxu0 %v3504
        %3510 = vmatprep.subr.mxu0 0.0
        %3511 = vmatpush1.xpose.msra.mxu0 %v3506
        %3512 = vmatprep.subr.mxu0 0.0
        %3513 = vmatpush1.xpose.msra.mxu0 0.0
        %3514 = vmatprep.subr.mxu0 0.0
        %3515 = vmatpush1.xpose.msra.mxu0 0.0
        %3516 = vmatprep.subr.mxu0 0.0
        %3517 = vmatpush1.xpose.msra.mxu0 0.0
        %3518 = vmatprep.subr.mxu0 0.0
        %3519 = vmatpush1.xpose.msra.mxu0 0.0
        %3520 = vmatprep.subr.mxu0 0.0
        %3521 = vmatpush1.xpose.msra.mxu0 0.0
        %3522 = vmatprep.subr.mxu0 0.0
        %3523 = vmatpush1.xpose.msra.mxu0 0.0
        %3524 = vmatprep.subr.mxu0 0.0
        %3525 = vmatpush1.xpose.msra.mxu0 0.0
        %3526 = vmatprep.subr.mxu0 0.0
        %3527 = vmatpush1.xpose.msra.mxu0 0.0
        %3528 = vmatprep.subr.mxu0 0.0
        %3529 = vmatpush1.xpose.msra.mxu0 0.0
        %3530 = vmatprep.subr.mxu0 0.0
        %3531 = vmatpush1.xpose.msra.mxu0 0.0
        %3532 = vmatprep.subr.mxu0 0.0
        %3533 = vmatpush1.xpose.msra.mxu0 0.0
        %3534 = vmatprep.subr.mxu0 0.0
        %3535 = vmatpush1.xpose.msra.mxu0 0.0
        %3536 = vmatprep.subr.mxu0 0.0
        %3537 = vmatpush1.xpose.msra.mxu0 0.0
        %3538 = vmatprep.subr.mxu0 0.0
        %3539 = vmatpush1.xpose.msra.mxu0 0.0
        %3540 = vmatprep.subr.mxu0 0.0
        %3541 = vmatpush1.xpose.msra.mxu0 0.0
        %3542 = vmatprep.subr.mxu0 0.0
        %3543 = vmatpush1.xpose.msra.mxu0 0.0
        %3544 = vmatprep.subr.mxu0 0.0
        %3545 = vmatpush1.xpose.msra.mxu0 0.0
        %3546 = vmatprep.subr.mxu0 0.0
        %3547 = vmatpush1.xpose.msra.mxu0 0.0
        %3548 = vmatprep.subr.mxu0 0.0
        %3549 = vmatpush1.xpose.msra.mxu0 0.0
        %3550 = vmatprep.subr.mxu0 0.0
        %3551 = vmatpush1.xpose.msra.mxu0 0.0
        %3552 = vmatprep.subr.mxu0 0.0
        %3553 = vmatpush1.xpose.msra.mxu0 0.0
        %3554 = vmatprep.subr.mxu0 0.0
        %3555 = vmatpush1.xpose.msra.mxu0 0.0
        %3556 = vmatprep.subr.mxu0 0.0
        %3557 = vmatpush1.xpose.msra.mxu0 0.0
        %3558 = vmatprep.subr.mxu0 0.0
        %3559 = vmatpush1.xpose.msra.mxu0 0.0
        %3560 = vmatprep.subr.mxu0 0.0
        %3561 = vmatpush1.xpose.msra.mxu0 0.0
        %3562 = vmatprep.subr.mxu0 0.0
        %3563 = vmatpush1.xpose.msra.mxu0 0.0
        %3564 = vmatprep.subr.mxu0 0.0
        %3565 = vmatpush1.xpose.msra.mxu0 0.0
        %3566 = vmatprep.subr.mxu0 0.0
        %3567 = vmatpush1.xpose.msra.mxu0 0.0
        %3568 = vmatprep.subr.mxu0 0.0
        %3569 = vmatpush1.xpose.msra.mxu0 0.0
        %3570 = vmatprep.subr.mxu0 0.0
        %3571 = vmatpush1.xpose.msra.mxu0 0.0
        %3572 = vmatprep.mubr.f32.mxu0 0.0
        %3573 = vmatmul.mubr.f32.gmra.mrb[0].mxu0 %v1744
        %v3574 = vpop.f32.mrb[0].mxu0
        %v3575 = vadd.f32 %v971, %v3574
        %v3576 = vpop.f32.mrb[0].mxu0
        %3577 = vmatprep.mubr.f32.mxu0 0.0
        %3578 = vmatmul.mubr.f32.gmra.mrb[0].mxu0 %v1746
        %v3579 = vpop.f32.mrb[0].mxu0
        %v3580 = vadd.f32 %v972, %v3579
        %v3581 = vpop.f32.mrb[0].mxu0
        %3582 = vdwg.mxu0
        %3583 = vrot.lane.b32.xlu0 %v1218, 120
        %v3584 = vpop.permute.xlu0 %3583
        %3585 = vrot.lane.b32.xlu0 %v1219, 120
        %v3586 = vpop.permute.xlu0 %3585
        %v3587 = vsel %vm1081, %v3584, 0
        %v3589 = vsel %vm1081, %v3586, 0
        %3591 = vmatprep.subr.mxu0 0.0
        %3592 = vmatpush1.xpose.msra.mxu0 %v3587
        %3593 = vmatprep.subr.mxu0 0.0
        %3594 = vmatpush1.xpose.msra.mxu0 %v3589
        %3595 = vmatprep.subr.mxu0 0.0
        %3596 = vmatpush1.xpose.msra.mxu0 0.0
        %3597 = vmatprep.subr.mxu0 0.0
        %3598 = vmatpush1.xpose.msra.mxu0 0.0
        %3599 = vmatprep.subr.mxu0 0.0
        %3600 = vmatpush1.xpose.msra.mxu0 0.0
        %3601 = vmatprep.subr.mxu0 0.0
        %3602 = vmatpush1.xpose.msra.mxu0 0.0
        %3603 = vmatprep.subr.mxu0 0.0
        %3604 = vmatpush1.xpose.msra.mxu0 0.0
        %3605 = vmatprep.subr.mxu0 0.0
        %3606 = vmatpush1.xpose.msra.mxu0 0.0
        %3607 = vmatprep.subr.mxu0 0.0
        %3608 = vmatpush1.xpose.msra.mxu0 0.0
        %3609 = vmatprep.subr.mxu0 0.0
        %3610 = vmatpush1.xpose.msra.mxu0 0.0
        %3611 = vmatprep.subr.mxu0 0.0
        %3612 = vmatpush1.xpose.msra.mxu0 0.0
        %3613 = vmatprep.subr.mxu0 0.0
        %3614 = vmatpush1.xpose.msra.mxu0 0.0
        %3615 = vmatprep.subr.mxu0 0.0
        %3616 = vmatpush1.xpose.msra.mxu0 0.0
        %3617 = vmatprep.subr.mxu0 0.0
        %3618 = vmatpush1.xpose.msra.mxu0 0.0
        %3619 = vmatprep.subr.mxu0 0.0
        %3620 = vmatpush1.xpose.msra.mxu0 0.0
        %3621 = vmatprep.subr.mxu0 0.0
        %3622 = vmatpush1.xpose.msra.mxu0 0.0
        %3623 = vmatprep.subr.mxu0 0.0
        %3624 = vmatpush1.xpose.msra.mxu0 0.0
        %3625 = vmatprep.subr.mxu0 0.0
        %3626 = vmatpush1.xpose.msra.mxu0 0.0
        %3627 = vmatprep.subr.mxu0 0.0
        %3628 = vmatpush1.xpose.msra.mxu0 0.0
        %3629 = vmatprep.subr.mxu0 0.0
        %3630 = vmatpush1.xpose.msra.mxu0 0.0
        %3631 = vmatprep.subr.mxu0 0.0
        %3632 = vmatpush1.xpose.msra.mxu0 0.0
        %3633 = vmatprep.subr.mxu0 0.0
        %3634 = vmatpush1.xpose.msra.mxu0 0.0
        %3635 = vmatprep.subr.mxu0 0.0
        %3636 = vmatpush1.xpose.msra.mxu0 0.0
        %3637 = vmatprep.subr.mxu0 0.0
        %3638 = vmatpush1.xpose.msra.mxu0 0.0
        %3639 = vmatprep.subr.mxu0 0.0
        %3640 = vmatpush1.xpose.msra.mxu0 0.0
        %3641 = vmatprep.subr.mxu0 0.0
        %3642 = vmatpush1.xpose.msra.mxu0 0.0
        %3643 = vmatprep.subr.mxu0 0.0
        %3644 = vmatpush1.xpose.msra.mxu0 0.0
        %3645 = vmatprep.subr.mxu0 0.0
        %3646 = vmatpush1.xpose.msra.mxu0 0.0
        %3647 = vmatprep.subr.mxu0 0.0
        %3648 = vmatpush1.xpose.msra.mxu0 0.0
        %3649 = vmatprep.subr.mxu0 0.0
        %3650 = vmatpush1.xpose.msra.mxu0 0.0
        %3651 = vmatprep.subr.mxu0 0.0
        %3652 = vmatpush1.xpose.msra.mxu0 0.0
        %3653 = vmatprep.subr.mxu0 0.0
        %3654 = vmatpush1.xpose.msra.mxu0 0.0
        %3655 = vmatprep.mubr.f32.mxu0 0.0
        %3656 = vmatmul.mubr.f32.gmra.mrb[0].mxu0 %v1835
        %v3657 = vpop.f32.mrb[0].mxu0
        %v3658 = vadd.f32 %v971, %v3657
        %v3659 = vpop.f32.mrb[0].mxu0
        %3660 = vmatprep.mubr.f32.mxu0 0.0
        %3661 = vmatmul.mubr.f32.gmra.mrb[0].mxu0 %v1837
        %v3662 = vpop.f32.mrb[0].mxu0
        %v3663 = vadd.f32 %v972, %v3662
        %v3664 = vpop.f32.mrb[0].mxu0
        %3665 = vdwg.mxu0
        %v3666 = vsel %vm1086, %v3575, -inf
        %3667 = vmax.xlane.f32.xlu0 %v3666
        %v3668 = vpop.xlane.xlu0 %3667
        %v3669 = vsel %vm1086, %v3580, -inf
        %3670 = vmax.xlane.f32.xlu0 %v3669
        %v3671 = vpop.xlane.xlu0 %3670
        %v3672 = vsel %vm1086, %v3658, -inf
        %3673 = vmax.xlane.f32.xlu0 %v3672
        %v3674 = vpop.xlane.xlu0 %3673
        %v3675 = vsel %vm1086, %v3663, -inf
        %3676 = vmax.xlane.f32.xlu0 %v3675
        %v3677 = vpop.xlane.xlu0 %3676
        %v3678 = vsub.f32 %v3575, %v3668
        %v3679 = vsub.f32 %v3580, %v3671
        %v3680 = vsub.f32 %v3658, %v3674
        %v3681 = vsub.f32 %v3663, %v3677
        %v3682 = vmul.f32 %v3678, 1.442695
        %v3683 = vpow.pop %v3682
        %v3684 = vmul.f32 %v3679, 1.442695
        %v3685 = vpow.pop %v3684
        %v3686 = vmul.f32 %v3680, 1.442695
        %v3687 = vpow.pop %v3686
        %v3688 = vmul.f32 %v3681, 1.442695
        %v3689 = vpow.pop %v3688
        %3690 = vrot.lane.b32.xlu0 %v735, 88
        %v3691 = vpop.permute.xlu0 %3690
        %3692 = vrot.lane.b32.xlu0 %v740, 88
        %v3693 = vpop.permute.xlu0 %3692
        %v3697 = vsel %vm1086, %v3683, 0
        %v3700 = vsel %vm1086, %v3685, 0
        %3702 = vmatprep.subr.mxu0 0.0
        %3703 = vmatpush1.msra.mxu0 %v3691
        %3704 = vmatprep.subr.mxu0 0.0
        %3705 = vmatpush1.msra.mxu0 %v3693
        %3706 = vmatprep.subr.mxu0 0.0
        %3707 = vmatpush1.msra.mxu0 0.0
        %3708 = vmatprep.subr.mxu0 0.0
        %3709 = vmatpush1.msra.mxu0 0.0
        %3710 = vmatprep.subr.mxu0 0.0
        %3711 = vmatpush1.msra.mxu0 0.0
        %3712 = vmatprep.subr.mxu0 0.0
        %3713 = vmatpush1.msra.mxu0 0.0
        %3714 = vmatprep.subr.mxu0 0.0
        %3715 = vmatpush1.msra.mxu0 0.0
        %3716 = vmatprep.subr.mxu0 0.0
        %3717 = vmatpush1.msra.mxu0 0.0
        %3718 = vmatprep.subr.mxu0 0.0
        %3719 = vmatpush1.msra.mxu0 0.0
        %3720 = vmatprep.subr.mxu0 0.0
        %3721 = vmatpush1.msra.mxu0 0.0
        %3722 = vmatprep.subr.mxu0 0.0
        %3723 = vmatpush1.msra.mxu0 0.0
        %3724 = vmatprep.subr.mxu0 0.0
        %3725 = vmatpush1.msra.mxu0 0.0
        %3726 = vmatprep.subr.mxu0 0.0
        %3727 = vmatpush1.msra.mxu0 0.0
        %3728 = vmatprep.subr.mxu0 0.0
        %3729 = vmatpush1.msra.mxu0 0.0
        %3730 = vmatprep.subr.mxu0 0.0
        %3731 = vmatpush1.msra.mxu0 0.0
        %3732 = vmatprep.subr.mxu0 0.0
        %3733 = vmatpush1.msra.mxu0 0.0
        %3734 = vmatprep.subr.mxu0 0.0
        %3735 = vmatpush1.msra.mxu0 0.0
        %3736 = vmatprep.subr.mxu0 0.0
        %3737 = vmatpush1.msra.mxu0 0.0
        %3738 = vmatprep.subr.mxu0 0.0
        %3739 = vmatpush1.msra.mxu0 0.0
        %3740 = vmatprep.subr.mxu0 0.0
        %3741 = vmatpush1.msra.mxu0 0.0
        %3742 = vmatprep.subr.mxu0 0.0
        %3743 = vmatpush1.msra.mxu0 0.0
        %3744 = vmatprep.subr.mxu0 0.0
        %3745 = vmatpush1.msra.mxu0 0.0
        %3746 = vmatprep.subr.mxu0 0.0
        %3747 = vmatpush1.msra.mxu0 0.0
        %3748 = vmatprep.subr.mxu0 0.0
        %3749 = vmatpush1.msra.mxu0 0.0
        %3750 = vmatprep.subr.mxu0 0.0
        %3751 = vmatpush1.msra.mxu0 0.0
        %3752 = vmatprep.subr.mxu0 0.0
        %3753 = vmatpush1.msra.mxu0 0.0
        %3754 = vmatprep.subr.mxu0 0.0
        %3755 = vmatpush1.msra.mxu0 0.0
        %3756 = vmatprep.subr.mxu0 0.0
        %3757 = vmatpush1.msra.mxu0 0.0
        %3758 = vmatprep.subr.mxu0 0.0
        %3759 = vmatpush1.msra.mxu0 0.0
        %3760 = vmatprep.subr.mxu0 0.0
        %3761 = vmatpush1.msra.mxu0 0.0
        %3762 = vmatprep.subr.mxu0 0.0
        %3763 = vmatpush1.msra.mxu0 0.0
        %3764 = vmatprep.subr.mxu0 0.0
        %3765 = vmatpush1.msra.mxu0 0.0
        %3766 = vmatprep.mubr.f32.mxu0 0.0
        %3767 = vmatmul.mubr.f32.gmra.mrb[0].mxu0 %v3697
        %v3768 = vpop.f32.mrb[0].mxu0
        %v3769 = vadd.f32 0.0, %v3768
        %v3770 = vpop.f32.mrb[0].mxu0
        %3771 = vmatprep.mubr.f32.mxu0 0.0
        %3772 = vmatmul.mubr.f32.gmra.mrb[0].mxu0 %v3700
        %v3773 = vpop.f32.mrb[0].mxu0
        %v3774 = vadd.f32 0.0, %v3773
        %v3775 = vpop.f32.mrb[0].mxu0
        %3776 = vdwg.mxu0
        %3777 = vrot.lane.b32.xlu0 %v745, 88
        %v3778 = vpop.permute.xlu0 %3777
        %3779 = vrot.lane.b32.xlu0 %v750, 88
        %v3780 = vpop.permute.xlu0 %3779
        %v3784 = vsel %vm1086, %v3687, 0
        %v3787 = vsel %vm1086, %v3689, 0
        %3789 = vmatprep.subr.mxu0 0.0
        %3790 = vmatpush1.msra.mxu0 %v3778
        %3791 = vmatprep.subr.mxu0 0.0
        %3792 = vmatpush1.msra.mxu0 %v3780
        %3793 = vmatprep.subr.mxu0 0.0
        %3794 = vmatpush1.msra.mxu0 0.0
        %3795 = vmatprep.subr.mxu0 0.0
        %3796 = vmatpush1.msra.mxu0 0.0
        %3797 = vmatprep.subr.mxu0 0.0
        %3798 = vmatpush1.msra.mxu0 0.0
        %3799 = vmatprep.subr.mxu0 0.0
        %3800 = vmatpush1.msra.mxu0 0.0
        %3801 = vmatprep.subr.mxu0 0.0
        %3802 = vmatpush1.msra.mxu0 0.0
        %3803 = vmatprep.subr.mxu0 0.0
        %3804 = vmatpush1.msra.mxu0 0.0
        %3805 = vmatprep.subr.mxu0 0.0
        %3806 = vmatpush1.msra.mxu0 0.0
        %3807 = vmatprep.subr.mxu0 0.0
        %3808 = vmatpush1.msra.mxu0 0.0
        %3809 = vmatprep.subr.mxu0 0.0
        %3810 = vmatpush1.msra.mxu0 0.0
        %3811 = vmatprep.subr.mxu0 0.0
        %3812 = vmatpush1.msra.mxu0 0.0
        %3813 = vmatprep.subr.mxu0 0.0
        %3814 = vmatpush1.msra.mxu0 0.0
        %3815 = vmatprep.subr.mxu0 0.0
        %3816 = vmatpush1.msra.mxu0 0.0
        %3817 = vmatprep.subr.mxu0 0.0
        %3818 = vmatpush1.msra.mxu0 0.0
        %3819 = vmatprep.subr.mxu0 0.0
        %3820 = vmatpush1.msra.mxu0 0.0
        %3821 = vmatprep.subr.mxu0 0.0
        %3822 = vmatpush1.msra.mxu0 0.0
        %3823 = vmatprep.subr.mxu0 0.0
        %3824 = vmatpush1.msra.mxu0 0.0
        %3825 = vmatprep.subr.mxu0 0.0
        %3826 = vmatpush1.msra.mxu0 0.0
        %3827 = vmatprep.subr.mxu0 0.0
        %3828 = vmatpush1.msra.mxu0 0.0
        %3829 = vmatprep.subr.mxu0 0.0
        %3830 = vmatpush1.msra.mxu0 0.0
        %3831 = vmatprep.subr.mxu0 0.0
        %3832 = vmatpush1.msra.mxu0 0.0
        %3833 = vmatprep.subr.mxu0 0.0
        %3834 = vmatpush1.msra.mxu0 0.0
        %3835 = vmatprep.subr.mxu0 0.0
        %3836 = vmatpush1.msra.mxu0 0.0
        %3837 = vmatprep.subr.mxu0 0.0
        %3838 = vmatpush1.msra.mxu0 0.0
        %3839 = vmatprep.subr.mxu0 0.0
        %3840 = vmatpush1.msra.mxu0 0.0
        %3841 = vmatprep.subr.mxu0 0.0
        %3842 = vmatpush1.msra.mxu0 0.0
        %3843 = vmatprep.subr.mxu0 0.0
        %3844 = vmatpush1.msra.mxu0 0.0
        %3845 = vmatprep.subr.mxu0 0.0
        %3846 = vmatpush1.msra.mxu0 0.0
        %3847 = vmatprep.subr.mxu0 0.0
        %3848 = vmatpush1.msra.mxu0 0.0
        %3849 = vmatprep.subr.mxu0 0.0
        %3850 = vmatpush1.msra.mxu0 0.0
        %3851 = vmatprep.subr.mxu0 0.0
        %3852 = vmatpush1.msra.mxu0 0.0
        %3853 = vmatprep.mubr.f32.mxu0 0.0
        %3854 = vmatmul.mubr.f32.gmra.mrb[0].mxu0 %v3784
        %v3855 = vpop.f32.mrb[0].mxu0
        %v3856 = vadd.f32 0.0, %v3855
        %v3857 = vpop.f32.mrb[0].mxu0
        %3858 = vmatprep.mubr.f32.mxu0 0.0
        %3859 = vmatmul.mubr.f32.gmra.mrb[0].mxu0 %v3787
        %v3860 = vpop.f32.mrb[0].mxu0
        %v3861 = vadd.f32 0.0, %v3860
        %v3862 = vpop.f32.mrb[0].mxu0
        %3863 = vdwg.mxu0
        %v3864 = vsel %vm1086, %v3683, 0.0
        %3865 = vadd.xlane.f32.xlu0 %v3864
        %v3866 = vpop.xlane.xlu0 %3865
        %v3867 = vsel %vm1086, %v3685, 0.0
        %3868 = vadd.xlane.f32.xlu0 %v3867
        %v3869 = vpop.xlane.xlu0 %3868
        %v3870 = vsel %vm1086, %v3687, 0.0
        %3871 = vadd.xlane.f32.xlu0 %v3870
        %v3872 = vpop.xlane.xlu0 %3871
        %v3873 = vsel %vm1086, %v3689, 0.0
        %3874 = vadd.xlane.f32.xlu0 %v3873
        %v3875 = vpop.xlane.xlu0 %3874
        %v3876 = vrcp.pop %v3866
        %v3877 = vrcp.pop %v3869
        %v3878 = vrcp.pop %v3872
        %v3879 = vrcp.pop %v3875
        %v3880 = vmul.f32 %v3769, %v3876
        %v3881 = vmul.f32 %v3774, %v3877
        %v3882 = vmul.f32 %v3856, %v3878
        %v3883 = vmul.f32 %v3861, %v3879
        %3884 = vrot.lane.b32.xlu0 %v1216, 112
        %v3885 = vpop.permute.xlu0 %3884
        %3886 = vrot.lane.b32.xlu0 %v1217, 112
        %v3887 = vpop.permute.xlu0 %3886
        %v3888 = vsel %vm1081, %v3885, 0
        %v3890 = vsel %vm1081, %v3887, 0
        %3892 = vmatprep.subr.mxu0 0.0
        %3893 = vmatpush1.xpose.msra.mxu0 %v3888
        %3894 = vmatprep.subr.mxu0 0.0
        %3895 = vmatpush1.xpose.msra.mxu0 %v3890
        %3896 = vmatprep.subr.mxu0 0.0
        %3897 = vmatpush1.xpose.msra.mxu0 0.0
        %3898 = vmatprep.subr.mxu0 0.0
        %3899 = vmatpush1.xpose.msra.mxu0 0.0
        %3900 = vmatprep.subr.mxu0 0.0
        %3901 = vmatpush1.xpose.msra.mxu0 0.0
        %3902 = vmatprep.subr.mxu0 0.0
        %3903 = vmatpush1.xpose.msra.mxu0 0.0
        %3904 = vmatprep.subr.mxu0 0.0
        %3905 = vmatpush1.xpose.msra.mxu0 0.0
        %3906 = vmatprep.subr.mxu0 0.0
        %3907 = vmatpush1.xpose.msra.mxu0 0.0
        %3908 = vmatprep.subr.mxu0 0.0
        %3909 = vmatpush1.xpose.msra.mxu0 0.0
        %3910 = vmatprep.subr.mxu0 0.0
        %3911 = vmatpush1.xpose.msra.mxu0 0.0
        %3912 = vmatprep.subr.mxu0 0.0
        %3913 = vmatpush1.xpose.msra.mxu0 0.0
        %3914 = vmatprep.subr.mxu0 0.0
        %3915 = vmatpush1.xpose.msra.mxu0 0.0
        %3916 = vmatprep.subr.mxu0 0.0
        %3917 = vmatpush1.xpose.msra.mxu0 0.0
        %3918 = vmatprep.subr.mxu0 0.0
        %3919 = vmatpush1.xpose.msra.mxu0 0.0
        %3920 = vmatprep.subr.mxu0 0.0
        %3921 = vmatpush1.xpose.msra.mxu0 0.0
        %3922 = vmatprep.subr.mxu0 0.0
        %3923 = vmatpush1.xpose.msra.mxu0 0.0
        %3924 = vmatprep.subr.mxu0 0.0
        %3925 = vmatpush1.xpose.msra.mxu0 0.0
        %3926 = vmatprep.subr.mxu0 0.0
        %3927 = vmatpush1.xpose.msra.mxu0 0.0
        %3928 = vmatprep.subr.mxu0 0.0
        %3929 = vmatpush1.xpose.msra.mxu0 0.0
        %3930 = vmatprep.subr.mxu0 0.0
        %3931 = vmatpush1.xpose.msra.mxu0 0.0
        %3932 = vmatprep.subr.mxu0 0.0
        %3933 = vmatpush1.xpose.msra.mxu0 0.0
        %3934 = vmatprep.subr.mxu0 0.0
        %3935 = vmatpush1.xpose.msra.mxu0 0.0
        %3936 = vmatprep.subr.mxu0 0.0
        %3937 = vmatpush1.xpose.msra.mxu0 0.0
        %3938 = vmatprep.subr.mxu0 0.0
        %3939 = vmatpush1.xpose.msra.mxu0 0.0
        %3940 = vmatprep.subr.mxu0 0.0
        %3941 = vmatpush1.xpose.msra.mxu0 0.0
        %3942 = vmatprep.subr.mxu0 0.0
        %3943 = vmatpush1.xpose.msra.mxu0 0.0
        %3944 = vmatprep.subr.mxu0 0.0
        %3945 = vmatpush1.xpose.msra.mxu0 0.0
        %3946 = vmatprep.subr.mxu0 0.0
        %3947 = vmatpush1.xpose.msra.mxu0 0.0
        %3948 = vmatprep.subr.mxu0 0.0
        %3949 = vmatpush1.xpose.msra.mxu0 0.0
        %3950 = vmatprep.subr.mxu0 0.0
        %3951 = vmatpush1.xpose.msra.mxu0 0.0
        %3952 = vmatprep.subr.mxu0 0.0
        %3953 = vmatpush1.xpose.msra.mxu0 0.0
        %3954 = vmatprep.subr.mxu0 0.0
        %3955 = vmatpush1.xpose.msra.mxu0 0.0
        %3956 = vmatprep.mubr.f32.mxu0 0.0
        %3957 = vmatmul.mubr.f32.gmra.mrb[0].mxu0 %v2144
        %v3958 = vpop.f32.mrb[0].mxu0
        %v3959 = vadd.f32 %v973, %v3958
        %v3960 = vpop.f32.mrb[0].mxu0
        %3961 = vmatprep.mubr.f32.mxu0 0.0
        %3962 = vmatmul.mubr.f32.gmra.mrb[0].mxu0 %v2146
        %v3963 = vpop.f32.mrb[0].mxu0
        %v3964 = vadd.f32 %v974, %v3963
        %v3965 = vpop.f32.mrb[0].mxu0
        %3966 = vdwg.mxu0
        %3967 = vrot.lane.b32.xlu0 %v1218, 112
        %v3968 = vpop.permute.xlu0 %3967
        %3969 = vrot.lane.b32.xlu0 %v1219, 112
        %v3970 = vpop.permute.xlu0 %3969
        %v3971 = vsel %vm1081, %v3968, 0
        %v3973 = vsel %vm1081, %v3970, 0
        %3975 = vmatprep.subr.mxu0 0.0
        %3976 = vmatpush1.xpose.msra.mxu0 %v3971
        %3977 = vmatprep.subr.mxu0 0.0
        %3978 = vmatpush1.xpose.msra.mxu0 %v3973
        %3979 = vmatprep.subr.mxu0 0.0
        %3980 = vmatpush1.xpose.msra.mxu0 0.0
        %3981 = vmatprep.subr.mxu0 0.0
        %3982 = vmatpush1.xpose.msra.mxu0 0.0
        %3983 = vmatprep.subr.mxu0 0.0
        %3984 = vmatpush1.xpose.msra.mxu0 0.0
        %3985 = vmatprep.subr.mxu0 0.0
        %3986 = vmatpush1.xpose.msra.mxu0 0.0
        %3987 = vmatprep.subr.mxu0 0.0
        %3988 = vmatpush1.xpose.msra.mxu0 0.0
        %3989 = vmatprep.subr.mxu0 0.0
        %3990 = vmatpush1.xpose.msra.mxu0 0.0
        %3991 = vmatprep.subr.mxu0 0.0
        %3992 = vmatpush1.xpose.msra.mxu0 0.0
        %3993 = vmatprep.subr.mxu0 0.0
        %3994 = vmatpush1.xpose.msra.mxu0 0.0
        %3995 = vmatprep.subr.mxu0 0.0
        %3996 = vmatpush1.xpose.msra.mxu0 0.0
        %3997 = vmatprep.subr.mxu0 0.0
        %3998 = vmatpush1.xpose.msra.mxu0 0.0
        %3999 = vmatprep.subr.mxu0 0.0
        %4000 = vmatpush1.xpose.msra.mxu0 0.0
        %4001 = vmatprep.subr.mxu0 0.0
        %4002 = vmatpush1.xpose.msra.mxu0 0.0
        %4003 = vmatprep.subr.mxu0 0.0
        %4004 = vmatpush1.xpose.msra.mxu0 0.0
        %4005 = vmatprep.subr.mxu0 0.0
        %4006 = vmatpush1.xpose.msra.mxu0 0.0
        %4007 = vmatprep.subr.mxu0 0.0
        %4008 = vmatpush1.xpose.msra.mxu0 0.0
        %4009 = vmatprep.subr.mxu0 0.0
        %4010 = vmatpush1.xpose.msra.mxu0 0.0
        %4011 = vmatprep.subr.mxu0 0.0
        %4012 = vmatpush1.xpose.msra.mxu0 0.0
        %4013 = vmatprep.subr.mxu0 0.0
        %4014 = vmatpush1.xpose.msra.mxu0 0.0
        %4015 = vmatprep.subr.mxu0 0.0
        %4016 = vmatpush1.xpose.msra.mxu0 0.0
        %4017 = vmatprep.subr.mxu0 0.0
        %4018 = vmatpush1.xpose.msra.mxu0 0.0
        %4019 = vmatprep.subr.mxu0 0.0
        %4020 = vmatpush1.xpose.msra.mxu0 0.0
        %4021 = vmatprep.subr.mxu0 0.0
        %4022 = vmatpush1.xpose.msra.mxu0 0.0
        %4023 = vmatprep.subr.mxu0 0.0
        %4024 = vmatpush1.xpose.msra.mxu0 0.0
        %4025 = vmatprep.subr.mxu0 0.0
        %4026 = vmatpush1.xpose.msra.mxu0 0.0
        %4027 = vmatprep.subr.mxu0 0.0
        %4028 = vmatpush1.xpose.msra.mxu0 0.0
        %4029 = vmatprep.subr.mxu0 0.0
        %4030 = vmatpush1.xpose.msra.mxu0 0.0
        %4031 = vmatprep.subr.mxu0 0.0
        %4032 = vmatpush1.xpose.msra.mxu0 0.0
        %4033 = vmatprep.subr.mxu0 0.0
        %4034 = vmatpush1.xpose.msra.mxu0 0.0
        %4035 = vmatprep.subr.mxu0 0.0
        %4036 = vmatpush1.xpose.msra.mxu0 0.0
        %4037 = vmatprep.subr.mxu0 0.0
        %4038 = vmatpush1.xpose.msra.mxu0 0.0
        %4039 = vmatprep.mubr.f32.mxu0 0.0
        %4040 = vmatmul.mubr.f32.gmra.mrb[0].mxu0 %v2235
        %v4041 = vpop.f32.mrb[0].mxu0
        %v4042 = vadd.f32 %v973, %v4041
        %v4043 = vpop.f32.mrb[0].mxu0
        %4044 = vmatprep.mubr.f32.mxu0 0.0
        %4045 = vmatmul.mubr.f32.gmra.mrb[0].mxu0 %v2237
        %v4046 = vpop.f32.mrb[0].mxu0
        %v4047 = vadd.f32 %v974, %v4046
        %v4048 = vpop.f32.mrb[0].mxu0
        %4049 = vdwg.mxu0
        %v4050 = vsel %vm1086, %v3959, -inf
        %4051 = vmax.xlane.f32.xlu0 %v4050
        %v4052 = vpop.xlane.xlu0 %4051
        %v4053 = vsel %vm1086, %v3964, -inf
        %4054 = vmax.xlane.f32.xlu0 %v4053
        %v4055 = vpop.xlane.xlu0 %4054
        %v4056 = vsel %vm1086, %v4042, -inf
        %4057 = vmax.xlane.f32.xlu0 %v4056
        %v4058 = vpop.xlane.xlu0 %4057
        %v4059 = vsel %vm1086, %v4047, -inf
        %4060 = vmax.xlane.f32.xlu0 %v4059
        %v4061 = vpop.xlane.xlu0 %4060
        %v4062 = vsub.f32 %v3959, %v4052
        %v4063 = vsub.f32 %v3964, %v4055
        %v4064 = vsub.f32 %v4042, %v4058
        %v4065 = vsub.f32 %v4047, %v4061
        %v4066 = vmul.f32 %v4062, 1.442695
        %v4067 = vpow.pop %v4066
        %v4068 = vmul.f32 %v4063, 1.442695
        %v4069 = vpow.pop %v4068
        %v4070 = vmul.f32 %v4064, 1.442695
        %v4071 = vpow.pop %v4070
        %v4072 = vmul.f32 %v4065, 1.442695
        %v4073 = vpow.pop %v4072
        %4074 = vrot.lane.b32.xlu0 %v735, 80
        %v4075 = vpop.permute.xlu0 %4074
        %4076 = vrot.lane.b32.xlu0 %v740, 80
        %v4077 = vpop.permute.xlu0 %4076
        %v4081 = vsel %vm1086, %v4067, 0
        %v4084 = vsel %vm1086, %v4069, 0
        %4086 = vmatprep.subr.mxu0 0.0
        %4087 = vmatpush1.msra.mxu0 %v4075
        %4088 = vmatprep.subr.mxu0 0.0
        %4089 = vmatpush1.msra.mxu0 %v4077
        %4090 = vmatprep.subr.mxu0 0.0
        %4091 = vmatpush1.msra.mxu0 0.0
        %4092 = vmatprep.subr.mxu0 0.0
        %4093 = vmatpush1.msra.mxu0 0.0
        %4094 = vmatprep.subr.mxu0 0.0
        %4095 = vmatpush1.msra.mxu0 0.0
        %4096 = vmatprep.subr.mxu0 0.0
        %4097 = vmatpush1.msra.mxu0 0.0
        %4098 = vmatprep.subr.mxu0 0.0
        %4099 = vmatpush1.msra.mxu0 0.0
        %4100 = vmatprep.subr.mxu0 0.0
        %4101 = vmatpush1.msra.mxu0 0.0
        %4102 = vmatprep.subr.mxu0 0.0
        %4103 = vmatpush1.msra.mxu0 0.0
        %4104 = vmatprep.subr.mxu0 0.0
        %4105 = vmatpush1.msra.mxu0 0.0
        %4106 = vmatprep.subr.mxu0 0.0
        %4107 = vmatpush1.msra.mxu0 0.0
        %4108 = vmatprep.subr.mxu0 0.0
        %4109 = vmatpush1.msra.mxu0 0.0
        %4110 = vmatprep.subr.mxu0 0.0
        %4111 = vmatpush1.msra.mxu0 0.0
        %4112 = vmatprep.subr.mxu0 0.0
        %4113 = vmatpush1.msra.mxu0 0.0
        %4114 = vmatprep.subr.mxu0 0.0
        %4115 = vmatpush1.msra.mxu0 0.0
        %4116 = vmatprep.subr.mxu0 0.0
        %4117 = vmatpush1.msra.mxu0 0.0
        %4118 = vmatprep.subr.mxu0 0.0
        %4119 = vmatpush1.msra.mxu0 0.0
        %4120 = vmatprep.subr.mxu0 0.0
        %4121 = vmatpush1.msra.mxu0 0.0
        %4122 = vmatprep.subr.mxu0 0.0
        %4123 = vmatpush1.msra.mxu0 0.0
        %4124 = vmatprep.subr.mxu0 0.0
        %4125 = vmatpush1.msra.mxu0 0.0
        %4126 = vmatprep.subr.mxu0 0.0
        %4127 = vmatpush1.msra.mxu0 0.0
        %4128 = vmatprep.subr.mxu0 0.0
        %4129 = vmatpush1.msra.mxu0 0.0
        %4130 = vmatprep.subr.mxu0 0.0
        %4131 = vmatpush1.msra.mxu0 0.0
        %4132 = vmatprep.subr.mxu0 0.0
        %4133 = vmatpush1.msra.mxu0 0.0
        %4134 = vmatprep.subr.mxu0 0.0
        %4135 = vmatpush1.msra.mxu0 0.0
        %4136 = vmatprep.subr.mxu0 0.0
        %4137 = vmatpush1.msra.mxu0 0.0
        %4138 = vmatprep.subr.mxu0 0.0
        %4139 = vmatpush1.msra.mxu0 0.0
        %4140 = vmatprep.subr.mxu0 0.0
        %4141 = vmatpush1.msra.mxu0 0.0
        %4142 = vmatprep.subr.mxu0 0.0
        %4143 = vmatpush1.msra.mxu0 0.0
        %4144 = vmatprep.subr.mxu0 0.0
        %4145 = vmatpush1.msra.mxu0 0.0
        %4146 = vmatprep.subr.mxu0 0.0
        %4147 = vmatpush1.msra.mxu0 0.0
        %4148 = vmatprep.subr.mxu0 0.0
        %4149 = vmatpush1.msra.mxu0 0.0
        %4150 = vmatprep.mubr.f32.mxu0 0.0
        %4151 = vmatmul.mubr.f32.gmra.mrb[0].mxu0 %v4081
        %v4152 = vpop.f32.mrb[0].mxu0
        %v4153 = vadd.f32 0.0, %v4152
        %v4154 = vpop.f32.mrb[0].mxu0
        %4155 = vmatprep.mubr.f32.mxu0 0.0
        %4156 = vmatmul.mubr.f32.gmra.mrb[0].mxu0 %v4084
        %v4157 = vpop.f32.mrb[0].mxu0
        %v4158 = vadd.f32 0.0, %v4157
        %v4159 = vpop.f32.mrb[0].mxu0
        %4160 = vdwg.mxu0
        %4161 = vrot.lane.b32.xlu0 %v745, 80
        %v4162 = vpop.permute.xlu0 %4161
        %4163 = vrot.lane.b32.xlu0 %v750, 80
        %v4164 = vpop.permute.xlu0 %4163
        %v4168 = vsel %vm1086, %v4071, 0
        %v4171 = vsel %vm1086, %v4073, 0
        %4173 = vmatprep.subr.mxu0 0.0
        %4174 = vmatpush1.msra.mxu0 %v4162
        %4175 = vmatprep.subr.mxu0 0.0
        %4176 = vmatpush1.msra.mxu0 %v4164
        %4177 = vmatprep.subr.mxu0 0.0
        %4178 = vmatpush1.msra.mxu0 0.0
        %4179 = vmatprep.subr.mxu0 0.0
        %4180 = vmatpush1.msra.mxu0 0.0
        %4181 = vmatprep.subr.mxu0 0.0
        %4182 = vmatpush1.msra.mxu0 0.0
        %4183 = vmatprep.subr.mxu0 0.0
        %4184 = vmatpush1.msra.mxu0 0.0
        %4185 = vmatprep.subr.mxu0 0.0
        %4186 = vmatpush1.msra.mxu0 0.0
        %4187 = vmatprep.subr.mxu0 0.0
        %4188 = vmatpush1.msra.mxu0 0.0
        %4189 = vmatprep.subr.mxu0 0.0
        %4190 = vmatpush1.msra.mxu0 0.0
        %4191 = vmatprep.subr.mxu0 0.0
        %4192 = vmatpush1.msra.mxu0 0.0
        %4193 = vmatprep.subr.mxu0 0.0
        %4194 = vmatpush1.msra.mxu0 0.0
        %4195 = vmatprep.subr.mxu0 0.0
        %4196 = vmatpush1.msra.mxu0 0.0
        %4197 = vmatprep.subr.mxu0 0.0
        %4198 = vmatpush1.msra.mxu0 0.0
        %4199 = vmatprep.subr.mxu0 0.0
        %4200 = vmatpush1.msra.mxu0 0.0
        %4201 = vmatprep.subr.mxu0 0.0
        %4202 = vmatpush1.msra.mxu0 0.0
        %4203 = vmatprep.subr.mxu0 0.0
        %4204 = vmatpush1.msra.mxu0 0.0
        %4205 = vmatprep.subr.mxu0 0.0
        %4206 = vmatpush1.msra.mxu0 0.0
        %4207 = vmatprep.subr.mxu0 0.0
        %4208 = vmatpush1.msra.mxu0 0.0
        %4209 = vmatprep.subr.mxu0 0.0
        %4210 = vmatpush1.msra.mxu0 0.0
        %4211 = vmatprep.subr.mxu0 0.0
        %4212 = vmatpush1.msra.mxu0 0.0
        %4213 = vmatprep.subr.mxu0 0.0
        %4214 = vmatpush1.msra.mxu0 0.0
        %4215 = vmatprep.subr.mxu0 0.0
        %4216 = vmatpush1.msra.mxu0 0.0
        %4217 = vmatprep.subr.mxu0 0.0
        %4218 = vmatpush1.msra.mxu0 0.0
        %4219 = vmatprep.subr.mxu0 0.0
        %4220 = vmatpush1.msra.mxu0 0.0
        %4221 = vmatprep.subr.mxu0 0.0
        %4222 = vmatpush1.msra.mxu0 0.0
        %4223 = vmatprep.subr.mxu0 0.0
        %4224 = vmatpush1.msra.mxu0 0.0
        %4225 = vmatprep.subr.mxu0 0.0
        %4226 = vmatpush1.msra.mxu0 0.0
        %4227 = vmatprep.subr.mxu0 0.0
        %4228 = vmatpush1.msra.mxu0 0.0
        %4229 = vmatprep.subr.mxu0 0.0
        %4230 = vmatpush1.msra.mxu0 0.0
        %4231 = vmatprep.subr.mxu0 0.0
        %4232 = vmatpush1.msra.mxu0 0.0
        %4233 = vmatprep.subr.mxu0 0.0
        %4234 = vmatpush1.msra.mxu0 0.0
        %4235 = vmatprep.subr.mxu0 0.0
        %4236 = vmatpush1.msra.mxu0 0.0
        %4237 = vmatprep.mubr.f32.mxu0 0.0
        %4238 = vmatmul.mubr.f32.gmra.mrb[0].mxu0 %v4168
        %v4239 = vpop.f32.mrb[0].mxu0
        %v4240 = vadd.f32 0.0, %v4239
        %v4241 = vpop.f32.mrb[0].mxu0
        %4242 = vmatprep.mubr.f32.mxu0 0.0
        %4243 = vmatmul.mubr.f32.gmra.mrb[0].mxu0 %v4171
        %v4244 = vpop.f32.mrb[0].mxu0
        %v4245 = vadd.f32 0.0, %v4244
        %v4246 = vpop.f32.mrb[0].mxu0
        %4247 = vdwg.mxu0
        %v4248 = vsel %vm1086, %v4067, 0.0
        %4249 = vadd.xlane.f32.xlu0 %v4248
        %v4250 = vpop.xlane.xlu0 %4249
        %v4251 = vsel %vm1086, %v4069, 0.0
        %4252 = vadd.xlane.f32.xlu0 %v4251
        %v4253 = vpop.xlane.xlu0 %4252
        %v4254 = vsel %vm1086, %v4071, 0.0
        %4255 = vadd.xlane.f32.xlu0 %v4254
        %v4256 = vpop.xlane.xlu0 %4255
        %v4257 = vsel %vm1086, %v4073, 0.0
        %4258 = vadd.xlane.f32.xlu0 %v4257
        %v4259 = vpop.xlane.xlu0 %4258
        %v4260 = vrcp.pop %v4250
        %v4261 = vrcp.pop %v4253
        %v4262 = vrcp.pop %v4256
        %v4263 = vrcp.pop %v4259
        %v4264 = vmul.f32 %v4153, %v4260
        %v4265 = vmul.f32 %v4158, %v4261
        %v4266 = vmul.f32 %v4240, %v4262
        %v4267 = vmul.f32 %v4245, %v4263
        %4268 = vrot.lane.b32.xlu0 %v1216, 104
        %v4269 = vpop.permute.xlu0 %4268
        %4270 = vrot.lane.b32.xlu0 %v1217, 104
        %v4271 = vpop.permute.xlu0 %4270
        %v4272 = vsel %vm1081, %v4269, 0
        %v4274 = vsel %vm1081, %v4271, 0
        %4276 = vmatprep.subr.mxu0 0.0
        %4277 = vmatpush1.xpose.msra.mxu0 %v4272
        %4278 = vmatprep.subr.mxu0 0.0
        %4279 = vmatpush1.xpose.msra.mxu0 %v4274
        %4280 = vmatprep.subr.mxu0 0.0
        %4281 = vmatpush1.xpose.msra.mxu0 0.0
        %4282 = vmatprep.subr.mxu0 0.0
        %4283 = vmatpush1.xpose.msra.mxu0 0.0
        %4284 = vmatprep.subr.mxu0 0.0
        %4285 = vmatpush1.xpose.msra.mxu0 0.0
        %4286 = vmatprep.subr.mxu0 0.0
        %4287 = vmatpush1.xpose.msra.mxu0 0.0
        %4288 = vmatprep.subr.mxu0 0.0
        %4289 = vmatpush1.xpose.msra.mxu0 0.0
        %4290 = vmatprep.subr.mxu0 0.0
        %4291 = vmatpush1.xpose.msra.mxu0 0.0
        %4292 = vmatprep.subr.mxu0 0.0
        %4293 = vmatpush1.xpose.msra.mxu0 0.0
        %4294 = vmatprep.subr.mxu0 0.0
        %4295 = vmatpush1.xpose.msra.mxu0 0.0
        %4296 = vmatprep.subr.mxu0 0.0
        %4297 = vmatpush1.xpose.msra.mxu0 0.0
        %4298 = vmatprep.subr.mxu0 0.0
        %4299 = vmatpush1.xpose.msra.mxu0 0.0
        %4300 = vmatprep.subr.mxu0 0.0
        %4301 = vmatpush1.xpose.msra.mxu0 0.0
        %4302 = vmatprep.subr.mxu0 0.0
        %4303 = vmatpush1.xpose.msra.mxu0 0.0
        %4304 = vmatprep.subr.mxu0 0.0
        %4305 = vmatpush1.xpose.msra.mxu0 0.0
        %4306 = vmatprep.subr.mxu0 0.0
        %4307 = vmatpush1.xpose.msra.mxu0 0.0
        %4308 = vmatprep.subr.mxu0 0.0
        %4309 = vmatpush1.xpose.msra.mxu0 0.0
        %4310 = vmatprep.subr.mxu0 0.0
        %4311 = vmatpush1.xpose.msra.mxu0 0.0
        %4312 = vmatprep.subr.mxu0 0.0
        %4313 = vmatpush1.xpose.msra.mxu0 0.0
        %4314 = vmatprep.subr.mxu0 0.0
        %4315 = vmatpush1.xpose.msra.mxu0 0.0
        %4316 = vmatprep.subr.mxu0 0.0
        %4317 = vmatpush1.xpose.msra.mxu0 0.0
        %4318 = vmatprep.subr.mxu0 0.0
        %4319 = vmatpush1.xpose.msra.mxu0 0.0
        %4320 = vmatprep.subr.mxu0 0.0
        %4321 = vmatpush1.xpose.msra.mxu0 0.0
        %4322 = vmatprep.subr.mxu0 0.0
        %4323 = vmatpush1.xpose.msra.mxu0 0.0
        %4324 = vmatprep.subr.mxu0 0.0
        %4325 = vmatpush1.xpose.msra.mxu0 0.0
        %4326 = vmatprep.subr.mxu0 0.0
        %4327 = vmatpush1.xpose.msra.mxu0 0.0
        %4328 = vmatprep.subr.mxu0 0.0
        %4329 = vmatpush1.xpose.msra.mxu0 0.0
        %4330 = vmatprep.subr.mxu0 0.0
        %4331 = vmatpush1.xpose.msra.mxu0 0.0
        %4332 = vmatprep.subr.mxu0 0.0
        %4333 = vmatpush1.xpose.msra.mxu0 0.0
        %4334 = vmatprep.subr.mxu0 0.0
        %4335 = vmatpush1.xpose.msra.mxu0 0.0
        %4336 = vmatprep.subr.mxu0 0.0
        %4337 = vmatpush1.xpose.msra.mxu0 0.0
        %4338 = vmatprep.subr.mxu0 0.0
        %4339 = vmatpush1.xpose.msra.mxu0 0.0
        %4340 = vmatprep.mubr.f32.mxu0 0.0
        %4341 = vmatmul.mubr.f32.gmra.mrb[0].mxu0 %v2544
        %v4342 = vpop.f32.mrb[0].mxu0
        %v4343 = vadd.f32 %v975, %v4342
        %v4344 = vpop.f32.mrb[0].mxu0
        %4345 = vmatprep.mubr.f32.mxu0 0.0
        %4346 = vmatmul.mubr.f32.gmra.mrb[0].mxu0 %v2546
        %v4347 = vpop.f32.mrb[0].mxu0
        %v4348 = vadd.f32 %v976, %v4347
        %v4349 = vpop.f32.mrb[0].mxu0
        %4350 = vdwg.mxu0
        %4351 = vrot.lane.b32.xlu0 %v1218, 104
        %v4352 = vpop.permute.xlu0 %4351
        %4353 = vrot.lane.b32.xlu0 %v1219, 104
        %v4354 = vpop.permute.xlu0 %4353
        %v4355 = vsel %vm1081, %v4352, 0
        %v4357 = vsel %vm1081, %v4354, 0
        %4359 = vmatprep.subr.mxu0 0.0
        %4360 = vmatpush1.xpose.msra.mxu0 %v4355
        %4361 = vmatprep.subr.mxu0 0.0
        %4362 = vmatpush1.xpose.msra.mxu0 %v4357
        %4363 = vmatprep.subr.mxu0 0.0
        %4364 = vmatpush1.xpose.msra.mxu0 0.0
        %4365 = vmatprep.subr.mxu0 0.0
        %4366 = vmatpush1.xpose.msra.mxu0 0.0
        %4367 = vmatprep.subr.mxu0 0.0
        %4368 = vmatpush1.xpose.msra.mxu0 0.0
        %4369 = vmatprep.subr.mxu0 0.0
        %4370 = vmatpush1.xpose.msra.mxu0 0.0
        %4371 = vmatprep.subr.mxu0 0.0
        %4372 = vmatpush1.xpose.msra.mxu0 0.0
        %4373 = vmatprep.subr.mxu0 0.0
        %4374 = vmatpush1.xpose.msra.mxu0 0.0
        %4375 = vmatprep.subr.mxu0 0.0
        %4376 = vmatpush1.xpose.msra.mxu0 0.0
        %4377 = vmatprep.subr.mxu0 0.0
        %4378 = vmatpush1.xpose.msra.mxu0 0.0
        %4379 = vmatprep.subr.mxu0 0.0
        %4380 = vmatpush1.xpose.msra.mxu0 0.0
        %4381 = vmatprep.subr.mxu0 0.0
        %4382 = vmatpush1.xpose.msra.mxu0 0.0
        %4383 = vmatprep.subr.mxu0 0.0
        %4384 = vmatpush1.xpose.msra.mxu0 0.0
        %4385 = vmatprep.subr.mxu0 0.0
        %4386 = vmatpush1.xpose.msra.mxu0 0.0
        %4387 = vmatprep.subr.mxu0 0.0
        %4388 = vmatpush1.xpose.msra.mxu0 0.0
        %4389 = vmatprep.subr.mxu0 0.0
        %4390 = vmatpush1.xpose.msra.mxu0 0.0
        %4391 = vmatprep.subr.mxu0 0.0
        %4392 = vmatpush1.xpose.msra.mxu0 0.0
        %4393 = vmatprep.subr.mxu0 0.0
        %4394 = vmatpush1.xpose.msra.mxu0 0.0
        %4395 = vmatprep.subr.mxu0 0.0
        %4396 = vmatpush1.xpose.msra.mxu0 0.0
        %4397 = vmatprep.subr.mxu0 0.0
        %4398 = vmatpush1.xpose.msra.mxu0 0.0
        %4399 = vmatprep.subr.mxu0 0.0
        %4400 = vmatpush1.xpose.msra.mxu0 0.0
        %4401 = vmatprep.subr.mxu0 0.0
        %4402 = vmatpush1.xpose.msra.mxu0 0.0
        %4403 = vmatprep.subr.mxu0 0.0
        %4404 = vmatpush1.xpose.msra.mxu0 0.0
        %4405 = vmatprep.subr.mxu0 0.0
        %4406 = vmatpush1.xpose.msra.mxu0 0.0
        %4407 = vmatprep.subr.mxu0 0.0
        %4408 = vmatpush1.xpose.msra.mxu0 0.0
        %4409 = vmatprep.subr.mxu0 0.0
        %4410 = vmatpush1.xpose.msra.mxu0 0.0
        %4411 = vmatprep.subr.mxu0 0.0
        %4412 = vmatpush1.xpose.msra.mxu0 0.0
        %4413 = vmatprep.subr.mxu0 0.0
        %4414 = vmatpush1.xpose.msra.mxu0 0.0
        %4415 = vmatprep.subr.mxu0 0.0
        %4416 = vmatpush1.xpose.msra.mxu0 0.0
        %4417 = vmatprep.subr.mxu0 0.0
        %4418 = vmatpush1.xpose.msra.mxu0 0.0
        %4419 = vmatprep.subr.mxu0 0.0
        %4420 = vmatpush1.xpose.msra.mxu0 0.0
        %4421 = vmatprep.subr.mxu0 0.0
        %4422 = vmatpush1.xpose.msra.mxu0 0.0
        %4423 = vmatprep.mubr.f32.mxu0 0.0
        %4424 = vmatmul.mubr.f32.gmra.mrb[0].mxu0 %v2635
        %v4425 = vpop.f32.mrb[0].mxu0
        %v4426 = vadd.f32 %v975, %v4425
        %v4427 = vpop.f32.mrb[0].mxu0
        %4428 = vmatprep.mubr.f32.mxu0 0.0
        %4429 = vmatmul.mubr.f32.gmra.mrb[0].mxu0 %v2637
        %v4430 = vpop.f32.mrb[0].mxu0
        %v4431 = vadd.f32 %v976, %v4430
        %v4432 = vpop.f32.mrb[0].mxu0
        %4433 = vdwg.mxu0
        %v4434 = vsel %vm1086, %v4343, -inf
        %4435 = vmax.xlane.f32.xlu0 %v4434
        %v4436 = vpop.xlane.xlu0 %4435
        %v4437 = vsel %vm1086, %v4348, -inf
        %4438 = vmax.xlane.f32.xlu0 %v4437
        %v4439 = vpop.xlane.xlu0 %4438
        %v4440 = vsel %vm1086, %v4426, -inf
        %4441 = vmax.xlane.f32.xlu0 %v4440
        %v4442 = vpop.xlane.xlu0 %4441
        %v4443 = vsel %vm1086, %v4431, -inf
        %4444 = vmax.xlane.f32.xlu0 %v4443
        %v4445 = vpop.xlane.xlu0 %4444
        %v4446 = vsub.f32 %v4343, %v4436
        %v4447 = vsub.f32 %v4348, %v4439
        %v4448 = vsub.f32 %v4426, %v4442
        %v4449 = vsub.f32 %v4431, %v4445
        %v4450 = vmul.f32 %v4446, 1.442695
        %v4451 = vpow.pop %v4450
        %v4452 = vmul.f32 %v4447, 1.442695
        %v4453 = vpow.pop %v4452
        %v4454 = vmul.f32 %v4448, 1.442695
        %v4455 = vpow.pop %v4454
        %v4456 = vmul.f32 %v4449, 1.442695
        %v4457 = vpow.pop %v4456
        %4458 = vrot.lane.b32.xlu0 %v735, 72
        %v4459 = vpop.permute.xlu0 %4458
        %4460 = vrot.lane.b32.xlu0 %v740, 72
        %v4461 = vpop.permute.xlu0 %4460
        %v4465 = vsel %vm1086, %v4451, 0
        %v4468 = vsel %vm1086, %v4453, 0
        %4470 = vmatprep.subr.mxu0 0.0
        %4471 = vmatpush1.msra.mxu0 %v4459
        %4472 = vmatprep.subr.mxu0 0.0
        %4473 = vmatpush1.msra.mxu0 %v4461
        %4474 = vmatprep.subr.mxu0 0.0
        %4475 = vmatpush1.msra.mxu0 0.0
        %4476 = vmatprep.subr.mxu0 0.0
        %4477 = vmatpush1.msra.mxu0 0.0
        %4478 = vmatprep.subr.mxu0 0.0
        %4479 = vmatpush1.msra.mxu0 0.0
        %4480 = vmatprep.subr.mxu0 0.0
        %4481 = vmatpush1.msra.mxu0 0.0
        %4482 = vmatprep.subr.mxu0 0.0
        %4483 = vmatpush1.msra.mxu0 0.0
        %4484 = vmatprep.subr.mxu0 0.0
        %4485 = vmatpush1.msra.mxu0 0.0
        %4486 = vmatprep.subr.mxu0 0.0
        %4487 = vmatpush1.msra.mxu0 0.0
        %4488 = vmatprep.subr.mxu0 0.0
        %4489 = vmatpush1.msra.mxu0 0.0
        %4490 = vmatprep.subr.mxu0 0.0
        %4491 = vmatpush1.msra.mxu0 0.0
        %4492 = vmatprep.subr.mxu0 0.0
        %4493 = vmatpush1.msra.mxu0 0.0
        %4494 = vmatprep.subr.mxu0 0.0
        %4495 = vmatpush1.msra.mxu0 0.0
        %4496 = vmatprep.subr.mxu0 0.0
        %4497 = vmatpush1.msra.mxu0 0.0
        %4498 = vmatprep.subr.mxu0 0.0
        %4499 = vmatpush1.msra.mxu0 0.0
        %4500 = vmatprep.subr.mxu0 0.0
        %4501 = vmatpush1.msra.mxu0 0.0
        %4502 = vmatprep.subr.mxu0 0.0
        %4503 = vmatpush1.msra.mxu0 0.0
        %4504 = vmatprep.subr.mxu0 0.0
        %4505 = vmatpush1.msra.mxu0 0.0
        %4506 = vmatprep.subr.mxu0 0.0
        %4507 = vmatpush1.msra.mxu0 0.0
        %4508 = vmatprep.subr.mxu0 0.0
        %4509 = vmatpush1.msra.mxu0 0.0
        %4510 = vmatprep.subr.mxu0 0.0
        %4511 = vmatpush1.msra.mxu0 0.0
        %4512 = vmatprep.subr.mxu0 0.0
        %4513 = vmatpush1.msra.mxu0 0.0
        %4514 = vmatprep.subr.mxu0 0.0
        %4515 = vmatpush1.msra.mxu0 0.0
        %4516 = vmatprep.subr.mxu0 0.0
        %4517 = vmatpush1.msra.mxu0 0.0
        %4518 = vmatprep.subr.mxu0 0.0
        %4519 = vmatpush1.msra.mxu0 0.0
        %4520 = vmatprep.subr.mxu0 0.0
        %4521 = vmatpush1.msra.mxu0 0.0
        %4522 = vmatprep.subr.mxu0 0.0
        %4523 = vmatpush1.msra.mxu0 0.0
        %4524 = vmatprep.subr.mxu0 0.0
        %4525 = vmatpush1.msra.mxu0 0.0
        %4526 = vmatprep.subr.mxu0 0.0
        %4527 = vmatpush1.msra.mxu0 0.0
        %4528 = vmatprep.subr.mxu0 0.0
        %4529 = vmatpush1.msra.mxu0 0.0
        %4530 = vmatprep.subr.mxu0 0.0
        %4531 = vmatpush1.msra.mxu0 0.0
        %4532 = vmatprep.subr.mxu0 0.0
        %4533 = vmatpush1.msra.mxu0 0.0
        %4534 = vmatprep.mubr.f32.mxu0 0.0
        %4535 = vmatmul.mubr.f32.gmra.mrb[0].mxu0 %v4465
        %v4536 = vpop.f32.mrb[0].mxu0
        %v4537 = vadd.f32 0.0, %v4536
        %v4538 = vpop.f32.mrb[0].mxu0
        %4539 = vmatprep.mubr.f32.mxu0 0.0
        %4540 = vmatmul.mubr.f32.gmra.mrb[0].mxu0 %v4468
        %v4541 = vpop.f32.mrb[0].mxu0
        %v4542 = vadd.f32 0.0, %v4541
        %v4543 = vpop.f32.mrb[0].mxu0
        %4544 = vdwg.mxu0
        %4545 = vrot.lane.b32.xlu0 %v745, 72
        %v4546 = vpop.permute.xlu0 %4545
        %4547 = vrot.lane.b32.xlu0 %v750, 72
        %v4548 = vpop.permute.xlu0 %4547
        %v4552 = vsel %vm1086, %v4455, 0
        %v4555 = vsel %vm1086, %v4457, 0
        %4557 = vmatprep.subr.mxu0 0.0
        %4558 = vmatpush1.msra.mxu0 %v4546
        %4559 = vmatprep.subr.mxu0 0.0
        %4560 = vmatpush1.msra.mxu0 %v4548
        %4561 = vmatprep.subr.mxu0 0.0
        %4562 = vmatpush1.msra.mxu0 0.0
        %4563 = vmatprep.subr.mxu0 0.0
        %4564 = vmatpush1.msra.mxu0 0.0
        %4565 = vmatprep.subr.mxu0 0.0
        %4566 = vmatpush1.msra.mxu0 0.0
        %4567 = vmatprep.subr.mxu0 0.0
        %4568 = vmatpush1.msra.mxu0 0.0
        %4569 = vmatprep.subr.mxu0 0.0
        %4570 = vmatpush1.msra.mxu0 0.0
        %4571 = vmatprep.subr.mxu0 0.0
        %4572 = vmatpush1.msra.mxu0 0.0
        %4573 = vmatprep.subr.mxu0 0.0
        %4574 = vmatpush1.msra.mxu0 0.0
        %4575 = vmatprep.subr.mxu0 0.0
        %4576 = vmatpush1.msra.mxu0 0.0
        %4577 = vmatprep.subr.mxu0 0.0
        %4578 = vmatpush1.msra.mxu0 0.0
        %4579 = vmatprep.subr.mxu0 0.0
        %4580 = vmatpush1.msra.mxu0 0.0
        %4581 = vmatprep.subr.mxu0 0.0
        %4582 = vmatpush1.msra.mxu0 0.0
        %4583 = vmatprep.subr.mxu0 0.0
        %4584 = vmatpush1.msra.mxu0 0.0
        %4585 = vmatprep.subr.mxu0 0.0
        %4586 = vmatpush1.msra.mxu0 0.0
        %4587 = vmatprep.subr.mxu0 0.0
        %4588 = vmatpush1.msra.mxu0 0.0
        %4589 = vmatprep.subr.mxu0 0.0
        %4590 = vmatpush1.msra.mxu0 0.0
        %4591 = vmatprep.subr.mxu0 0.0
        %4592 = vmatpush1.msra.mxu0 0.0
        %4593 = vmatprep.subr.mxu0 0.0
        %4594 = vmatpush1.msra.mxu0 0.0
        %4595 = vmatprep.subr.mxu0 0.0
        %4596 = vmatpush1.msra.mxu0 0.0
        %4597 = vmatprep.subr.mxu0 0.0
        %4598 = vmatpush1.msra.mxu0 0.0
        %4599 = vmatprep.subr.mxu0 0.0
        %4600 = vmatpush1.msra.mxu0 0.0
        %4601 = vmatprep.subr.mxu0 0.0
        %4602 = vmatpush1.msra.mxu0 0.0
        %4603 = vmatprep.subr.mxu0 0.0
        %4604 = vmatpush1.msra.mxu0 0.0
        %4605 = vmatprep.subr.mxu0 0.0
        %4606 = vmatpush1.msra.mxu0 0.0
        %4607 = vmatprep.subr.mxu0 0.0
        %4608 = vmatpush1.msra.mxu0 0.0
        %4609 = vmatprep.subr.mxu0 0.0
        %4610 = vmatpush1.msra.mxu0 0.0
        %4611 = vmatprep.subr.mxu0 0.0
        %4612 = vmatpush1.msra.mxu0 0.0
        %4613 = vmatprep.subr.mxu0 0.0
        %4614 = vmatpush1.msra.mxu0 0.0
        %4615 = vmatprep.subr.mxu0 0.0
        %4616 = vmatpush1.msra.mxu0 0.0
        %4617 = vmatprep.subr.mxu0 0.0
        %4618 = vmatpush1.msra.mxu0 0.0
        %4619 = vmatprep.subr.mxu0 0.0
        %4620 = vmatpush1.msra.mxu0 0.0
        %4621 = vmatprep.mubr.f32.mxu0 0.0
        %4622 = vmatmul.mubr.f32.gmra.mrb[0].mxu0 %v4552
        %v4623 = vpop.f32.mrb[0].mxu0
        %v4624 = vadd.f32 0.0, %v4623
        %v4625 = vpop.f32.mrb[0].mxu0
        %4626 = vmatprep.mubr.f32.mxu0 0.0
        %4627 = vmatmul.mubr.f32.gmra.mrb[0].mxu0 %v4555
        %v4628 = vpop.f32.mrb[0].mxu0
        %v4629 = vadd.f32 0.0, %v4628
        %v4630 = vpop.f32.mrb[0].mxu0
        %4631 = vdwg.mxu0
        %v4632 = vsel %vm1086, %v4451, 0.0
        %4633 = vadd.xlane.f32.xlu0 %v4632
        %v4634 = vpop.xlane.xlu0 %4633
        %v4635 = vsel %vm1086, %v4453, 0.0
        %4636 = vadd.xlane.f32.xlu0 %v4635
        %v4637 = vpop.xlane.xlu0 %4636
        %v4638 = vsel %vm1086, %v4455, 0.0
        %4639 = vadd.xlane.f32.xlu0 %v4638
        %v4640 = vpop.xlane.xlu0 %4639
        %v4641 = vsel %vm1086, %v4457, 0.0
        %4642 = vadd.xlane.f32.xlu0 %v4641
        %v4643 = vpop.xlane.xlu0 %4642
        %v4644 = vrcp.pop %v4634
        %v4645 = vrcp.pop %v4637
        %v4646 = vrcp.pop %v4640
        %v4647 = vrcp.pop %v4643
        %v4648 = vmul.f32 %v4537, %v4644
        %v4649 = vmul.f32 %v4542, %v4645
        %v4650 = vmul.f32 %v4624, %v4646
        %v4651 = vmul.f32 %v4629, %v4647
        %4656 = vrot.lane.b32.xlu0 %v3880, 8
        %v4657 = vpop.permute.xlu0 %4656
        %4658 = vrot.lane.b32.xlu0 %v3881, 8
        %v4659 = vpop.permute.xlu0 %4658
        %4660 = vrot.lane.b32.xlu0 %v3882, 8
        %v4661 = vpop.permute.xlu0 %4660
        %4662 = vrot.lane.b32.xlu0 %v3883, 8
        %v4663 = vpop.permute.xlu0 %4662
        %4672 = vrot.lane.b32.xlu0 %v4264, 16
        %v4673 = vpop.permute.xlu0 %4672
        %4674 = vrot.lane.b32.xlu0 %v4265, 16
        %v4675 = vpop.permute.xlu0 %4674
        %4676 = vrot.lane.b32.xlu0 %v4266, 16
        %v4677 = vpop.permute.xlu0 %4676
        %4678 = vrot.lane.b32.xlu0 %v4267, 16
        %v4679 = vpop.permute.xlu0 %4678
        %4688 = vrot.lane.b32.xlu0 %v4648, 24
        %v4689 = vpop.permute.xlu0 %4688
        %4690 = vrot.lane.b32.xlu0 %v4649, 24
        %v4691 = vpop.permute.xlu0 %4690
        %4692 = vrot.lane.b32.xlu0 %v4650, 24
        %v4693 = vpop.permute.xlu0 %4692
        %4694 = vrot.lane.b32.xlu0 %v4651, 24
        %v4695 = vpop.permute.xlu0 %4694
        %v4700 = vsel %vm1081, %v3496, %v4657
        %v4701 = vsel %vm1081, %v3497, %v4659
        %v4702 = vsel %vm1081, %v3498, %v4661
        %v4703 = vsel %vm1081, %v3499, %v4663
        %v4704 = vsel %vm1086, %v4700, %v4673
        %v4705 = vsel %vm1086, %v4701, %v4675
        %v4706 = vsel %vm1086, %v4702, %v4677
        %v4707 = vsel %vm1086, %v4703, %v4679
        %v4708 = vsel %vm1091, %v4704, %v4689
        %v4709 = vsel %vm1091, %v4705, %v4691
        %v4710 = vsel %vm1091, %v4706, %v4693
        %v4711 = vsel %vm1091, %v4707, %v4695
        %v4712 = vsub.f32 %v4708, %v3112
        %v4713 = vsub.f32 %v4709, %v3113
        %v4714 = vsub.f32 %v4710, %v3114
        %v4715 = vsub.f32 %v4711, %v3115
        %v4716 = vld [vmem:[#allocation14] sm:$0xff]
        %v4717 = vld [vmem:[#allocation14 + $0x8] sm:$0xff]
        %v4718 = vld [vmem:[#allocation14 + $0x10] sm:$0xff]
        %v4719 = vld [vmem:[#allocation14 + $0x18] sm:$0xff]
        %v4720 = vld [vmem:[%s12] sm:$0x1]
        %v4722 = vlaneseq
        %v4723 = vshrl.u32 %v4722, 7
        %v4724 = vsub.s32 0, %v4723
        %v4725 = vrot.slane %v4720, %v4724
        %v4728 = vsel %vm655, %v4712, 0
        %v4731 = vsel %vm655, %v4713, 0
        %v4734 = vsel %vm655, %v4714, 0
        %v4737 = vsel %vm655, %v4715, 0
        %4739 = vmatprep.subr.mxu0 0.0
        %4740 = vmatpush1.msra.mxu0 %v4716
        %4741 = vmatprep.subr.mxu0 0.0
        %4742 = vmatpush1.msra.mxu0 %v4717
        %4743 = vmatprep.subr.mxu0 0.0
        %4744 = vmatpush1.msra.mxu0 %v4718
        %4745 = vmatprep.subr.mxu0 0.0
        %4746 = vmatpush1.msra.mxu0 %v4719
        %4747 = vmatprep.subr.mxu0 0.0
        %4748 = vmatpush1.msra.mxu0 0.0
        %4749 = vmatprep.subr.mxu0 0.0
        %4750 = vmatpush1.msra.mxu0 0.0
        %4751 = vmatprep.subr.mxu0 0.0
        %4752 = vmatpush1.msra.mxu0 0.0
        %4753 = vmatprep.subr.mxu0 0.0
        %4754 = vmatpush1.msra.mxu0 0.0
        %4755 = vmatprep.subr.mxu0 0.0
        %4756 = vmatpush1.msra.mxu0 0.0
        %4757 = vmatprep.subr.mxu0 0.0
        %4758 = vmatpush1.msra.mxu0 0.0
        %4759 = vmatprep.subr.mxu0 0.0
        %4760 = vmatpush1.msra.mxu0 0.0
        %4761 = vmatprep.subr.mxu0 0.0
        %4762 = vmatpush1.msra.mxu0 0.0
        %4763 = vmatprep.subr.mxu0 0.0
        %4764 = vmatpush1.msra.mxu0 0.0
        %4765 = vmatprep.subr.mxu0 0.0
        %4766 = vmatpush1.msra.mxu0 0.0
        %4767 = vmatprep.subr.mxu0 0.0
        %4768 = vmatpush1.msra.mxu0 0.0
        %4769 = vmatprep.subr.mxu0 0.0
        %4770 = vmatpush1.msra.mxu0 0.0
        %4771 = vmatprep.subr.mxu0 0.0
        %4772 = vmatpush1.msra.mxu0 0.0
        %4773 = vmatprep.subr.mxu0 0.0
        %4774 = vmatpush1.msra.mxu0 0.0
        %4775 = vmatprep.subr.mxu0 0.0
        %4776 = vmatpush1.msra.mxu0 0.0
        %4777 = vmatprep.subr.mxu0 0.0
        %4778 = vmatpush1.msra.mxu0 0.0
        %4779 = vmatprep.subr.mxu0 0.0
        %4780 = vmatpush1.msra.mxu0 0.0
        %4781 = vmatprep.subr.mxu0 0.0
        %4782 = vmatpush1.msra.mxu0 0.0
        %4783 = vmatprep.subr.mxu0 0.0
        %4784 = vmatpush1.msra.mxu0 0.0
        %4785 = vmatprep.subr.mxu0 0.0
        %4786 = vmatpush1.msra.mxu0 0.0
        %4787 = vmatprep.subr.mxu0 0.0
        %4788 = vmatpush1.msra.mxu0 0.0
        %4789 = vmatprep.subr.mxu0 0.0
        %4790 = vmatpush1.msra.mxu0 0.0
        %4791 = vmatprep.subr.mxu0 0.0
        %4792 = vmatpush1.msra.mxu0 0.0
        %4793 = vmatprep.subr.mxu0 0.0
        %4794 = vmatpush1.msra.mxu0 0.0
        %4795 = vmatprep.subr.mxu0 0.0
        %4796 = vmatpush1.msra.mxu0 0.0
        %4797 = vmatprep.subr.mxu0 0.0
        %4798 = vmatpush1.msra.mxu0 0.0
        %4799 = vmatprep.subr.mxu0 0.0
        %4800 = vmatpush1.msra.mxu0 0.0
        %4801 = vmatprep.subr.mxu0 0.0
        %4802 = vmatpush1.msra.mxu0 0.0
        %4803 = vmatprep.mubr.f32.mxu0 0.0
        %4804 = vmatmul.mubr.f32.gmra.mrb[0].mxu0 %v4728
        %v4805 = vpop.f32.mrb[0].mxu0
        %v4806 = vadd.f32 %v4725, %v4805
        %v4807 = vpop.f32.mrb[0].mxu0
        %4808 = vmatprep.mubr.f32.mxu0 0.0
        %4809 = vmatmul.mubr.f32.gmra.mrb[0].mxu0 %v4731
        %v4810 = vpop.f32.mrb[0].mxu0
        %v4811 = vadd.f32 %v4725, %v4810
        %v4812 = vpop.f32.mrb[0].mxu0
        %4813 = vmatprep.mubr.f32.mxu0 0.0
        %4814 = vmatmul.mubr.f32.gmra.mrb[0].mxu0 %v4734
        %v4815 = vpop.f32.mrb[0].mxu0
        %v4816 = vadd.f32 %v4725, %v4815
        %v4817 = vpop.f32.mrb[0].mxu0
        %4818 = vmatprep.mubr.f32.mxu0 0.0
        %4819 = vmatmul.mubr.f32.gmra.mrb[0].mxu0 %v4737
        %v4820 = vpop.f32.mrb[0].mxu0
        %v4821 = vadd.f32 %v4725, %v4820
        %v4822 = vpop.f32.mrb[0].mxu0
        %4823 = vdwg.mxu0
        %4824 = vst.msk [vmem:[%s623] sm:$0xff] %vm655, %v4806
        %4825 = vst.msk [vmem:[%s623 + $0x8] sm:$0xff] %vm655, %v4811
        %4826 = vst.msk [vmem:[%s623 + $0x10] sm:$0xff] %vm655, %v4816
        %4827 = vst.msk [vmem:[%s623 + $0x18] sm:$0xff] %vm655, %v4821
        %s4828 = sand.u32 %s332, 1
        %s4829 = scalar_lea.sflag [#allocation4], %s4828
        %s4830 = sand.u32 %s332, 1
        %s4831 = smul.addr %s4830, 32
        %s4832 = scalar_lea.vmem [#allocation16], %s4831
        %s4833 = sand.u32 %s358, 1
        %s4834 = scalar_lea.sflag [#allocation18], %s4833
        %s4835 = sand.u32 %s358, 1
        %s4836 = smul.addr %s4835, 32
        %s4837 = scalar_lea.vmem [#allocation17], %s4836
        // Predicated region
        $region105: #{tpu_custom_call.1} parent=71 // pred_check
          %p4838 = pneg %p342
        $region106: #{tpu_custom_call.1} parent=71 // pred_check_branch
          %4840 = sbr.rel (%p4838) target = $region108
        $region107: #{tpu_custom_call.1} parent=71 // pred_region
          %s4841 = smul.u32 2, %s41
          %s4843 = ssub.s32 512, 512
          %4844 = vsyncadd %s4829, %s4843
          %s4845 = smul.addr %s4841, 2
          %s4846 = smul.addr %s4845, 128
          %s4847 = scalar_lea.hbm %s13, %s4846
          %s4848 = sshll.u32 %s4832, 4
          %s4849 = int_to_ptr.vmem [resolvable:$true] %s4848
          %4854 = dma.vmem_to_hbm [thread:$0]  %s4849, 512, %s4847, %s4829, 128, 128, 8
        $region108: #{tpu_custom_call.1} parent=71 // pred_fallthru
          _
        // Predicated region
        $region109: #{tpu_custom_call.1} parent=71 // pred_check
          %p4855 = pneg %p368
        $region110: #{tpu_custom_call.1} parent=71 // pred_check_branch
          %4857 = sbr.rel (%p4855) target = $region112
        $region111: #{tpu_custom_call.1} parent=71 // pred_region
          %s4858 = smul.u32 2, %s41
          %s4860 = ssub.s32 512, 512
          %4861 = vsyncadd %s4834, %s4860
          %s4862 = smul.addr %s4858, 2
          %s4863 = smul.addr %s4862, 128
          %s4864 = scalar_lea.hbm %s14, %s4863
          %s4865 = sshll.u32 %s4837, 4
          %s4866 = int_to_ptr.vmem [resolvable:$true] %s4865
          %4871 = dma.vmem_to_hbm [thread:$0]  %s4866, 512, %s4864, %s4834, 128, 128, 8
        $region112: #{tpu_custom_call.1} parent=71 // pred_fallthru
          _
      $region72: #{tpu_custom_call.1} parent=5 // pred_fallthru
        _
      %p4872 = scmp.le.s32.totalorder 2, %s36
      // Predicated region
      $region113: #{tpu_custom_call.1} parent=5 // pred_check
        %p4873 = pneg %p4872
      $region114: #{tpu_custom_call.1} parent=5 // pred_check_branch
        %4875 = sbr.rel (%p4873) target = $region116
      $region115: #{tpu_custom_call.1} parent=5 // pred_region
        %s4876 = ssub.s32 %s36, 2
        // Predicated region
        $region117: #{tpu_custom_call.1} parent=115 // pred_check
          %p4877 = pneg %p348
        $region118: #{tpu_custom_call.1} parent=115 // pred_check_branch
          %4879 = sbr.rel (%p4877) target = $region120
        $region119: #{tpu_custom_call.1} parent=115 // pred_region
          %s4880 = sand.u32 %s333, 1
          %s4881 = scalar_lea.sflag [#allocation4], %s4880
          %s4882 = sand.u32 %s333, 1
          %s4883 = smul.addr %s4882, 32
          %s4884 = scalar_lea.vmem [#allocation16], %s4883
          %4885 = dma.done %s4881, 512
        $region120: #{tpu_custom_call.1} parent=115 // pred_fallthru
          _
        // Predicated region
        $region121: #{tpu_custom_call.1} parent=115 // pred_check
          %p4886 = pneg %p374
        $region122: #{tpu_custom_call.1} parent=115 // pred_check_branch
          %4888 = sbr.rel (%p4886) target = $region124
        $region123: #{tpu_custom_call.1} parent=115 // pred_region
          %s4889 = sand.u32 %s359, 1
          %s4890 = scalar_lea.sflag [#allocation18], %s4889
          %s4891 = sand.u32 %s359, 1
          %s4892 = smul.addr %s4891, 32
          %s4893 = scalar_lea.vmem [#allocation17], %s4892
          %4894 = dma.done %s4890, 512
        $region124: #{tpu_custom_call.1} parent=115 // pred_fallthru
          _
      $region116: #{tpu_custom_call.1} parent=5 // pred_fallthru
        _
    $region6: #{tpu_custom_call.1} parent=1 // loop_footer
      %s40 = sadd.s32 1, %s36
    $region7: #{tpu_custom_call.1} parent=1 // loop_footer_branch
      %35 = sbr.rel target = $region3
    $region8: #{tpu_custom_call.1} parent=1 // loop_exit
      _
    %4895 = vsyncpa [#allocation3], 1
    %s4896 = scalar_lea.sflag [#allocation3], 1
    %4897 = vsyncpa %s4896, 1
    %4898 = vsyncpa [#allocation6], 1
    %s4899 = scalar_lea.sflag [#allocation6], 1
    %4900 = vsyncpa %s4899, 1
    %4901 = vsyncpa [#allocation9], 1
    %4902 = vsyncpa [#allocation12], 1
    %4903 = vsyncpa [#allocation15], 1
    %4904 = vsyncpa [#allocation4], 1
    %s4905 = scalar_lea.sflag [#allocation4], 1
    %4906 = vsyncpa %s4905, 1
    %4907 = vsyncpa [#allocation18], 1
    %s4908 = scalar_lea.sflag [#allocation18], 1
    %4909 = vsyncpa %s4908, 1

</llo_original>
